<compile_context>
chip_gen: v6e
topology: v6e:2x2x1
jax: 0.10.0
libtpu: 0.0.40
codegen_flags: <defaults>
</compile_context>

<pallas_src>
import functools

import jax
import jax.numpy as jnp
from jax.experimental import pallas as pl
from jax.experimental.pallas import tpu as pltpu


# ----------------------------------------------------------------------------
# Fused Pallas kernel:
#   shared MLP (3x [matmul + folded-BN bias + ReLU]) over grouped neighborhoods
#   -> max-pool over nsample -> conv1/conv2 (folded BN) -> fused cls+box head.
# ----------------------------------------------------------------------------
def fused_proposal_kernel(gfeat_ref, gxyz_ref,
                          w1f, w1x, b1, w2, b2, w3, b3,
                          c1w, c1b, c2w, c2b, wh, bh,
                          agg_out, detr_out, head_out,
                          *, npoint, nsample):
    # gfeat_ref: (nsample*npoint, C) bf16, nsample index OUTER -> the max-pool
    #            over nsample is a max over static contiguous row slices.
    # gxyz_ref : (nsample*npoint, 3) f32 normalized relative coordinates.
    x = gfeat_ref[...]
    xyz = gxyz_ref[...]

    # --- SA layer 1: K=C bf16 MXU matmul + tiny K=3 xyz contraction (no
    #     padded-259 contraction), BN folded into weights/bias.
    h = jnp.dot(x, w1f[...], preferred_element_type=jnp.float32)
    h = h + jnp.dot(xyz, w1x[...], preferred_element_type=jnp.float32)
    h = jnp.maximum(h + b1[...], 0.0)

    # --- SA layers 2/3 (bf16 operands, f32 accumulation)
    h = jnp.maximum(jnp.dot(h.astype(jnp.bfloat16), w2[...],
                            preferred_element_type=jnp.float32) + b2[...], 0.0)
    h = jnp.maximum(jnp.dot(h.astype(jnp.bfloat16), w3[...],
                            preferred_element_type=jnp.float32) + b3[...], 0.0)

    # --- max-pool over nsample: pairwise tree reduction (log-depth chain)
    blocks = [h[s * npoint:(s + 1) * npoint] for s in range(nsample)]
    while len(blocks) > 1:
        nxt = [jnp.maximum(blocks[i], blocks[i + 1])
               for i in range(0, len(blocks) - 1, 2)]
        if len(blocks) % 2:
            nxt.append(blocks[-1])
        blocks = nxt
    agg = blocks[0]                                   # (npoint, P) f32
    agg_out[...] = agg

    # --- conv1/bn1/relu + conv2/bn2/relu (BN folded into weights)
    g = jnp.maximum(jnp.dot(agg.astype(jnp.bfloat16), c1w[...],
                            preferred_element_type=jnp.float32) + c1b[...], 0.0)
    g = jnp.maximum(jnp.dot(g.astype(jnp.bfloat16), c2w[...],
                            preferred_element_type=jnp.float32) + c2b[...], 0.0)
    detr_out[...] = g

    # --- fused class+box projection heads: one matmul, one lane-dense
    #     (padded-to-128) unmasked store; sliced into logits/boxes in JAX.
    head_out[...] = jnp.dot(g.astype(jnp.bfloat16), wh[...],
                            preferred_element_type=jnp.float32) + bh[...]


# ----------------------------------------------------------------------------
# pallas_call wrapper
# ----------------------------------------------------------------------------
def _full_spec(shape):
    return pl.BlockSpec(shape, lambda b: (0,) * len(shape))


def fused_proposal_pass(grouped_feat, grouped_xyz,
                        w1f, w1x, b1, w2, b2, w3, b3,
                        c1w, c1b, c2w, c2b, wh, bh,
                        *, npoint, nsample):
    B, R, C = grouped_feat.shape
    P = w2.shape[0]
    Hpad = wh.shape[1]
    # NOTE: at production sizes (npoint~256, nsample~64) the per-batch grouped
    # slab should be tiled along the row axis and vmem_limit_bytes set
    # explicitly (v7x has 64 MiB physical VMEM); at these test shapes the
    # whole per-batch slab fits comfortably in the default scoped VMEM.
    return pl.pallas_call(
        functools.partial(fused_proposal_kernel, npoint=npoint, nsample=nsample),
        out_shape=(
            jax.ShapeDtypeStruct((B, npoint, P), jnp.float32),     # agg features
            jax.ShapeDtypeStruct((B, npoint, P), jnp.float32),     # detr features
            jax.ShapeDtypeStruct((B, npoint, Hpad), jnp.float32),  # cls+box (padded)
        ),
        grid=(B,),
        in_specs=[
            pl.BlockSpec((None, R, C), lambda b: (b, 0, 0)),
            pl.BlockSpec((None, R, 3), lambda b: (b, 0, 0)),
            _full_spec(w1f.shape), _full_spec(w1x.shape), _full_spec(b1.shape),
            _full_spec(w2.shape), _full_spec(b2.shape),
            _full_spec(w3.shape), _full_spec(b3.shape),
            _full_spec(c1w.shape), _full_spec(c1b.shape),
            _full_spec(c2w.shape), _full_spec(c2b.shape),
            _full_spec(wh.shape), _full_spec(bh.shape),
        ],
        out_specs=(
            pl.BlockSpec((None, npoint, P), lambda b: (b, 0, 0)),
            pl.BlockSpec((None, npoint, P), lambda b: (b, 0, 0)),
            pl.BlockSpec((None, npoint, Hpad), lambda b: (b, 0, 0)),
        ),
        compiler_params=pltpu.CompilerParams(
            dimension_semantics=("parallel",)),   # B>=2 -> both v7x TCs busy
    )(grouped_feat, grouped_xyz, w1f, w1x, b1, w2, b2, w3, b3,
      c1w, c1b, c2w, c2b, wh, bh)


# ----------------------------------------------------------------------------
# Plain-JAX glue: FPS, ball query, BN folding, score decoding
# ----------------------------------------------------------------------------
def farthest_point_sampling(xyz, npoint):
    """xyz: (B, N, 3) -> (B, npoint) int32, seeded from index 0 (pointnet2 style)."""
    B, N, _ = xyz.shape

    def single(pts):
        def body(i, state):
            idxs, dists = state
            last = pts[idxs[i - 1]]
            d = jnp.sum((pts - last) ** 2, axis=-1)
            dists = jnp.minimum(dists, d)
            idxs = idxs.at[i].set(jnp.argmax(dists).astype(jnp.int32))
            return idxs, dists

        idxs = jnp.zeros((npoint,), jnp.int32)
        dists = jnp.full((N,), 1e10, jnp.float32)
        idxs, _ = jax.lax.fori_loop(1, npoint, body, (idxs, dists))
        return idxs

    return jax.vmap(single)(xyz)


def ball_query(xyz, centers, radius, nsample):
    """xyz: (B,N,3), centers: (B,S,3) -> (B,S,nsample) int32 neighbor indices."""
    N = xyz.shape[1]
    d2 = jnp.sum((centers[:, :, None, :] - xyz[:, None, :, :]) ** 2, axis=-1)
    within = d2 < radius * radius
    key_idx = jnp.where(within, jnp.arange(N, dtype=jnp.int32)[None, None, :], N)
    sorted_idx = jnp.sort(key_idx, axis=-1)[:, :, :nsample]
    first = sorted_idx[:, :, :1]
    # Empty-ball fallback: repeat a deterministic valid index (0) instead of
    # clipping to an arbitrary far point.  (With FPS centers drawn from xyz the
    # center itself is always in-radius, so this path is never hit in practice.)
    first = jnp.where(first >= N, 0, first)
    grp = jnp.where(sorted_idx >= N, first, sorted_idx)
    return grp.astype(jnp.int32)


def fold_bn_into_weight(w, conv_bias, gamma, beta, mean, var, eps=1e-5):
    """Fold eval-mode BatchNorm into a (Cin, Cout) weight + (1, Cout) bias."""
    scale = gamma / jnp.sqrt(var + eps)          # (Cout,)
    w_scaled = w * scale[None, :]                # column-wise
    bias = (conv_bias - mean) * scale + beta
    return w_scaled, bias.reshape(1, -1)


def decode_scores_classes(output_dict, end_points, num_class):
    pred_logits = output_dict['pred_logits']
    assert pred_logits.shape[-1] == 2 + num_class, 'pred_logits.shape wrong'
    end_points['objectness_scores'] = pred_logits[:, :, 0:2]
    end_points['sem_cls_scores'] = pred_logits[:, :, 2:2 + num_class]
    return end_points


# ----------------------------------------------------------------------------
# ProposalModule (JAX/Pallas)
# ----------------------------------------------------------------------------
class ProposalModuleJAX:
    def __init__(self, num_class, num_heading_bin, num_size_cluster, mean_size_arr,
                 num_proposal, sampling, proposal_size=128, seed_feat_dim=256,
                 radius=0.3, nsample=16, quality_channel=False, key=None):
        self.num_class = num_class
        self.num_heading_bin = num_heading_bin
        self.num_size_cluster = num_size_cluster
        self.mean_size_arr = mean_size_arr
        self.num_proposal = num_proposal
        self.sampling = sampling
        self.proposal_size = proposal_size
        self.seed_feat_dim = seed_feat_dim
        self.radius = radius
        self.nsample = nsample
        self.quality_channel = quality_channel

        P = proposal_size
        C = seed_feat_dim
        C0 = C + 3                                  # use_xyz=True (xyz first)
        cls_dim = 2 + num_class
        box_dim = 3 + num_heading_bin * 2 + num_size_cluster * 4 + int(quality_channel)
        head_dim = cls_dim + box_dim
        Hpad = ((head_dim + 127) // 128) * 128      # lane-dense head output
        self.cls_dim, self.box_dim, self.head_pad = cls_dim, box_dim, Hpad

        keys = iter(jax.random.split(key, 32))

        def w(shape, scale=0.05):
            return jax.random.normal(next(keys), shape, jnp.float32) * scale

        def bn_params(c):
            gamma = 1.0 + 0.01 * jax.random.normal(next(keys), (c,), jnp.float32)
            beta = 0.01 * jax.random.normal(next(keys), (c,), jnp.float32)
            mean = jnp.zeros((c,), jnp.float32)
            var = jnp.ones((c,), jnp.float32)
            return gamma, beta, mean, var

        # --- vote_aggregation shared MLP [C0 -> P -> P -> P], BN folded.
        w1s, self.b1 = fold_bn_into_weight(w((C0, P)), w((P,), 0.01), *bn_params(P))
        self.w1x = w1s[0:3, :]                               # xyz rows, f32 (K=3)
        self.w1f = jnp.asarray(w1s[3:, :], jnp.bfloat16)     # feature rows, bf16

        w2s, self.b2 = fold_bn_into_weight(w((P, P)), w((P,), 0.01), *bn_params(P))
        self.w2 = jnp.asarray(w2s, jnp.bfloat16)
        w3s, self.b3 = fold_bn_into_weight(w((P, P)), w((P,), 0.01), *bn_params(P))
        self.w3 = jnp.asarray(w3s, jnp.bfloat16)

        # --- conv1/bn1, conv2/bn2 (Conv1d k=1 + BN1d), BN folded.
        c1s, self.c1b = fold_bn_into_weight(w((P, P)), w((P,), 0.01), *bn_params(P))
        self.c1w = jnp.asarray(c1s, jnp.bfloat16)
        c2s, self.c2b = fold_bn_into_weight(w((P, P)), w((P,), 0.01), *bn_params(P))
        self.c2w = jnp.asarray(c2s, jnp.bfloat16)

        # --- DETR3D prediction heads (class + bbox projections), fused + padded.
        # TODO(synk): the deformable-transformer encoder/decoder of DETR3D has no
        # clean Pallas equivalent here; only the output projection heads are kept.
        cls_w, cls_b = w((P, cls_dim)), w((cls_dim,), 0.01)
        box_w, box_b = w((P, box_dim)), w((box_dim,), 0.01)
        wh = jnp.zeros((P, Hpad), jnp.float32)
        wh = wh.at[:, :cls_dim].set(cls_w).at[:, cls_dim:head_dim].set(box_w)
        bh = jnp.zeros((1, Hpad), jnp.float32)
        bh = bh.at[0, :cls_dim].set(cls_b).at[0, cls_dim:head_dim].set(box_b)
        self.wh = jnp.asarray(wh, jnp.bfloat16)
        self.bh = bh

    # PointnetSAModuleVotes grouping (FPS + ball query + normalize_xyz + gather).
    def _group(self, xyz, features):
        B, K, _ = xyz.shape
        NP, NS = self.num_proposal, self.nsample

        fps_idx = farthest_point_sampling(xyz, NP)                       # (B, NP)
        centers = jax.vmap(lambda p, i: p[i])(xyz, fps_idx)              # (B, NP, 3)
        grp_idx = ball_query(xyz, centers, self.radius, NS)              # (B, NP, NS)

        grouped_xyz = jax.vmap(lambda p, i: p[i])(xyz, grp_idx)          # (B, NP, NS, 3)
        grouped_xyz = (grouped_xyz - centers[:, :, None, :]) / self.radius
        feat_t = jnp.transpose(features, (0, 2, 1))                      # (B, K, C)
        grouped_feat = jax.vmap(lambda f, i: f[i])(feat_t, grp_idx)      # (B, NP, NS, C)

        # nsample outermost -> in-kernel max-pool uses contiguous row slices.
        grouped_xyz = jnp.transpose(grouped_xyz, (0, 2, 1, 3)).reshape(B, NS * NP, 3)
        grouped_feat = jnp.transpose(grouped_feat, (0, 2, 1, 3)).reshape(B, NS * NP, -1)
        return (centers, fps_idx,
                grouped_xyz.astype(jnp.float32),
                grouped_feat.astype(jnp.bfloat16))

    def __call__(self, xyz, features, end_points):
        """xyz: (B,K,3)   features: (B,C,K)  (PyTorch Conv1d layout, C = seed_feat_dim)."""
        if self.sampling != 'vote_fps':
            raise NotImplementedError('Unknown sampling strategy: %s. Exiting!' % self.sampling)

        centers, fps_idx, gxyz, gfeat = self._group(xyz, features)

        agg_feat, detr_feat, head_raw = fused_proposal_pass(
            gfeat, gxyz,
            self.w1f, self.w1x, self.b1, self.w2, self.b2, self.w3, self.b3,
            self.c1w, self.c1b, self.c2w, self.c2b, self.wh, self.bh,
            npoint=self.num_proposal, nsample=self.nsample)

        end_points['aggregated_vote_xyz'] = centers
        end_points['aggregated_vote_features'] = agg_feat               # (B, NP, P)
        end_points['aggregated_vote_inds'] = fps_idx

        pred_logits = head_raw[:, :, :self.cls_dim]
        pred_boxes = head_raw[:, :, self.cls_dim:self.cls_dim + self.box_dim]
        output_dict = {'pred_logits': pred_logits, 'pred_boxes': pred_boxes,
                       'detr_features': detr_feat}
        end_points['detr_features'] = detr_feat

        end_points = decode_scores_classes(output_dict, end_points, self.num_class)
        # TODO(synk): decode_scores_boxes / decode_dataset_config (dataset_config=None
        # passthrough) depend on code not provided; raw bbox head output is exposed.
        end_points['pred_boxes_raw'] = pred_boxes
        return end_points


# ----------------------------------------------------------------------------
if __name__ == "__main__":
    key = jax.random.PRNGKey(0)
    k_xyz, k_feat, k_param = jax.random.split(key, 3)

    B, K = 2, 64                 # batch, number of vote/seed points
    seed_feat_dim = 256
    proposal_size = 128
    num_proposal = 32
    num_class, num_heading_bin, num_size_cluster = 4, 2, 2

    xyz = jax.random.uniform(k_xyz, (B, K, 3), jnp.float32)              # (B,K,3)
    features = jax.random.normal(k_feat, (B, seed_feat_dim, K), jnp.float32) * 0.1

    module = ProposalModuleJAX(
        num_class=num_class,
        num_heading_bin=num_heading_bin,
        num_size_cluster=num_size_cluster,
        mean_size_arr=jnp.ones((num_size_cluster, 3), jnp.float32),
        num_proposal=num_proposal,
        sampling='vote_fps',
        proposal_size=proposal_size,
        seed_feat_dim=seed_feat_dim,
        key=k_param,
    )

    end_points = {'seed_xyz': xyz}
    end_points = module(xyz, features, end_points)
    jax.block_until_ready(end_points['objectness_scores'])

    box_dim = 3 + num_heading_bin * 2 + num_size_cluster * 4
    assert end_points['aggregated_vote_features'].shape == (B, num_proposal, proposal_size)
    assert end_points['detr_features'].shape == (B, num_proposal, proposal_size)
    assert end_points['objectness_scores'].shape == (B, num_proposal, 2)
    assert end_points['sem_cls_scores'].shape == (B, num_proposal, num_class)
    assert end_points['pred_boxes_raw'].shape == (B, num_proposal, box_dim)
    assert bool(jnp.all(jnp.isfinite(end_points['aggregated_vote_features'])))
    assert bool(jnp.all(jnp.isfinite(end_points['detr_features'])))
    assert bool(jnp.all(jnp.isfinite(end_points['objectness_scores'])))
    assert bool(jnp.all(jnp.isfinite(end_points['pred_boxes_raw'])))

    print("KERNEL_OK")
</pallas_src>

<mosaic_0001>
module attributes {stable_mosaic.version = 11 : i64} {
  func.func @fused_proposal_kernel(%arg0: i32, %arg1: memref<1x512x256xbf16, #tpu.memory_space<vmem>>, %arg2: memref<1x512x3xf32, #tpu.memory_space<vmem>>, %arg3: memref<256x128xbf16, #tpu.memory_space<vmem>>, %arg4: memref<3x128xf32, #tpu.memory_space<vmem>>, %arg5: memref<1x128xf32, #tpu.memory_space<vmem>>, %arg6: memref<128x128xbf16, #tpu.memory_space<vmem>>, %arg7: memref<1x128xf32, #tpu.memory_space<vmem>>, %arg8: memref<128x128xbf16, #tpu.memory_space<vmem>>, %arg9: memref<1x128xf32, #tpu.memory_space<vmem>>, %arg10: memref<128x128xbf16, #tpu.memory_space<vmem>>, %arg11: memref<1x128xf32, #tpu.memory_space<vmem>>, %arg12: memref<128x128xbf16, #tpu.memory_space<vmem>>, %arg13: memref<1x128xf32, #tpu.memory_space<vmem>>, %arg14: memref<128x128xbf16, #tpu.memory_space<vmem>>, %arg15: memref<1x128xf32, #tpu.memory_space<vmem>>, %arg16: memref<1x32x128xf32, #tpu.memory_space<vmem>>, %arg17: memref<1x32x128xf32, #tpu.memory_space<vmem>>, %arg18: memref<1x32x128xf32, #tpu.memory_space<vmem>>) attributes {dimension_semantics = [#tpu.dimension_semantics<parallel>], iteration_bounds = array<i64: 2>, scalar_prefetch = 0 : i64, scratch_operands = 0 : i64, tpu.core_type = #tpu.core_type<tc>, window_params = [{transform_indices = @transform_0, window_bounds = array<i64: 1, 512, 256>}, {transform_indices = @transform_1, window_bounds = array<i64: 1, 512, 3>}, {pipeline_mode = #tpu.pipeline_mode<synchronous>, transform_indices = @transform_2, window_bounds = array<i64: 256, 128>}, {pipeline_mode = #tpu.pipeline_mode<synchronous>, transform_indices = @transform_3, window_bounds = array<i64: 3, 128>}, {pipeline_mode = #tpu.pipeline_mode<synchronous>, transform_indices = @transform_4, window_bounds = array<i64: 1, 128>}, {pipeline_mode = #tpu.pipeline_mode<synchronous>, transform_indices = @transform_5, window_bounds = array<i64: 128, 128>}, {pipeline_mode = #tpu.pipeline_mode<synchronous>, transform_indices = @transform_6, window_bounds = array<i64: 1, 128>}, {pipeline_mode = #tpu.pipeline_mode<synchronous>, transform_indices = @transform_7, window_bounds = array<i64: 128, 128>}, {pipeline_mode = #tpu.pipeline_mode<synchronous>, transform_indices = @transform_8, window_bounds = array<i64: 1, 128>}, {pipeline_mode = #tpu.pipeline_mode<synchronous>, transform_indices = @transform_9, window_bounds = array<i64: 128, 128>}, {pipeline_mode = #tpu.pipeline_mode<synchronous>, transform_indices = @transform_10, window_bounds = array<i64: 1, 128>}, {pipeline_mode = #tpu.pipeline_mode<synchronous>, transform_indices = @transform_11, window_bounds = array<i64: 128, 128>}, {pipeline_mode = #tpu.pipeline_mode<synchronous>, transform_indices = @transform_12, window_bounds = array<i64: 1, 128>}, {pipeline_mode = #tpu.pipeline_mode<synchronous>, transform_indices = @transform_13, window_bounds = array<i64: 128, 128>}, {pipeline_mode = #tpu.pipeline_mode<synchronous>, transform_indices = @transform_14, window_bounds = array<i64: 1, 128>}, {transform_indices = @transform_15, window_bounds = array<i64: 1, 32, 128>}, {transform_indices = @transform_16, window_bounds = array<i64: 1, 32, 128>}, {transform_indices = @transform_17, window_bounds = array<i64: 1, 32, 128>}]} {
    %c0 = arith.constant 0 : index
    %c0_0 = arith.constant 0 : index
    %c0_1 = arith.constant 0 : index
    %0 = vector.load %arg1[%c0, %c0_0, %c0_1] : memref<1x512x256xbf16, #tpu.memory_space<vmem>>, vector<1x512x256xbf16>
    %1 = vector.shape_cast %0 : vector<1x512x256xbf16> to vector<512x256xbf16>
    %c0_2 = arith.constant 0 : index
    %c0_3 = arith.constant 0 : index
    %c0_4 = arith.constant 0 : index
    %2 = vector.load %arg2[%c0_2, %c0_3, %c0_4] : memref<1x512x3xf32, #tpu.memory_space<vmem>>, vector<1x512x3xf32>
    %3 = vector.shape_cast %2 : vector<1x512x3xf32> to vector<512x3xf32>
    %c0_5 = arith.constant 0 : index
    %c0_6 = arith.constant 0 : index
    %4 = vector.load %arg3[%c0_5, %c0_6] : memref<256x128xbf16, #tpu.memory_space<vmem>>, vector<256x128xbf16>
    %cst = arith.constant dense<0.000000e+00> : vector<512x128xf32>
    %5 = tpu.matmul %1, %4, %cst {dimension_numbers = #tpu.dot_dimension_numbers<[1], [0], [0], [1], [0, 0, 1, 1], [], []>} : vector<512x256xbf16>, vector<256x128xbf16>, vector<512x128xf32> -> vector<512x128xf32>
    %c0_7 = arith.constant 0 : index
    %c0_8 = arith.constant 0 : index
    %6 = vector.load %arg4[%c0_7, %c0_8] : memref<3x128xf32, #tpu.memory_space<vmem>>, vector<3x128xf32>
    %cst_9 = arith.constant dense<0.000000e+00> : vector<512x128xf32>
    %7 = tpu.matmul %3, %6, %cst_9 {dimension_numbers = #tpu.dot_dimension_numbers<[1], [0], [0], [1], [0, 0, 1, 1], [], []>} : vector<512x3xf32>, vector<3x128xf32>, vector<512x128xf32> -> vector<512x128xf32>
    %8 = arith.addf %5, %7 : vector<512x128xf32>
    %c0_10 = arith.constant 0 : index
    %c0_11 = arith.constant 0 : index
    %9 = vector.load %arg5[%c0_10, %c0_11] : memref<1x128xf32, #tpu.memory_space<vmem>>, vector<1x128xf32>
    %10 = vector.broadcast %9 : vector<1x128xf32> to vector<512x128xf32>
    %11 = arith.addf %8, %10 : vector<512x128xf32>
    %cst_12 = arith.constant 0.000000e+00 : f32
    %12 = vector.broadcast %cst_12 : f32 to vector<512x128xf32>
    %13 = arith.maximumf %11, %12 : vector<512x128xf32>
    %14 = arith.truncf %13 : vector<512x128xf32> to vector<512x128xbf16>
    %c0_13 = arith.constant 0 : index
    %c0_14 = arith.constant 0 : index
    %15 = vector.load %arg6[%c0_13, %c0_14] : memref<128x128xbf16, #tpu.memory_space<vmem>>, vector<128x128xbf16>
    %cst_15 = arith.constant dense<0.000000e+00> : vector<512x128xf32>
    %16 = tpu.matmul %14, %15, %cst_15 {dimension_numbers = #tpu.dot_dimension_numbers<[1], [0], [0], [1], [0, 0, 1, 1], [], []>} : vector<512x128xbf16>, vector<128x128xbf16>, vector<512x128xf32> -> vector<512x128xf32>
    %c0_16 = arith.constant 0 : index
    %c0_17 = arith.constant 0 : index
    %17 = vector.load %arg7[%c0_16, %c0_17] : memref<1x128xf32, #tpu.memory_space<vmem>>, vector<1x128xf32>
    %18 = vector.broadcast %17 : vector<1x128xf32> to vector<512x128xf32>
    %19 = arith.addf %16, %18 : vector<512x128xf32>
    %cst_18 = arith.constant 0.000000e+00 : f32
    %20 = vector.broadcast %cst_18 : f32 to vector<512x128xf32>
    %21 = arith.maximumf %19, %20 : vector<512x128xf32>
    %22 = arith.truncf %21 : vector<512x128xf32> to vector<512x128xbf16>
    %c0_19 = arith.constant 0 : index
    %c0_20 = arith.constant 0 : index
    %23 = vector.load %arg8[%c0_19, %c0_20] : memref<128x128xbf16, #tpu.memory_space<vmem>>, vector<128x128xbf16>
    %cst_21 = arith.constant dense<0.000000e+00> : vector<512x128xf32>
    %24 = tpu.matmul %22, %23, %cst_21 {dimension_numbers = #tpu.dot_dimension_numbers<[1], [0], [0], [1], [0, 0, 1, 1], [], []>} : vector<512x128xbf16>, vector<128x128xbf16>, vector<512x128xf32> -> vector<512x128xf32>
    %c0_22 = arith.constant 0 : index
    %c0_23 = arith.constant 0 : index
    %25 = vector.load %arg9[%c0_22, %c0_23] : memref<1x128xf32, #tpu.memory_space<vmem>>, vector<1x128xf32>
    %26 = vector.broadcast %25 : vector<1x128xf32> to vector<512x128xf32>
    %27 = arith.addf %24, %26 : vector<512x128xf32>
    %cst_24 = arith.constant 0.000000e+00 : f32
    %28 = vector.broadcast %cst_24 : f32 to vector<512x128xf32>
    %29 = arith.maximumf %27, %28 : vector<512x128xf32>
    %30 = vector.extract_strided_slice %29 {offsets = [0, 0], sizes = [32, 128], strides = [1, 1]} : vector<512x128xf32> to vector<32x128xf32>
    %31 = vector.extract_strided_slice %29 {offsets = [32, 0], sizes = [32, 128], strides = [1, 1]} : vector<512x128xf32> to vector<32x128xf32>
    %32 = vector.extract_strided_slice %29 {offsets = [64, 0], sizes = [32, 128], strides = [1, 1]} : vector<512x128xf32> to vector<32x128xf32>
    %33 = vector.extract_strided_slice %29 {offsets = [96, 0], sizes = [32, 128], strides = [1, 1]} : vector<512x128xf32> to vector<32x128xf32>
    %34 = vector.extract_strided_slice %29 {offsets = [128, 0], sizes = [32, 128], strides = [1, 1]} : vector<512x128xf32> to vector<32x128xf32>
    %35 = vector.extract_strided_slice %29 {offsets = [160, 0], sizes = [32, 128], strides = [1, 1]} : vector<512x128xf32> to vector<32x128xf32>
    %36 = vector.extract_strided_slice %29 {offsets = [192, 0], sizes = [32, 128], strides = [1, 1]} : vector<512x128xf32> to vector<32x128xf32>
    %37 = vector.extract_strided_slice %29 {offsets = [224, 0], sizes = [32, 128], strides = [1, 1]} : vector<512x128xf32> to vector<32x128xf32>
    %38 = vector.extract_strided_slice %29 {offsets = [256, 0], sizes = [32, 128], strides = [1, 1]} : vector<512x128xf32> to vector<32x128xf32>
    %39 = vector.extract_strided_slice %29 {offsets = [288, 0], sizes = [32, 128], strides = [1, 1]} : vector<512x128xf32> to vector<32x128xf32>
    %40 = vector.extract_strided_slice %29 {offsets = [320, 0], sizes = [32, 128], strides = [1, 1]} : vector<512x128xf32> to vector<32x128xf32>
    %41 = vector.extract_strided_slice %29 {offsets = [352, 0], sizes = [32, 128], strides = [1, 1]} : vector<512x128xf32> to vector<32x128xf32>
    %42 = vector.extract_strided_slice %29 {offsets = [384, 0], sizes = [32, 128], strides = [1, 1]} : vector<512x128xf32> to vector<32x128xf32>
    %43 = vector.extract_strided_slice %29 {offsets = [416, 0], sizes = [32, 128], strides = [1, 1]} : vector<512x128xf32> to vector<32x128xf32>
    %44 = vector.extract_strided_slice %29 {offsets = [448, 0], sizes = [32, 128], strides = [1, 1]} : vector<512x128xf32> to vector<32x128xf32>
    %45 = vector.extract_strided_slice %29 {offsets = [480, 0], sizes = [32, 128], strides = [1, 1]} : vector<512x128xf32> to vector<32x128xf32>
    %46 = arith.maximumf %30, %31 : vector<32x128xf32>
    %47 = arith.maximumf %32, %33 : vector<32x128xf32>
    %48 = arith.maximumf %34, %35 : vector<32x128xf32>
    %49 = arith.maximumf %36, %37 : vector<32x128xf32>
    %50 = arith.maximumf %38, %39 : vector<32x128xf32>
    %51 = arith.maximumf %40, %41 : vector<32x128xf32>
    %52 = arith.maximumf %42, %43 : vector<32x128xf32>
    %53 = arith.maximumf %44, %45 : vector<32x128xf32>
    %54 = arith.maximumf %46, %47 : vector<32x128xf32>
    %55 = arith.maximumf %48, %49 : vector<32x128xf32>
    %56 = arith.maximumf %50, %51 : vector<32x128xf32>
    %57 = arith.maximumf %52, %53 : vector<32x128xf32>
    %58 = arith.maximumf %54, %55 : vector<32x128xf32>
    %59 = arith.maximumf %56, %57 : vector<32x128xf32>
    %60 = arith.maximumf %58, %59 : vector<32x128xf32>
    %c0_25 = arith.constant 0 : index
    %c0_26 = arith.constant 0 : index
    %c0_27 = arith.constant 0 : index
    %61 = vector.load %arg16[%c0_25, %c0_26, %c0_27] : memref<1x32x128xf32, #tpu.memory_space<vmem>>, vector<1x32x128xf32>
    %62 = vector.shape_cast %61 : vector<1x32x128xf32> to vector<32x128xf32>
    %63 = vector.shape_cast %60 : vector<32x128xf32> to vector<1x32x128xf32>
    tpu.vector_store %arg16[%c0_25, %c0_26, %c0_27], %63 {strides = array<i32>} : memref<1x32x128xf32, #tpu.memory_space<vmem>>, vector<1x32x128xf32>,
    %64 = arith.truncf %60 : vector<32x128xf32> to vector<32x128xbf16>
    %c0_28 = arith.constant 0 : index
    %c0_29 = arith.constant 0 : index
    %65 = vector.load %arg10[%c0_28, %c0_29] : memref<128x128xbf16, #tpu.memory_space<vmem>>, vector<128x128xbf16>
    %cst_30 = arith.constant dense<0.000000e+00> : vector<32x128xf32>
    %66 = tpu.matmul %64, %65, %cst_30 {dimension_numbers = #tpu.dot_dimension_numbers<[1], [0], [0], [1], [0, 0, 1, 1], [], []>} : vector<32x128xbf16>, vector<128x128xbf16>, vector<32x128xf32> -> vector<32x128xf32>
    %c0_31 = arith.constant 0 : index
    %c0_32 = arith.constant 0 : index
    %67 = vector.load %arg11[%c0_31, %c0_32] : memref<1x128xf32, #tpu.memory_space<vmem>>, vector<1x128xf32>
    %68 = vector.broadcast %67 : vector<1x128xf32> to vector<32x128xf32>
    %69 = arith.addf %66, %68 : vector<32x128xf32>
    %cst_33 = arith.constant 0.000000e+00 : f32
    %70 = vector.broadcast %cst_33 : f32 to vector<32x128xf32>
    %71 = arith.maximumf %69, %70 : vector<32x128xf32>
    %72 = arith.truncf %71 : vector<32x128xf32> to vector<32x128xbf16>
    %c0_34 = arith.constant 0 : index
    %c0_35 = arith.constant 0 : index
    %73 = vector.load %arg12[%c0_34, %c0_35] : memref<128x128xbf16, #tpu.memory_space<vmem>>, vector<128x128xbf16>
    %cst_36 = arith.constant dense<0.000000e+00> : vector<32x128xf32>
    %74 = tpu.matmul %72, %73, %cst_36 {dimension_numbers = #tpu.dot_dimension_numbers<[1], [0], [0], [1], [0, 0, 1, 1], [], []>} : vector<32x128xbf16>, vector<128x128xbf16>, vector<32x128xf32> -> vector<32x128xf32>
    %c0_37 = arith.constant 0 : index
    %c0_38 = arith.constant 0 : index
    %75 = vector.load %arg13[%c0_37, %c0_38] : memref<1x128xf32, #tpu.memory_space<vmem>>, vector<1x128xf32>
    %76 = vector.broadcast %75 : vector<1x128xf32> to vector<32x128xf32>
    %77 = arith.addf %74, %76 : vector<32x128xf32>
    %cst_39 = arith.constant 0.000000e+00 : f32
    %78 = vector.broadcast %cst_39 : f32 to vector<32x128xf32>
    %79 = arith.maximumf %77, %78 : vector<32x128xf32>
    %c0_40 = arith.constant 0 : index
    %c0_41 = arith.constant 0 : index
    %c0_42 = arith.constant 0 : index
    %80 = vector.load %arg17[%c0_40, %c0_41, %c0_42] : memref<1x32x128xf32, #tpu.memory_space<vmem>>, vector<1x32x128xf32>
    %81 = vector.shape_cast %80 : vector<1x32x128xf32> to vector<32x128xf32>
    %82 = vector.shape_cast %79 : vector<32x128xf32> to vector<1x32x128xf32>
    tpu.vector_store %arg17[%c0_40, %c0_41, %c0_42], %82 {strides = array<i32>} : memref<1x32x128xf32, #tpu.memory_space<vmem>>, vector<1x32x128xf32>,
    %83 = arith.truncf %79 : vector<32x128xf32> to vector<32x128xbf16>
    %c0_43 = arith.constant 0 : index
    %c0_44 = arith.constant 0 : index
    %84 = vector.load %arg14[%c0_43, %c0_44] : memref<128x128xbf16, #tpu.memory_space<vmem>>, vector<128x128xbf16>
    %cst_45 = arith.constant dense<0.000000e+00> : vector<32x128xf32>
    %85 = tpu.matmul %83, %84, %cst_45 {dimension_numbers = #tpu.dot_dimension_numbers<[1], [0], [0], [1], [0, 0, 1, 1], [], []>} : vector<32x128xbf16>, vector<128x128xbf16>, vector<32x128xf32> -> vector<32x128xf32>
    %c0_46 = arith.constant 0 : index
    %c0_47 = arith.constant 0 : index
    %86 = vector.load %arg15[%c0_46, %c0_47] : memref<1x128xf32, #tpu.memory_space<vmem>>, vector<1x128xf32>
    %87 = vector.broadcast %86 : vector<1x128xf32> to vector<32x128xf32>
    %88 = arith.addf %85, %87 : vector<32x128xf32>
    %c0_48 = arith.constant 0 : index
    %c0_49 = arith.constant 0 : index
    %c0_50 = arith.constant 0 : index
    %89 = vector.load %arg18[%c0_48, %c0_49, %c0_50] : memref<1x32x128xf32, #tpu.memory_space<vmem>>, vector<1x32x128xf32>
    %90 = vector.shape_cast %89 : vector<1x32x128xf32> to vector<32x128xf32>
    %91 = vector.shape_cast %88 : vector<32x128xf32> to vector<1x32x128xf32>
    tpu.vector_store %arg18[%c0_48, %c0_49, %c0_50], %91 {strides = array<i32>} : memref<1x32x128xf32, #tpu.memory_space<vmem>>, vector<1x32x128xf32>,
    return
  }
  func.func @transform_0(%arg0: i32) -> (i32, i32, i32) {
    %c0_i32 = arith.constant 0 : i32
    %c0_i32_0 = arith.constant 0 : i32
    %c0_i32_1 = arith.constant 0 : i32
    return %arg0, %c0_i32, %c0_i32_0 : i32, i32, i32
  }
  func.func @transform_1(%arg0: i32) -> (i32, i32, i32) {
    %c0_i32 = arith.constant 0 : i32
    %c0_i32_0 = arith.constant 0 : i32
    %c0_i32_1 = arith.constant 0 : i32
    return %arg0, %c0_i32, %c0_i32_0 : i32, i32, i32
  }
  func.func @transform_2(%arg0: i32) -> (i32, i32) {
    %c0_i32 = arith.constant 0 : i32
    %c0_i32_0 = arith.constant 0 : i32
    %c0_i32_1 = arith.constant 0 : i32
    return %c0_i32, %c0_i32_0 : i32, i32
  }
  func.func @transform_3(%arg0: i32) -> (i32, i32) {
    %c0_i32 = arith.constant 0 : i32
    %c0_i32_0 = arith.constant 0 : i32
    %c0_i32_1 = arith.constant 0 : i32
    return %c0_i32, %c0_i32_0 : i32, i32
  }
  func.func @transform_4(%arg0: i32) -> (i32, i32) {
    %c0_i32 = arith.constant 0 : i32
    %c0_i32_0 = arith.constant 0 : i32
    %c0_i32_1 = arith.constant 0 : i32
    return %c0_i32, %c0_i32_0 : i32, i32
  }
  func.func @transform_5(%arg0: i32) -> (i32, i32) {
    %c0_i32 = arith.constant 0 : i32
    %c0_i32_0 = arith.constant 0 : i32
    %c0_i32_1 = arith.constant 0 : i32
    return %c0_i32, %c0_i32_0 : i32, i32
  }
  func.func @transform_6(%arg0: i32) -> (i32, i32) {
    %c0_i32 = arith.constant 0 : i32
    %c0_i32_0 = arith.constant 0 : i32
    %c0_i32_1 = arith.constant 0 : i32
    return %c0_i32, %c0_i32_0 : i32, i32
  }
  func.func @transform_7(%arg0: i32) -> (i32, i32) {
    %c0_i32 = arith.constant 0 : i32
    %c0_i32_0 = arith.constant 0 : i32
    %c0_i32_1 = arith.constant 0 : i32
    return %c0_i32, %c0_i32_0 : i32, i32
  }
  func.func @transform_8(%arg0: i32) -> (i32, i32) {
    %c0_i32 = arith.constant 0 : i32
    %c0_i32_0 = arith.constant 0 : i32
    %c0_i32_1 = arith.constant 0 : i32
    return %c0_i32, %c0_i32_0 : i32, i32
  }
  func.func @transform_9(%arg0: i32) -> (i32, i32) {
    %c0_i32 = arith.constant 0 : i32
    %c0_i32_0 = arith.constant 0 : i32
    %c0_i32_1 = arith.constant 0 : i32
    return %c0_i32, %c0_i32_0 : i32, i32
  }
  func.func @transform_10(%arg0: i32) -> (i32, i32) {
    %c0_i32 = arith.constant 0 : i32
    %c0_i32_0 = arith.constant 0 : i32
    %c0_i32_1 = arith.constant 0 : i32
    return %c0_i32, %c0_i32_0 : i32, i32
  }
  func.func @transform_11(%arg0: i32) -> (i32, i32) {
    %c0_i32 = arith.constant 0 : i32
    %c0_i32_0 = arith.constant 0 : i32
    %c0_i32_1 = arith.constant 0 : i32
    return %c0_i32, %c0_i32_0 : i32, i32
  }
  func.func @transform_12(%arg0: i32) -> (i32, i32) {
    %c0_i32 = arith.constant 0 : i32
    %c0_i32_0 = arith.constant 0 : i32
    %c0_i32_1 = arith.constant 0 : i32
    return %c0_i32, %c0_i32_0 : i32, i32
  }
  func.func @transform_13(%arg0: i32) -> (i32, i32) {
    %c0_i32 = arith.constant 0 : i32
    %c0_i32_0 = arith.constant 0 : i32
    %c0_i32_1 = arith.constant 0 : i32
    return %c0_i32, %c0_i32_0 : i32, i32
  }
  func.func @transform_14(%arg0: i32) -> (i32, i32) {
    %c0_i32 = arith.constant 0 : i32
    %c0_i32_0 = arith.constant 0 : i32
    %c0_i32_1 = arith.constant 0 : i32
    return %c0_i32, %c0_i32_0 : i32, i32
  }
  func.func @transform_15(%arg0: i32) -> (i32, i32, i32) {
    %c0_i32 = arith.constant 0 : i32
    %c0_i32_0 = arith.constant 0 : i32
    %c0_i32_1 = arith.constant 0 : i32
    return %arg0, %c0_i32, %c0_i32_0 : i32, i32, i32
  }
  func.func @transform_16(%arg0: i32) -> (i32, i32, i32) {
    %c0_i32 = arith.constant 0 : i32
    %c0_i32_0 = arith.constant 0 : i32
    %c0_i32_1 = arith.constant 0 : i32
    return %arg0, %c0_i32, %c0_i32_0 : i32, i32, i32
  }
  func.func @transform_17(%arg0: i32) -> (i32, i32, i32) {
    %c0_i32 = arith.constant 0 : i32
    %c0_i32_0 = arith.constant 0 : i32
    %c0_i32_1 = arith.constant 0 : i32
    return %arg0, %c0_i32, %c0_i32_0 : i32, i32, i32
  }
}

</mosaic_0001>

<llo_original>
// kernel: tpu_custom_call.1
$region0: #{tpu_custom_call.1}
  #allocation0 [shape = 'u32[]', space=smem, size = 0x4, offset = 0x4, fixed_abs, tag = 'smem constant byte address 0x4 - core index']
  #allocation1 [shape = 'u32[144,128]{1,0:T(1,128)}', space=vmem, size = 0x12000, scoped, tag = 'internal scratch']
  %s0 = inlined_call_operand.vmem [shape: bf16[2,512,256], index: 0, kind: input, shape index: {}]
  %s1 = inlined_call_operand.vmem [shape: f32[2,512,3], index: 1, kind: input, shape index: {}]
  %s2 = inlined_call_operand.hbm [shape: bf16[256,128], index: 2, kind: input, shape index: {}]
  %s3 = inlined_call_operand.vmem [shape: f32[3,128], index: 3, kind: input, shape index: {}]
  %s4 = inlined_call_operand.vmem [shape: f32[1,128], index: 4, kind: input, shape index: {}]
  %s5 = inlined_call_operand.hbm [shape: bf16[128,128], index: 5, kind: input, shape index: {}]
  %s6 = inlined_call_operand.vmem [shape: f32[1,128], index: 6, kind: input, shape index: {}]
  %s7 = inlined_call_operand.hbm [shape: bf16[128,128], index: 7, kind: input, shape index: {}]
  %s8 = inlined_call_operand.vmem [shape: f32[1,128], index: 8, kind: input, shape index: {}]
  %s9 = inlined_call_operand.hbm [shape: bf16[128,128], index: 9, kind: input, shape index: {}]
  %s10 = inlined_call_operand.vmem [shape: f32[1,128], index: 10, kind: input, shape index: {}]
  %s11 = inlined_call_operand.hbm [shape: bf16[128,128], index: 11, kind: input, shape index: {}]
  %s12 = inlined_call_operand.vmem [shape: f32[1,128], index: 12, kind: input, shape index: {}]
  %s13 = inlined_call_operand.hbm [shape: bf16[128,128], index: 13, kind: input, shape index: {}]
  %s14 = inlined_call_operand.vmem [shape: f32[1,128], index: 14, kind: input, shape index: {}]
  %s15 = inlined_call_operand.hbm [shape: f32[2,32,128], index: 15, kind: output, shape index: {0}]
  %s16 = inlined_call_operand.hbm [shape: f32[2,32,128], index: 16, kind: output, shape index: {1}]
  %s17 = inlined_call_operand.hbm [shape: f32[2,32,128], index: 17, kind: output, shape index: {2}]
  %18 = xla_tuple %s15, %s16, %s17
  %s19 = sld [smem:[#allocation0]]
  $region133: #{tpu_custom_call.1} parent=0
    _
  %s21 = ssub.s32 1, %s19
  %s22 = scalar_select 0, %s21, %s19
  $region1: #{tpu_custom_call.1} parent=0
    #allocation2 [shape = 'u8[65536]{0}', space=vmem, size = 0x10000, scoped, tag = 'input window, operand 2, single buffered']
    #allocation3 [shape = 's32[2]{0}', space=sflag, size = 0x8, scoped, tag = 'scoped memory for tpu_custom_call.1']
    #allocation4 [shape = 's32[2]{0}', space=sflag, size = 0x8, scoped, tag = 'scoped memory for tpu_custom_call.1']
    #allocation5 [shape = 'u8[32768]{0}', space=vmem, size = 0x8000, scoped, tag = 'input window, operand 5, single buffered']
    #allocation6 [shape = 's32[1]{0}', space=sflag, size = 0x4, scoped, tag = 'scoped memory for tpu_custom_call.1']
    #allocation7 [shape = 'u8[32768]{0}', space=vmem, size = 0x8000, scoped, tag = 'input window, operand 7, single buffered']
    #allocation8 [shape = 'u8[32768]{0}', space=vmem, size = 0x8000, scoped, tag = 'input window, operand 9, single buffered']
    #allocation9 [shape = 's32[1]{0}', space=sflag, size = 0x4, scoped, tag = 'scoped memory for tpu_custom_call.1']
    #allocation10 [shape = 'u8[32768]{0}', space=vmem, size = 0x8000, scoped, tag = 'input window, operand 11, single buffered']
    #allocation11 [shape = 'u8[32768]{0}', space=vmem, size = 0x8000, scoped, tag = 'input window, operand 13, single buffered']
    #allocation12 [shape = 's32[1]{0}', space=sflag, size = 0x4, scoped, tag = 'scoped memory for tpu_custom_call.1']
    #allocation13 [shape = 'u8[32768]{0}', space=vmem, size = 0x8000, scoped, tag = 'output window, operand 0']
    #allocation14 [shape = 'u8[32768]{0}', space=vmem, size = 0x8000, scoped, tag = 'output window, operand 1']
    #allocation15 [shape = 's32[2]{0}', space=sflag, size = 0x8, scoped, tag = 'scoped memory for tpu_custom_call.1']
    #allocation16 [shape = 'u8[32768]{0}', space=vmem, size = 0x8000, scoped, tag = 'output window, operand 2']
    %23 = vsyncpa [#allocation3], 0
    %24 = vsyncpa [#allocation6], 0
    %25 = vsyncpa [#allocation9], 0
    %26 = vsyncpa [#allocation12], 0
    %27 = vsyncpa [#allocation4], 0
    %s28 = scalar_lea.sflag [#allocation4], 1
    %29 = vsyncpa %s28, 0
    %30 = vsyncpa [#allocation15], 0
    %s31 = scalar_lea.sflag [#allocation15], 1
    %32 = vsyncpa %s31, 0
    loop: start=0, step=1, limit=4
    $region2: #{tpu_custom_call.1} parent=1 // loop_pre_header
      _
    $region3: #{tpu_custom_call.1} parent=1 // loop_header
      %s34 = sphi 0, %s38
      %p35 = scmp.ge.s32.totalorder %s34, 4
      %s44 = sphi 0, %s46
      %s47 = sphi 0, %s44
      %s48 = sphi 0, %s47
      %s64 = sphi 0, %s48
      %s70 = sphi 0, %s72
      %s73 = sphi 0, %s70
      %s74 = sphi 0, %s73
      %s90 = sphi 0, %s74
      %s94 = sphi 0, %s94
      %s96 = sphi 0, %s94
      %s97 = sphi 0, %s96
      %s111 = sphi 0, %s97
      %s115 = sphi 0, %s115
      %s117 = sphi 0, %s115
      %s118 = sphi 0, %s117
      %s132 = sphi 0, %s118
      %s136 = sphi 0, %s136
      %s138 = sphi 0, %s136
      %s139 = sphi 0, %s138
      %s153 = sphi 0, %s139
      %s157 = sphi 0, %s157
      %s159 = sphi 0, %s157
      %s160 = sphi 0, %s159
      %s174 = sphi 0, %s160
      %s178 = sphi 0, %s178
      %s180 = sphi 0, %s178
      %s181 = sphi 0, %s180
      %s195 = sphi 0, %s181
      %s199 = sphi 0, %s199
      %s201 = sphi 0, %s199
      %s202 = sphi 0, %s201
      %s216 = sphi 0, %s202
      %s220 = sphi 0, %s220
      %s222 = sphi 0, %s220
      %s223 = sphi 0, %s222
      %s237 = sphi 0, %s223
      %s241 = sphi 0, %s241
      %s243 = sphi 0, %s241
      %s244 = sphi 0, %s243
      %s258 = sphi 0, %s244
      %s262 = sphi 0, %s262
      %s264 = sphi 0, %s262
      %s265 = sphi 0, %s264
      %s279 = sphi 0, %s265
      %s283 = sphi 0, %s283
      %s285 = sphi 0, %s283
      %s286 = sphi 0, %s285
      %s300 = sphi 0, %s286
      %s304 = sphi 0, %s304
      %s306 = sphi 0, %s304
      %s307 = sphi 0, %s306
      %s321 = sphi 0, %s307
      %s325 = sphi 0, %s325
      %s327 = sphi 0, %s325
      %s328 = sphi 0, %s327
      %s342 = sphi 0, %s328
      %s346 = sphi 0, %s346
      %s348 = sphi 0, %s346
      %s349 = sphi 0, %s348
      %s363 = sphi 0, %s349
      %s369 = sphi 0, %s371
      %s372 = sphi 0, %s369
      %s373 = sphi 0, %s372
      %s389 = sphi 0, %s373
      %s395 = sphi 0, %s397
      %s398 = sphi 0, %s395
      %s399 = sphi 0, %s398
      %s415 = sphi 0, %s399
      %s421 = sphi 0, %s423
      %s424 = sphi 0, %s421
      %s425 = sphi 0, %s424
      %s441 = sphi 0, %s425
    $region4: #{tpu_custom_call.1} parent=1 // loop_header_branch
      %37 = sbr.rel (%p35) target = $region8
    $region5: #{tpu_custom_call.1} parent=1 // loop_body
      %s39 = ssub.s32 %s34, 1
      %s40 = ssub.s32 %s34, 2
      %s41 = sadd.s32 %s34, 1
      %s42 = ssub.s32 %s34, %s41
      %p43 = scmp.eq.s32.totalorder %s42, 0
      %s45 = sadd.s32 %s44, 1
      %s46 = scalar_select %p43, %s44, %s45
      %p49 = pneg %p43
      %p50 = scmp.eq.s32.totalorder %s34, 1
      %p51 = por %p49, %p50
      %p52 = scmp.ne.s32.totalorder %s44, %s47
      %p53 = scmp.eq.s32.totalorder %s34, 0
      %p54 = por %p52, %p53
      %p55 = scmp.ne.s32.totalorder %s44, %s47
      %p56 = scmp.eq.s32.totalorder %s39, 1
      %p57 = por %p55, %p56
      %p58 = scmp.ne.s32.totalorder %s47, %s48
      %p59 = scmp.eq.s32.totalorder %s39, 0
      %p60 = por %p58, %p59
      %p61 = scmp.ne.s32.totalorder %s47, %s48
      %p62 = scmp.eq.s32.totalorder %s40, 1
      %p63 = por %p61, %p62
      %p65 = scmp.ne.s32.totalorder %s48, %s64
      %p66 = scmp.eq.s32.totalorder %s40, 0
      %p67 = por %p65, %p66
      %s68 = ssub.s32 %s34, %s41
      %p69 = scmp.eq.s32.totalorder %s68, 0
      %s71 = sadd.s32 %s70, 1
      %s72 = scalar_select %p69, %s70, %s71
      %p75 = pneg %p69
      %p76 = scmp.eq.s32.totalorder %s34, 1
      %p77 = por %p75, %p76
      %p78 = scmp.ne.s32.totalorder %s70, %s73
      %p79 = scmp.eq.s32.totalorder %s34, 0
      %p80 = por %p78, %p79
      %p81 = scmp.ne.s32.totalorder %s70, %s73
      %p82 = scmp.eq.s32.totalorder %s39, 1
      %p83 = por %p81, %p82
      %p84 = scmp.ne.s32.totalorder %s73, %s74
      %p85 = scmp.eq.s32.totalorder %s39, 0
      %p86 = por %p84, %p85
      %p87 = scmp.ne.s32.totalorder %s73, %s74
      %p88 = scmp.eq.s32.totalorder %s40, 1
      %p89 = por %p87, %p88
      %p91 = scmp.ne.s32.totalorder %s74, %s90
      %p92 = scmp.eq.s32.totalorder %s40, 0
      %p93 = por %p91, %p92
      %s95 = sadd.s32 %s94, 1
      %p98 = scmp.eq.s32.totalorder %s34, 1
      %p99 = scmp.ne.s32.totalorder %s94, %s96
      %p100 = scmp.eq.s32.totalorder %s34, 0
      %p101 = por %p99, %p100
      %p102 = scmp.ne.s32.totalorder %s94, %s96
      %p103 = scmp.eq.s32.totalorder %s39, 1
      %p104 = por %p102, %p103
      %p105 = scmp.ne.s32.totalorder %s96, %s97
      %p106 = scmp.eq.s32.totalorder %s39, 0
      %p107 = por %p105, %p106
      %p108 = scmp.ne.s32.totalorder %s96, %s97
      %p109 = scmp.eq.s32.totalorder %s40, 1
      %p110 = por %p108, %p109
      %p112 = scmp.ne.s32.totalorder %s97, %s111
      %p113 = scmp.eq.s32.totalorder %s40, 0
      %p114 = por %p112, %p113
      %s116 = sadd.s32 %s115, 1
      %p119 = scmp.eq.s32.totalorder %s34, 1
      %p120 = scmp.ne.s32.totalorder %s115, %s117
      %p121 = scmp.eq.s32.totalorder %s34, 0
      %p122 = por %p120, %p121
      %p123 = scmp.ne.s32.totalorder %s115, %s117
      %p124 = scmp.eq.s32.totalorder %s39, 1
      %p125 = por %p123, %p124
      %p126 = scmp.ne.s32.totalorder %s117, %s118
      %p127 = scmp.eq.s32.totalorder %s39, 0
      %p128 = por %p126, %p127
      %p129 = scmp.ne.s32.totalorder %s117, %s118
      %p130 = scmp.eq.s32.totalorder %s40, 1
      %p131 = por %p129, %p130
      %p133 = scmp.ne.s32.totalorder %s118, %s132
      %p134 = scmp.eq.s32.totalorder %s40, 0
      %p135 = por %p133, %p134
      %s137 = sadd.s32 %s136, 1
      %p140 = scmp.eq.s32.totalorder %s34, 1
      %p141 = scmp.ne.s32.totalorder %s136, %s138
      %p142 = scmp.eq.s32.totalorder %s34, 0
      %p143 = por %p141, %p142
      %p144 = scmp.ne.s32.totalorder %s136, %s138
      %p145 = scmp.eq.s32.totalorder %s39, 1
      %p146 = por %p144, %p145
      %p147 = scmp.ne.s32.totalorder %s138, %s139
      %p148 = scmp.eq.s32.totalorder %s39, 0
      %p149 = por %p147, %p148
      %p150 = scmp.ne.s32.totalorder %s138, %s139
      %p151 = scmp.eq.s32.totalorder %s40, 1
      %p152 = por %p150, %p151
      %p154 = scmp.ne.s32.totalorder %s139, %s153
      %p155 = scmp.eq.s32.totalorder %s40, 0
      %p156 = por %p154, %p155
      %s158 = sadd.s32 %s157, 1
      %p161 = scmp.eq.s32.totalorder %s34, 1
      %p162 = scmp.ne.s32.totalorder %s157, %s159
      %p163 = scmp.eq.s32.totalorder %s34, 0
      %p164 = por %p162, %p163
      %p165 = scmp.ne.s32.totalorder %s157, %s159
      %p166 = scmp.eq.s32.totalorder %s39, 1
      %p167 = por %p165, %p166
      %p168 = scmp.ne.s32.totalorder %s159, %s160
      %p169 = scmp.eq.s32.totalorder %s39, 0
      %p170 = por %p168, %p169
      %p171 = scmp.ne.s32.totalorder %s159, %s160
      %p172 = scmp.eq.s32.totalorder %s40, 1
      %p173 = por %p171, %p172
      %p175 = scmp.ne.s32.totalorder %s160, %s174
      %p176 = scmp.eq.s32.totalorder %s40, 0
      %p177 = por %p175, %p176
      %s179 = sadd.s32 %s178, 1
      %p182 = scmp.eq.s32.totalorder %s34, 1
      %p183 = scmp.ne.s32.totalorder %s178, %s180
      %p184 = scmp.eq.s32.totalorder %s34, 0
      %p185 = por %p183, %p184
      %p186 = scmp.ne.s32.totalorder %s178, %s180
      %p187 = scmp.eq.s32.totalorder %s39, 1
      %p188 = por %p186, %p187
      %p189 = scmp.ne.s32.totalorder %s180, %s181
      %p190 = scmp.eq.s32.totalorder %s39, 0
      %p191 = por %p189, %p190
      %p192 = scmp.ne.s32.totalorder %s180, %s181
      %p193 = scmp.eq.s32.totalorder %s40, 1
      %p194 = por %p192, %p193
      %p196 = scmp.ne.s32.totalorder %s181, %s195
      %p197 = scmp.eq.s32.totalorder %s40, 0
      %p198 = por %p196, %p197
      %s200 = sadd.s32 %s199, 1
      %p203 = scmp.eq.s32.totalorder %s34, 1
      %p204 = scmp.ne.s32.totalorder %s199, %s201
      %p205 = scmp.eq.s32.totalorder %s34, 0
      %p206 = por %p204, %p205
      %p207 = scmp.ne.s32.totalorder %s199, %s201
      %p208 = scmp.eq.s32.totalorder %s39, 1
      %p209 = por %p207, %p208
      %p210 = scmp.ne.s32.totalorder %s201, %s202
      %p211 = scmp.eq.s32.totalorder %s39, 0
      %p212 = por %p210, %p211
      %p213 = scmp.ne.s32.totalorder %s201, %s202
      %p214 = scmp.eq.s32.totalorder %s40, 1
      %p215 = por %p213, %p214
      %p217 = scmp.ne.s32.totalorder %s202, %s216
      %p218 = scmp.eq.s32.totalorder %s40, 0
      %p219 = por %p217, %p218
      %s221 = sadd.s32 %s220, 1
      %p224 = scmp.eq.s32.totalorder %s34, 1
      %p225 = scmp.ne.s32.totalorder %s220, %s222
      %p226 = scmp.eq.s32.totalorder %s34, 0
      %p227 = por %p225, %p226
      %p228 = scmp.ne.s32.totalorder %s220, %s222
      %p229 = scmp.eq.s32.totalorder %s39, 1
      %p230 = por %p228, %p229
      %p231 = scmp.ne.s32.totalorder %s222, %s223
      %p232 = scmp.eq.s32.totalorder %s39, 0
      %p233 = por %p231, %p232
      %p234 = scmp.ne.s32.totalorder %s222, %s223
      %p235 = scmp.eq.s32.totalorder %s40, 1
      %p236 = por %p234, %p235
      %p238 = scmp.ne.s32.totalorder %s223, %s237
      %p239 = scmp.eq.s32.totalorder %s40, 0
      %p240 = por %p238, %p239
      %s242 = sadd.s32 %s241, 1
      %p245 = scmp.eq.s32.totalorder %s34, 1
      %p246 = scmp.ne.s32.totalorder %s241, %s243
      %p247 = scmp.eq.s32.totalorder %s34, 0
      %p248 = por %p246, %p247
      %p249 = scmp.ne.s32.totalorder %s241, %s243
      %p250 = scmp.eq.s32.totalorder %s39, 1
      %p251 = por %p249, %p250
      %p252 = scmp.ne.s32.totalorder %s243, %s244
      %p253 = scmp.eq.s32.totalorder %s39, 0
      %p254 = por %p252, %p253
      %p255 = scmp.ne.s32.totalorder %s243, %s244
      %p256 = scmp.eq.s32.totalorder %s40, 1
      %p257 = por %p255, %p256
      %p259 = scmp.ne.s32.totalorder %s244, %s258
      %p260 = scmp.eq.s32.totalorder %s40, 0
      %p261 = por %p259, %p260
      %s263 = sadd.s32 %s262, 1
      %p266 = scmp.eq.s32.totalorder %s34, 1
      %p267 = scmp.ne.s32.totalorder %s262, %s264
      %p268 = scmp.eq.s32.totalorder %s34, 0
      %p269 = por %p267, %p268
      %p270 = scmp.ne.s32.totalorder %s262, %s264
      %p271 = scmp.eq.s32.totalorder %s39, 1
      %p272 = por %p270, %p271
      %p273 = scmp.ne.s32.totalorder %s264, %s265
      %p274 = scmp.eq.s32.totalorder %s39, 0
      %p275 = por %p273, %p274
      %p276 = scmp.ne.s32.totalorder %s264, %s265
      %p277 = scmp.eq.s32.totalorder %s40, 1
      %p278 = por %p276, %p277
      %p280 = scmp.ne.s32.totalorder %s265, %s279
      %p281 = scmp.eq.s32.totalorder %s40, 0
      %p282 = por %p280, %p281
      %s284 = sadd.s32 %s283, 1
      %p287 = scmp.eq.s32.totalorder %s34, 1
      %p288 = scmp.ne.s32.totalorder %s283, %s285
      %p289 = scmp.eq.s32.totalorder %s34, 0
      %p290 = por %p288, %p289
      %p291 = scmp.ne.s32.totalorder %s283, %s285
      %p292 = scmp.eq.s32.totalorder %s39, 1
      %p293 = por %p291, %p292
      %p294 = scmp.ne.s32.totalorder %s285, %s286
      %p295 = scmp.eq.s32.totalorder %s39, 0
      %p296 = por %p294, %p295
      %p297 = scmp.ne.s32.totalorder %s285, %s286
      %p298 = scmp.eq.s32.totalorder %s40, 1
      %p299 = por %p297, %p298
      %p301 = scmp.ne.s32.totalorder %s286, %s300
      %p302 = scmp.eq.s32.totalorder %s40, 0
      %p303 = por %p301, %p302
      %s305 = sadd.s32 %s304, 1
      %p308 = scmp.eq.s32.totalorder %s34, 1
      %p309 = scmp.ne.s32.totalorder %s304, %s306
      %p310 = scmp.eq.s32.totalorder %s34, 0
      %p311 = por %p309, %p310
      %p312 = scmp.ne.s32.totalorder %s304, %s306
      %p313 = scmp.eq.s32.totalorder %s39, 1
      %p314 = por %p312, %p313
      %p315 = scmp.ne.s32.totalorder %s306, %s307
      %p316 = scmp.eq.s32.totalorder %s39, 0
      %p317 = por %p315, %p316
      %p318 = scmp.ne.s32.totalorder %s306, %s307
      %p319 = scmp.eq.s32.totalorder %s40, 1
      %p320 = por %p318, %p319
      %p322 = scmp.ne.s32.totalorder %s307, %s321
      %p323 = scmp.eq.s32.totalorder %s40, 0
      %p324 = por %p322, %p323
      %s326 = sadd.s32 %s325, 1
      %p329 = scmp.eq.s32.totalorder %s34, 1
      %p330 = scmp.ne.s32.totalorder %s325, %s327
      %p331 = scmp.eq.s32.totalorder %s34, 0
      %p332 = por %p330, %p331
      %p333 = scmp.ne.s32.totalorder %s325, %s327
      %p334 = scmp.eq.s32.totalorder %s39, 1
      %p335 = por %p333, %p334
      %p336 = scmp.ne.s32.totalorder %s327, %s328
      %p337 = scmp.eq.s32.totalorder %s39, 0
      %p338 = por %p336, %p337
      %p339 = scmp.ne.s32.totalorder %s327, %s328
      %p340 = scmp.eq.s32.totalorder %s40, 1
      %p341 = por %p339, %p340
      %p343 = scmp.ne.s32.totalorder %s328, %s342
      %p344 = scmp.eq.s32.totalorder %s40, 0
      %p345 = por %p343, %p344
      %s347 = sadd.s32 %s346, 1
      %p350 = scmp.eq.s32.totalorder %s34, 1
      %p351 = scmp.ne.s32.totalorder %s346, %s348
      %p352 = scmp.eq.s32.totalorder %s34, 0
      %p353 = por %p351, %p352
      %p354 = scmp.ne.s32.totalorder %s346, %s348
      %p355 = scmp.eq.s32.totalorder %s39, 1
      %p356 = por %p354, %p355
      %p357 = scmp.ne.s32.totalorder %s348, %s349
      %p358 = scmp.eq.s32.totalorder %s39, 0
      %p359 = por %p357, %p358
      %p360 = scmp.ne.s32.totalorder %s348, %s349
      %p361 = scmp.eq.s32.totalorder %s40, 1
      %p362 = por %p360, %p361
      %p364 = scmp.ne.s32.totalorder %s349, %s363
      %p365 = scmp.eq.s32.totalorder %s40, 0
      %p366 = por %p364, %p365
      %s367 = ssub.s32 %s34, %s41
      %p368 = scmp.eq.s32.totalorder %s367, 0
      %s370 = sadd.s32 %s369, 1
      %s371 = scalar_select %p368, %s369, %s370
      %p374 = pneg %p368
      %p375 = scmp.eq.s32.totalorder %s34, 1
      %p376 = por %p374, %p375
      %p377 = scmp.ne.s32.totalorder %s369, %s372
      %p378 = scmp.eq.s32.totalorder %s34, 0
      %p379 = por %p377, %p378
      %p380 = scmp.ne.s32.totalorder %s369, %s372
      %p381 = scmp.eq.s32.totalorder %s39, 1
      %p382 = por %p380, %p381
      %p383 = scmp.ne.s32.totalorder %s372, %s373
      %p384 = scmp.eq.s32.totalorder %s39, 0
      %p385 = por %p383, %p384
      %p386 = scmp.ne.s32.totalorder %s372, %s373
      %p387 = scmp.eq.s32.totalorder %s40, 1
      %p388 = por %p386, %p387
      %p390 = scmp.ne.s32.totalorder %s373, %s389
      %p391 = scmp.eq.s32.totalorder %s40, 0
      %p392 = por %p390, %p391
      %s393 = ssub.s32 %s34, %s41
      %p394 = scmp.eq.s32.totalorder %s393, 0
      %s396 = sadd.s32 %s395, 1
      %s397 = scalar_select %p394, %s395, %s396
      %p400 = pneg %p394
      %p401 = scmp.eq.s32.totalorder %s34, 1
      %p402 = por %p400, %p401
      %p403 = scmp.ne.s32.totalorder %s395, %s398
      %p404 = scmp.eq.s32.totalorder %s34, 0
      %p405 = por %p403, %p404
      %p406 = scmp.ne.s32.totalorder %s395, %s398
      %p407 = scmp.eq.s32.totalorder %s39, 1
      %p408 = por %p406, %p407
      %p409 = scmp.ne.s32.totalorder %s398, %s399
      %p410 = scmp.eq.s32.totalorder %s39, 0
      %p411 = por %p409, %p410
      %p412 = scmp.ne.s32.totalorder %s398, %s399
      %p413 = scmp.eq.s32.totalorder %s40, 1
      %p414 = por %p412, %p413
      %p416 = scmp.ne.s32.totalorder %s399, %s415
      %p417 = scmp.eq.s32.totalorder %s40, 0
      %p418 = por %p416, %p417
      %s419 = ssub.s32 %s34, %s41
      %p420 = scmp.eq.s32.totalorder %s419, 0
      %s422 = sadd.s32 %s421, 1
      %s423 = scalar_select %p420, %s421, %s422
      %p426 = pneg %p420
      %p427 = scmp.eq.s32.totalorder %s34, 1
      %p428 = por %p426, %p427
      %p429 = scmp.ne.s32.totalorder %s421, %s424
      %p430 = scmp.eq.s32.totalorder %s34, 0
      %p431 = por %p429, %p430
      %p432 = scmp.ne.s32.totalorder %s421, %s424
      %p433 = scmp.eq.s32.totalorder %s39, 1
      %p434 = por %p432, %p433
      %p435 = scmp.ne.s32.totalorder %s424, %s425
      %p436 = scmp.eq.s32.totalorder %s39, 0
      %p437 = por %p435, %p436
      %p438 = scmp.ne.s32.totalorder %s424, %s425
      %p439 = scmp.eq.s32.totalorder %s40, 1
      %p440 = por %p438, %p439
      %p442 = scmp.ne.s32.totalorder %s425, %s441
      %p443 = scmp.eq.s32.totalorder %s40, 0
      %p444 = por %p442, %p443
      %p445 = scmp.le.s32.totalorder 1, %s34
      %p446 = scmp.lt.s32.totalorder %s34, 3
      %p447 = pnand %p445, %p446
      %p448 = pneg %p447
      // Predicated region
      $region9: #{tpu_custom_call.1} parent=5 // pred_check
        _
      $region10: #{tpu_custom_call.1} parent=5 // pred_check_branch
        %450 = sbr.rel (%p447) target = $region12
      $region11: #{tpu_custom_call.1} parent=5 // pred_region
        %s451 = ssub.s32 %s34, 1
        // Predicated region
        $region13: #{tpu_custom_call.1} parent=11 // pred_check
          %p452 = pneg %p107
        $region14: #{tpu_custom_call.1} parent=11 // pred_check_branch
          %454 = sbr.rel (%p452) target = $region16
        $region15: #{tpu_custom_call.1} parent=11 // pred_region
          %s456 = ssub.s32 2048, 2048
          %457 = vsyncadd [#allocation3], %s456
          %s458 = sshll.u32 [#allocation2], 4
          %s459 = int_to_ptr.vmem [resolvable:$true] %s458
          %464 = dma.hbm_to_vmem [thread:$0]  %s2, 2048, %s459, [#allocation3], 64, 64, 4
        $region16: #{tpu_custom_call.1} parent=11 // pred_fallthru
          _
        // Predicated region
        $region17: #{tpu_custom_call.1} parent=11 // pred_check
          %p465 = pneg %p128
        $region18: #{tpu_custom_call.1} parent=11 // pred_check_branch
          %467 = sbr.rel (%p465) target = $region20
        $region19: #{tpu_custom_call.1} parent=11 // pred_region
          _
        $region20: #{tpu_custom_call.1} parent=11 // pred_fallthru
          _
        // Predicated region
        $region21: #{tpu_custom_call.1} parent=11 // pred_check
          %p468 = pneg %p149
        $region22: #{tpu_custom_call.1} parent=11 // pred_check_branch
          %470 = sbr.rel (%p468) target = $region24
        $region23: #{tpu_custom_call.1} parent=11 // pred_region
          _
        $region24: #{tpu_custom_call.1} parent=11 // pred_fallthru
          _
        // Predicated region
        $region25: #{tpu_custom_call.1} parent=11 // pred_check
          %p471 = pneg %p170
        $region26: #{tpu_custom_call.1} parent=11 // pred_check_branch
          %473 = sbr.rel (%p471) target = $region28
        $region27: #{tpu_custom_call.1} parent=11 // pred_region
          %s475 = ssub.s32 1024, 1024
          %476 = vsyncadd [#allocation6], %s475
          %s477 = sshll.u32 [#allocation5], 4
          %s478 = int_to_ptr.vmem [resolvable:$true] %s477
          %483 = dma.hbm_to_vmem [thread:$0]  %s5, 1024, %s478, [#allocation6], 64, 64, 4
        $region28: #{tpu_custom_call.1} parent=11 // pred_fallthru
          _
        // Predicated region
        $region29: #{tpu_custom_call.1} parent=11 // pred_check
          %p484 = pneg %p191
        $region30: #{tpu_custom_call.1} parent=11 // pred_check_branch
          %486 = sbr.rel (%p484) target = $region32
        $region31: #{tpu_custom_call.1} parent=11 // pred_region
          _
        $region32: #{tpu_custom_call.1} parent=11 // pred_fallthru
          _
        // Predicated region
        $region33: #{tpu_custom_call.1} parent=11 // pred_check
          %p487 = pneg %p212
        $region34: #{tpu_custom_call.1} parent=11 // pred_check_branch
          %489 = sbr.rel (%p487) target = $region36
        $region35: #{tpu_custom_call.1} parent=11 // pred_region
          %s491 = ssub.s32 1024, 1024
          %492 = vsyncadd [#allocation6], %s491
          %s493 = sshll.u32 [#allocation7], 4
          %s494 = int_to_ptr.vmem [resolvable:$true] %s493
          %499 = dma.hbm_to_vmem [thread:$0]  %s7, 1024, %s494, [#allocation6], 64, 64, 4
        $region36: #{tpu_custom_call.1} parent=11 // pred_fallthru
          _
        // Predicated region
        $region37: #{tpu_custom_call.1} parent=11 // pred_check
          %p500 = pneg %p233
        $region38: #{tpu_custom_call.1} parent=11 // pred_check_branch
          %502 = sbr.rel (%p500) target = $region40
        $region39: #{tpu_custom_call.1} parent=11 // pred_region
          _
        $region40: #{tpu_custom_call.1} parent=11 // pred_fallthru
          _
        // Predicated region
        $region41: #{tpu_custom_call.1} parent=11 // pred_check
          %p503 = pneg %p254
        $region42: #{tpu_custom_call.1} parent=11 // pred_check_branch
          %505 = sbr.rel (%p503) target = $region44
        $region43: #{tpu_custom_call.1} parent=11 // pred_region
          %s507 = ssub.s32 1024, 1024
          %508 = vsyncadd [#allocation9], %s507
          %s509 = sshll.u32 [#allocation8], 4
          %s510 = int_to_ptr.vmem [resolvable:$true] %s509
          %515 = dma.hbm_to_vmem [thread:$0]  %s9, 1024, %s510, [#allocation9], 64, 64, 4
        $region44: #{tpu_custom_call.1} parent=11 // pred_fallthru
          _
        // Predicated region
        $region45: #{tpu_custom_call.1} parent=11 // pred_check
          %p516 = pneg %p275
        $region46: #{tpu_custom_call.1} parent=11 // pred_check_branch
          %518 = sbr.rel (%p516) target = $region48
        $region47: #{tpu_custom_call.1} parent=11 // pred_region
          _
        $region48: #{tpu_custom_call.1} parent=11 // pred_fallthru
          _
        // Predicated region
        $region49: #{tpu_custom_call.1} parent=11 // pred_check
          %p519 = pneg %p296
        $region50: #{tpu_custom_call.1} parent=11 // pred_check_branch
          %521 = sbr.rel (%p519) target = $region52
        $region51: #{tpu_custom_call.1} parent=11 // pred_region
          %s523 = ssub.s32 1024, 1024
          %524 = vsyncadd [#allocation9], %s523
          %s525 = sshll.u32 [#allocation10], 4
          %s526 = int_to_ptr.vmem [resolvable:$true] %s525
          %531 = dma.hbm_to_vmem [thread:$0]  %s11, 1024, %s526, [#allocation9], 64, 64, 4
        $region52: #{tpu_custom_call.1} parent=11 // pred_fallthru
          _
        // Predicated region
        $region53: #{tpu_custom_call.1} parent=11 // pred_check
          %p532 = pneg %p317
        $region54: #{tpu_custom_call.1} parent=11 // pred_check_branch
          %534 = sbr.rel (%p532) target = $region56
        $region55: #{tpu_custom_call.1} parent=11 // pred_region
          _
        $region56: #{tpu_custom_call.1} parent=11 // pred_fallthru
          _
        // Predicated region
        $region57: #{tpu_custom_call.1} parent=11 // pred_check
          %p535 = pneg %p338
        $region58: #{tpu_custom_call.1} parent=11 // pred_check_branch
          %537 = sbr.rel (%p535) target = $region60
        $region59: #{tpu_custom_call.1} parent=11 // pred_region
          %s539 = ssub.s32 1024, 1024
          %540 = vsyncadd [#allocation12], %s539
          %s541 = sshll.u32 [#allocation11], 4
          %s542 = int_to_ptr.vmem [resolvable:$true] %s541
          %547 = dma.hbm_to_vmem [thread:$0]  %s13, 1024, %s542, [#allocation12], 64, 64, 4
        $region60: #{tpu_custom_call.1} parent=11 // pred_fallthru
          _
        // Predicated region
        $region61: #{tpu_custom_call.1} parent=11 // pred_check
          %p548 = pneg %p359
        $region62: #{tpu_custom_call.1} parent=11 // pred_check_branch
          %550 = sbr.rel (%p548) target = $region64
        $region63: #{tpu_custom_call.1} parent=11 // pred_region
          _
        $region64: #{tpu_custom_call.1} parent=11 // pred_fallthru
          _
      $region12: #{tpu_custom_call.1} parent=5 // pred_fallthru
        _
      %p551 = scmp.lt.s32.totalorder %s34, 2
      // Predicated region
      $region65: #{tpu_custom_call.1} parent=5 // pred_check
        %p552 = pneg %p551
      $region66: #{tpu_custom_call.1} parent=5 // pred_check_branch
        %554 = sbr.rel (%p552) target = $region68
      $region67: #{tpu_custom_call.1} parent=5 // pred_region
        // Predicated region
        $region69: #{tpu_custom_call.1} parent=67 // pred_check
          %p555 = pneg %p54
        $region70: #{tpu_custom_call.1} parent=67 // pred_check_branch
          %557 = sbr.rel (%p555) target = $region72
        $region71: #{tpu_custom_call.1} parent=67 // pred_region
          %p558 = scmp.lt.s32.totalorder %s34, 1
          %s559 = scalar_select %p558, %s34, 1
          %s560 = smul.addr %s559, 128
          %s561 = smul.addr %s560, 4
          %s562 = scalar_lea.vmem %s0, %s561
        $region72: #{tpu_custom_call.1} parent=67 // pred_fallthru
          _
        // Predicated region
        $region73: #{tpu_custom_call.1} parent=67 // pred_check
          %p563 = pneg %p80
        $region74: #{tpu_custom_call.1} parent=67 // pred_check_branch
          %565 = sbr.rel (%p563) target = $region76
        $region75: #{tpu_custom_call.1} parent=67 // pred_region
          %p566 = scmp.lt.s32.totalorder %s34, 1
          %s567 = scalar_select %p566, %s34, 1
          %s568 = smul.addr %s567, 64
          %s569 = smul.addr %s568, 8
          %s570 = scalar_lea.vmem %s1, %s569
        $region76: #{tpu_custom_call.1} parent=67 // pred_fallthru
          _
      $region68: #{tpu_custom_call.1} parent=5 // pred_fallthru
        _
      %p571 = scmp.le.s32.totalorder 1, %s34
      %p572 = scmp.lt.s32.totalorder %s34, 3
      %p573 = pnand %p571, %p572
      %p574 = pneg %p573
      // Predicated region
      $region77: #{tpu_custom_call.1} parent=5 // pred_check
        _
      $region78: #{tpu_custom_call.1} parent=5 // pred_check_branch
        %576 = sbr.rel (%p573) target = $region80
      $region79: #{tpu_custom_call.1} parent=5 // pred_region
        %s577 = ssub.s32 %s34, 1
        // Predicated region
        $region81: #{tpu_custom_call.1} parent=79 // pred_check
          %p578 = pneg %p107
        $region82: #{tpu_custom_call.1} parent=79 // pred_check_branch
          %580 = sbr.rel (%p578) target = $region84
        $region83: #{tpu_custom_call.1} parent=79 // pred_region
          %581 = dma.done [#allocation3], 2048
        $region84: #{tpu_custom_call.1} parent=79 // pred_fallthru
          _
        // Predicated region
        $region85: #{tpu_custom_call.1} parent=79 // pred_check
          %p582 = pneg %p170
        $region86: #{tpu_custom_call.1} parent=79 // pred_check_branch
          %584 = sbr.rel (%p582) target = $region88
        $region87: #{tpu_custom_call.1} parent=79 // pred_region
          %585 = dma.done [#allocation6], 1024
        $region88: #{tpu_custom_call.1} parent=79 // pred_fallthru
          _
        // Predicated region
        $region89: #{tpu_custom_call.1} parent=79 // pred_check
          %p586 = pneg %p212
        $region90: #{tpu_custom_call.1} parent=79 // pred_check_branch
          %588 = sbr.rel (%p586) target = $region92
        $region91: #{tpu_custom_call.1} parent=79 // pred_region
          %589 = dma.done [#allocation6], 1024
        $region92: #{tpu_custom_call.1} parent=79 // pred_fallthru
          _
        // Predicated region
        $region93: #{tpu_custom_call.1} parent=79 // pred_check
          %p590 = pneg %p254
        $region94: #{tpu_custom_call.1} parent=79 // pred_check_branch
          %592 = sbr.rel (%p590) target = $region96
        $region95: #{tpu_custom_call.1} parent=79 // pred_region
          %593 = dma.done [#allocation9], 1024
        $region96: #{tpu_custom_call.1} parent=79 // pred_fallthru
          _
        // Predicated region
        $region97: #{tpu_custom_call.1} parent=79 // pred_check
          %p594 = pneg %p296
        $region98: #{tpu_custom_call.1} parent=79 // pred_check_branch
          %596 = sbr.rel (%p594) target = $region100
        $region99: #{tpu_custom_call.1} parent=79 // pred_region
          %597 = dma.done [#allocation9], 1024
        $region100: #{tpu_custom_call.1} parent=79 // pred_fallthru
          _
        // Predicated region
        $region101: #{tpu_custom_call.1} parent=79 // pred_check
          %p598 = pneg %p338
        $region102: #{tpu_custom_call.1} parent=79 // pred_check_branch
          %600 = sbr.rel (%p598) target = $region104
        $region103: #{tpu_custom_call.1} parent=79 // pred_region
          %601 = dma.done [#allocation12], 1024
        $region104: #{tpu_custom_call.1} parent=79 // pred_fallthru
          _
        %p602 = scmp.lt.s32.totalorder %s39, 1
        %s603 = scalar_select %p602, %s39, 1
        %s604 = smul.addr %s603, 128
        %s605 = smul.addr %s604, 4
        %s606 = scalar_lea.vmem %s0, %s605
        %p607 = pneg %p60
        %p608 = pneg %p57
        %p609 = scmp.lt.s32.totalorder %s39, 1
        %s610 = scalar_select %p609, %s39, 1
        %s611 = smul.addr %s610, 64
        %s612 = smul.addr %s611, 8
        %s613 = scalar_lea.vmem %s1, %s612
        %p614 = pneg %p86
        %p615 = pneg %p83
        %p616 = pneg %p107
        %p617 = pneg %p104
        %p618 = pneg %p128
        %p619 = pneg %p125
        %p620 = pneg %p149
        %p621 = pneg %p146
        %p622 = pneg %p170
        %p623 = pneg %p167
        %p624 = pneg %p191
        %p625 = pneg %p188
        %p626 = pneg %p212
        %p627 = pneg %p209
        %p628 = pneg %p233
        %p629 = pneg %p230
        %p630 = pneg %p254
        %p631 = pneg %p251
        %p632 = pneg %p275
        %p633 = pneg %p272
        %p634 = pneg %p296
        %p635 = pneg %p293
        %p636 = pneg %p317
        %p637 = pneg %p314
        %p638 = pneg %p338
        %p639 = pneg %p335
        %p640 = pneg %p359
        %p641 = pneg %p356
        %p642 = pneg %p385
        %p643 = pneg %p382
        %s644 = sand.u32 %s372, 1
        %s645 = scalar_lea.sflag [#allocation4], %s644
        %s646 = sand.u32 %s372, 1
        %s647 = smul.addr %s646, 32
        %s648 = scalar_lea.vmem [#allocation13], %s647
        %p649 = pneg %p411
        %p650 = pneg %p408
        %s651 = sand.u32 %s39, 1
        %s652 = scalar_lea.sflag [#allocation15], %s651
        %s653 = sand.u32 %s398, 1
        %s654 = smul.addr %s653, 32
        %s655 = scalar_lea.vmem [#allocation14], %s654
        %p656 = pneg %p437
        %p657 = pneg %p434
        %s658 = sand.u32 %s39, 1
        %s659 = scalar_lea.sflag [#allocation15], %s658
        %s660 = sand.u32 %s424, 1
        %s661 = smul.addr %s660, 32
        %s662 = scalar_lea.vmem [#allocation16], %s661
        %p663 = scmp.lt.s32.totalorder %s39, 1
        %s664 = scalar_select %p663, %s39, 1
        %s665 = smul.addr %s664, 128
        %s666 = smul.addr %s665, 4
        %s667 = scalar_lea.vmem %s0, %s666
        %p668 = scmp.lt.s32.totalorder %s39, 1
        %s669 = scalar_select %p668, %s39, 1
        %s670 = smul.addr %s669, 64
        %s671 = smul.addr %s670, 8
        %s672 = scalar_lea.vmem %s1, %s671
        %v674 = vld [vmem:[%s667] sm:$0xff]
        %v675 = vld [vmem:[%s667 + $0x8] sm:$0xff]
        %v676 = vld [vmem:[%s667 + $0x10] sm:$0xff]
        %v677 = vld [vmem:[%s667 + $0x18] sm:$0xff]
        %v678 = vld [vmem:[%s667 + $0x20] sm:$0xff]
        %v679 = vld [vmem:[%s667 + $0x28] sm:$0xff]
        %v680 = vld [vmem:[%s667 + $0x30] sm:$0xff]
        %v681 = vld [vmem:[%s667 + $0x38] sm:$0xff]
        %v682 = vld [vmem:[%s667 + $0x40] sm:$0xff]
        %v683 = vld [vmem:[%s667 + $0x48] sm:$0xff]
        %v684 = vld [vmem:[%s667 + $0x50] sm:$0xff]
        %v685 = vld [vmem:[%s667 + $0x58] sm:$0xff]
        %v686 = vld [vmem:[%s667 + $0x60] sm:$0xff]
        %v687 = vld [vmem:[%s667 + $0x68] sm:$0xff]
        %v688 = vld [vmem:[%s667 + $0x70] sm:$0xff]
        %v689 = vld [vmem:[%s667 + $0x78] sm:$0xff]
        %v690 = vld [vmem:[%s667 + $0x80] sm:$0xff]
        %v691 = vld [vmem:[%s667 + $0x88] sm:$0xff]
        %v692 = vld [vmem:[%s667 + $0x90] sm:$0xff]
        %v693 = vld [vmem:[%s667 + $0x98] sm:$0xff]
        %v694 = vld [vmem:[%s667 + $0xa0] sm:$0xff]
        %v695 = vld [vmem:[%s667 + $0xa8] sm:$0xff]
        %v696 = vld [vmem:[%s667 + $0xb0] sm:$0xff]
        %v697 = vld [vmem:[%s667 + $0xb8] sm:$0xff]
        %v698 = vld [vmem:[%s667 + $0xc0] sm:$0xff]
        %v699 = vld [vmem:[%s667 + $0xc8] sm:$0xff]
        %v700 = vld [vmem:[%s667 + $0xd0] sm:$0xff]
        %v701 = vld [vmem:[%s667 + $0xd8] sm:$0xff]
        %v702 = vld [vmem:[%s667 + $0xe0] sm:$0xff]
        %v703 = vld [vmem:[%s667 + $0xe8] sm:$0xff]
        %v704 = vld [vmem:[%s667 + $0xf0] sm:$0xff]
        %v705 = vld [vmem:[%s667 + $0xf8] sm:$0xff]
        %v706 = vld [vmem:[%s667 + $0x100] sm:$0xff]
        %v707 = vld [vmem:[%s667 + $0x108] sm:$0xff]
        %v708 = vld [vmem:[%s667 + $0x110] sm:$0xff]
        %v709 = vld [vmem:[%s667 + $0x118] sm:$0xff]
        %v710 = vld [vmem:[%s667 + $0x120] sm:$0xff]
        %v711 = vld [vmem:[%s667 + $0x128] sm:$0xff]
        %v712 = vld [vmem:[%s667 + $0x130] sm:$0xff]
        %v713 = vld [vmem:[%s667 + $0x138] sm:$0xff]
        %v714 = vld [vmem:[%s667 + $0x140] sm:$0xff]
        %v715 = vld [vmem:[%s667 + $0x148] sm:$0xff]
        %v716 = vld [vmem:[%s667 + $0x150] sm:$0xff]
        %v717 = vld [vmem:[%s667 + $0x158] sm:$0xff]
        %v718 = vld [vmem:[%s667 + $0x160] sm:$0xff]
        %v719 = vld [vmem:[%s667 + $0x168] sm:$0xff]
        %v720 = vld [vmem:[%s667 + $0x170] sm:$0xff]
        %v721 = vld [vmem:[%s667 + $0x178] sm:$0xff]
        %v722 = vld [vmem:[%s667 + $0x180] sm:$0xff]
        %v723 = vld [vmem:[%s667 + $0x188] sm:$0xff]
        %v724 = vld [vmem:[%s667 + $0x190] sm:$0xff]
        %v725 = vld [vmem:[%s667 + $0x198] sm:$0xff]
        %v726 = vld [vmem:[%s667 + $0x1a0] sm:$0xff]
        %v727 = vld [vmem:[%s667 + $0x1a8] sm:$0xff]
        %v728 = vld [vmem:[%s667 + $0x1b0] sm:$0xff]
        %v729 = vld [vmem:[%s667 + $0x1b8] sm:$0xff]
        %v730 = vld [vmem:[%s667 + $0x1c0] sm:$0xff]
        %v731 = vld [vmem:[%s667 + $0x1c8] sm:$0xff]
        %v732 = vld [vmem:[%s667 + $0x1d0] sm:$0xff]
        %v733 = vld [vmem:[%s667 + $0x1d8] sm:$0xff]
        %v734 = vld [vmem:[%s667 + $0x1e0] sm:$0xff]
        %v735 = vld [vmem:[%s667 + $0x1e8] sm:$0xff]
        %v736 = vld [vmem:[%s667 + $0x1f0] sm:$0xff]
        %v737 = vld [vmem:[%s667 + $0x1f8] sm:$0xff]
        %v738 = vld [vmem:[%s672] sm:$0xff]
        %v739 = vld [vmem:[%s672 + $0x8] sm:$0xff]
        %v740 = vld [vmem:[%s672 + $0x10] sm:$0xff]
        %v741 = vld [vmem:[%s672 + $0x18] sm:$0xff]
        %v742 = vld [vmem:[%s672 + $0x20] sm:$0xff]
        %v743 = vld [vmem:[%s672 + $0x28] sm:$0xff]
        %v744 = vld [vmem:[%s672 + $0x30] sm:$0xff]
        %v745 = vld [vmem:[%s672 + $0x38] sm:$0xff]
        %v746 = vld [vmem:[%s672 + $0x40] sm:$0xff]
        %v747 = vld [vmem:[%s672 + $0x48] sm:$0xff]
        %v748 = vld [vmem:[%s672 + $0x50] sm:$0xff]
        %v749 = vld [vmem:[%s672 + $0x58] sm:$0xff]
        %v750 = vld [vmem:[%s672 + $0x60] sm:$0xff]
        %v751 = vld [vmem:[%s672 + $0x68] sm:$0xff]
        %v752 = vld [vmem:[%s672 + $0x70] sm:$0xff]
        %v753 = vld [vmem:[%s672 + $0x78] sm:$0xff]
        %v754 = vld [vmem:[%s672 + $0x80] sm:$0xff]
        %v755 = vld [vmem:[%s672 + $0x88] sm:$0xff]
        %v756 = vld [vmem:[%s672 + $0x90] sm:$0xff]
        %v757 = vld [vmem:[%s672 + $0x98] sm:$0xff]
        %v758 = vld [vmem:[%s672 + $0xa0] sm:$0xff]
        %v759 = vld [vmem:[%s672 + $0xa8] sm:$0xff]
        %v760 = vld [vmem:[%s672 + $0xb0] sm:$0xff]
        %v761 = vld [vmem:[%s672 + $0xb8] sm:$0xff]
        %v762 = vld [vmem:[%s672 + $0xc0] sm:$0xff]
        %v763 = vld [vmem:[%s672 + $0xc8] sm:$0xff]
        %v764 = vld [vmem:[%s672 + $0xd0] sm:$0xff]
        %v765 = vld [vmem:[%s672 + $0xd8] sm:$0xff]
        %v766 = vld [vmem:[%s672 + $0xe0] sm:$0xff]
        %v767 = vld [vmem:[%s672 + $0xe8] sm:$0xff]
        %v768 = vld [vmem:[%s672 + $0xf0] sm:$0xff]
        %v769 = vld [vmem:[%s672 + $0xf8] sm:$0xff]
        %v770 = vld [vmem:[%s672 + $0x100] sm:$0xff]
        %v771 = vld [vmem:[%s672 + $0x108] sm:$0xff]
        %v772 = vld [vmem:[%s672 + $0x110] sm:$0xff]
        %v773 = vld [vmem:[%s672 + $0x118] sm:$0xff]
        %v774 = vld [vmem:[%s672 + $0x120] sm:$0xff]
        %v775 = vld [vmem:[%s672 + $0x128] sm:$0xff]
        %v776 = vld [vmem:[%s672 + $0x130] sm:$0xff]
        %v777 = vld [vmem:[%s672 + $0x138] sm:$0xff]
        %v778 = vld [vmem:[%s672 + $0x140] sm:$0xff]
        %v779 = vld [vmem:[%s672 + $0x148] sm:$0xff]
        %v780 = vld [vmem:[%s672 + $0x150] sm:$0xff]
        %v781 = vld [vmem:[%s672 + $0x158] sm:$0xff]
        %v782 = vld [vmem:[%s672 + $0x160] sm:$0xff]
        %v783 = vld [vmem:[%s672 + $0x168] sm:$0xff]
        %v784 = vld [vmem:[%s672 + $0x170] sm:$0xff]
        %v785 = vld [vmem:[%s672 + $0x178] sm:$0xff]
        %v786 = vld [vmem:[%s672 + $0x180] sm:$0xff]
        %v787 = vld [vmem:[%s672 + $0x188] sm:$0xff]
        %v788 = vld [vmem:[%s672 + $0x190] sm:$0xff]
        %v789 = vld [vmem:[%s672 + $0x198] sm:$0xff]
        %v790 = vld [vmem:[%s672 + $0x1a0] sm:$0xff]
        %v791 = vld [vmem:[%s672 + $0x1a8] sm:$0xff]
        %v792 = vld [vmem:[%s672 + $0x1b0] sm:$0xff]
        %v793 = vld [vmem:[%s672 + $0x1b8] sm:$0xff]
        %v794 = vld [vmem:[%s672 + $0x1c0] sm:$0xff]
        %v795 = vld [vmem:[%s672 + $0x1c8] sm:$0xff]
        %v796 = vld [vmem:[%s672 + $0x1d0] sm:$0xff]
        %v797 = vld [vmem:[%s672 + $0x1d8] sm:$0xff]
        %v798 = vld [vmem:[%s672 + $0x1e0] sm:$0xff]
        %v799 = vld [vmem:[%s672 + $0x1e8] sm:$0xff]
        %v800 = vld [vmem:[%s672 + $0x1f0] sm:$0xff]
        %v801 = vld [vmem:[%s672 + $0x1f8] sm:$0xff]
        %v802 = vld [vmem:[#allocation2] sm:$0xf]
        %v803 = vld [vmem:[#allocation2 + $0x4] sm:$0xf]
        %v804 = vld [vmem:[#allocation2 + $0x8] sm:$0xf]
        %v805 = vld [vmem:[#allocation2 + $0xc] sm:$0xf]
        %v806 = vld [vmem:[#allocation2 + $0x10] sm:$0xf]
        %v807 = vld [vmem:[#allocation2 + $0x14] sm:$0xf]
        %v808 = vld [vmem:[#allocation2 + $0x18] sm:$0xf]
        %v809 = vld [vmem:[#allocation2 + $0x1c] sm:$0xf]
        %v810 = vld [vmem:[#allocation2 + $0x20] sm:$0xf]
        %v811 = vld [vmem:[#allocation2 + $0x24] sm:$0xf]
        %v812 = vld [vmem:[#allocation2 + $0x28] sm:$0xf]
        %v813 = vld [vmem:[#allocation2 + $0x2c] sm:$0xf]
        %v814 = vld [vmem:[#allocation2 + $0x30] sm:$0xf]
        %v815 = vld [vmem:[#allocation2 + $0x34] sm:$0xf]
        %v816 = vld [vmem:[#allocation2 + $0x38] sm:$0xf]
        %v817 = vld [vmem:[#allocation2 + $0x3c] sm:$0xf]
        %v818 = vld [vmem:[#allocation2 + $0x40] sm:$0xf]
        %v819 = vld [vmem:[#allocation2 + $0x44] sm:$0xf]
        %v820 = vld [vmem:[#allocation2 + $0x48] sm:$0xf]
        %v821 = vld [vmem:[#allocation2 + $0x4c] sm:$0xf]
        %v822 = vld [vmem:[#allocation2 + $0x50] sm:$0xf]
        %v823 = vld [vmem:[#allocation2 + $0x54] sm:$0xf]
        %v824 = vld [vmem:[#allocation2 + $0x58] sm:$0xf]
        %v825 = vld [vmem:[#allocation2 + $0x5c] sm:$0xf]
        %v826 = vld [vmem:[#allocation2 + $0x60] sm:$0xf]
        %v827 = vld [vmem:[#allocation2 + $0x64] sm:$0xf]
        %v828 = vld [vmem:[#allocation2 + $0x68] sm:$0xf]
        %v829 = vld [vmem:[#allocation2 + $0x6c] sm:$0xf]
        %v830 = vld [vmem:[#allocation2 + $0x70] sm:$0xf]
        %v831 = vld [vmem:[#allocation2 + $0x74] sm:$0xf]
        %v832 = vld [vmem:[#allocation2 + $0x78] sm:$0xf]
        %v833 = vld [vmem:[#allocation2 + $0x7c] sm:$0xf]
        %v834 = vld [vmem:[%s3] sm:$0x7]
        %vm835 = vcmask 23552
        %v837 = vsel %vm835, %v738, 0
        %v840 = vsel %vm835, %v739, 0
        %v843 = vsel %vm835, %v740, 0
        %v846 = vsel %vm835, %v741, 0
        %v849 = vsel %vm835, %v742, 0
        %v852 = vsel %vm835, %v743, 0
        %v855 = vsel %vm835, %v744, 0
        %v858 = vsel %vm835, %v745, 0
        %v861 = vsel %vm835, %v746, 0
        %v864 = vsel %vm835, %v747, 0
        %v867 = vsel %vm835, %v748, 0
        %v870 = vsel %vm835, %v749, 0
        %v873 = vsel %vm835, %v750, 0
        %v876 = vsel %vm835, %v751, 0
        %v879 = vsel %vm835, %v752, 0
        %v882 = vsel %vm835, %v753, 0
        %v885 = vsel %vm835, %v754, 0
        %v888 = vsel %vm835, %v755, 0
        %v891 = vsel %vm835, %v756, 0
        %v894 = vsel %vm835, %v757, 0
        %v897 = vsel %vm835, %v758, 0
        %v900 = vsel %vm835, %v759, 0
        %v903 = vsel %vm835, %v760, 0
        %v906 = vsel %vm835, %v761, 0
        %v909 = vsel %vm835, %v762, 0
        %v912 = vsel %vm835, %v763, 0
        %v915 = vsel %vm835, %v764, 0
        %v918 = vsel %vm835, %v765, 0
        %v921 = vsel %vm835, %v766, 0
        %v924 = vsel %vm835, %v767, 0
        %v927 = vsel %vm835, %v768, 0
        %v930 = vsel %vm835, %v769, 0
        %v933 = vsel %vm835, %v770, 0
        %v936 = vsel %vm835, %v771, 0
        %v939 = vsel %vm835, %v772, 0
        %v942 = vsel %vm835, %v773, 0
        %v945 = vsel %vm835, %v774, 0
        %v948 = vsel %vm835, %v775, 0
        %v951 = vsel %vm835, %v776, 0
        %v954 = vsel %vm835, %v777, 0
        %v957 = vsel %vm835, %v778, 0
        %v960 = vsel %vm835, %v779, 0
        %v963 = vsel %vm835, %v780, 0
        %v966 = vsel %vm835, %v781, 0
        %v969 = vsel %vm835, %v782, 0
        %v972 = vsel %vm835, %v783, 0
        %v975 = vsel %vm835, %v784, 0
        %v978 = vsel %vm835, %v785, 0
        %v981 = vsel %vm835, %v786, 0
        %v984 = vsel %vm835, %v787, 0
        %v987 = vsel %vm835, %v788, 0
        %v990 = vsel %vm835, %v789, 0
        %v993 = vsel %vm835, %v790, 0
        %v996 = vsel %vm835, %v791, 0
        %v999 = vsel %vm835, %v792, 0
        %v1002 = vsel %vm835, %v793, 0
        %v1005 = vsel %vm835, %v794, 0
        %v1008 = vsel %vm835, %v795, 0
        %v1011 = vsel %vm835, %v796, 0
        %v1014 = vsel %vm835, %v797, 0
        %v1017 = vsel %vm835, %v798, 0
        %v1020 = vsel %vm835, %v799, 0
        %v1023 = vsel %vm835, %v800, 0
        %v1026 = vsel %vm835, %v801, 0
        %vm1028 = vcmask 1042432
        %v1030 = vsel %vm1028, %v834, 0
        %1032 = vmatprep.subr.mxu0 0.0
        %1033 = vmatpush1.msra.mxu0 0.0
        %1034 = vmatprep.subr.mxu0 0.0
        %1035 = vmatpush1.msra.mxu0 0.0
        %1036 = vmatprep.subr.mxu0 0.0
        %1037 = vmatpush1.msra.mxu0 0.0
        %1038 = vmatprep.subr.mxu0 0.0
        %1039 = vmatpush1.msra.mxu0 0.0
        %1040 = vmatprep.subr.mxu0 0.0
        %1041 = vmatpush1.msra.mxu0 0.0
        %1042 = vmatprep.subr.mxu0 0.0
        %1043 = vmatpush1.msra.mxu0 0.0
        %1044 = vmatprep.subr.mxu0 0.0
        %1045 = vmatpush1.msra.mxu0 0.0
        %1046 = vmatprep.subr.mxu0 0.0
        %1047 = vmatpush1.msra.mxu0 0.0
        %1048 = vmatprep.subr.mxu0 0.0
        %1049 = vmatpush1.msra.mxu0 0.0
        %1050 = vmatprep.subr.mxu0 0.0
        %1051 = vmatpush1.msra.mxu0 0.0
        %1052 = vmatprep.subr.mxu0 0.0
        %1053 = vmatpush1.msra.mxu0 0.0
        %1054 = vmatprep.subr.mxu0 0.0
        %1055 = vmatpush1.msra.mxu0 0.0
        %1056 = vmatprep.subr.mxu0 0.0
        %1057 = vmatpush1.msra.mxu0 0.0
        %1058 = vmatprep.subr.mxu0 0.0
        %1059 = vmatpush1.msra.mxu0 0.0
        %1060 = vmatprep.subr.mxu0 0.0
        %1061 = vmatpush1.msra.mxu0 0.0
        %1062 = vmatprep.subr.mxu0 0.0
        %1063 = vmatpush1.msra.mxu0 %v1030
        %1064 = vmatprep.subr.mxu0 0.0
        %1065 = vmatpush2.msra.mxu0 0.0
        %1066 = vmatprep.subr.mxu0 0.0
        %1067 = vmatpush2.msra.mxu0 0.0
        %1068 = vmatprep.subr.mxu0 0.0
        %1069 = vmatpush2.msra.mxu0 0.0
        %1070 = vmatprep.subr.mxu0 0.0
        %1071 = vmatpush2.msra.mxu0 0.0
        %1072 = vmatprep.subr.mxu0 0.0
        %1073 = vmatpush2.msra.mxu0 0.0
        %1074 = vmatprep.subr.mxu0 0.0
        %1075 = vmatpush2.msra.mxu0 0.0
        %1076 = vmatprep.subr.mxu0 0.0
        %1077 = vmatpush2.msra.mxu0 0.0
        %1078 = vmatprep.subr.mxu0 0.0
        %1079 = vmatpush2.msra.mxu0 0.0
        %1080 = vmatprep.subr.mxu0 0.0
        %1081 = vmatpush2.msra.mxu0 0.0
        %1082 = vmatprep.subr.mxu0 0.0
        %1083 = vmatpush2.msra.mxu0 0.0
        %1084 = vmatprep.subr.mxu0 0.0
        %1085 = vmatpush2.msra.mxu0 0.0
        %1086 = vmatprep.subr.mxu0 0.0
        %1087 = vmatpush2.msra.mxu0 0.0
        %1088 = vmatprep.subr.mxu0 0.0
        %1089 = vmatpush2.msra.mxu0 0.0
        %1090 = vmatprep.subr.mxu0 0.0
        %1091 = vmatpush2.msra.mxu0 0.0
        %1092 = vmatprep.subr.mxu0 0.0
        %1093 = vmatpush2.msra.mxu0 0.0
        %1094 = vmatprep.subr.mxu0 0.0
        %1095 = vmatpush2.msra.mxu0 0.0
        %1096 = vmatprep.mubr.f32.mxu0 0.0
        %1097 = vmatmul.mubr.f32.gmra.mxu0 %v837
        %v1098 = vpop.f32.mrf.mxu0
        %v1099 = vadd.f32 0.0, %v1098
        %v1100 = vpop.f32.mrf.mxu0
        %1101 = vmatprep.mubr.f32.mxu0 0.0
        %1102 = vmatmul.mubr.f32.gmra.mxu0 %v840
        %v1103 = vpop.f32.mrf.mxu0
        %v1104 = vadd.f32 0.0, %v1103
        %v1105 = vpop.f32.mrf.mxu0
        %1106 = vmatprep.mubr.f32.mxu0 0.0
        %1107 = vmatmul.mubr.f32.gmra.mxu0 %v843
        %v1108 = vpop.f32.mrf.mxu0
        %v1109 = vadd.f32 0.0, %v1108
        %v1110 = vpop.f32.mrf.mxu0
        %1111 = vmatprep.mubr.f32.mxu0 0.0
        %1112 = vmatmul.mubr.f32.gmra.mxu0 %v846
        %v1113 = vpop.f32.mrf.mxu0
        %v1114 = vadd.f32 0.0, %v1113
        %v1115 = vpop.f32.mrf.mxu0
        %1116 = vmatprep.mubr.f32.mxu0 0.0
        %1117 = vmatmul.mubr.f32.gmra.mxu0 %v849
        %v1118 = vpop.f32.mrf.mxu0
        %v1119 = vadd.f32 0.0, %v1118
        %v1120 = vpop.f32.mrf.mxu0
        %1121 = vmatprep.mubr.f32.mxu0 0.0
        %1122 = vmatmul.mubr.f32.gmra.mxu0 %v852
        %v1123 = vpop.f32.mrf.mxu0
        %v1124 = vadd.f32 0.0, %v1123
        %v1125 = vpop.f32.mrf.mxu0
        %1126 = vmatprep.mubr.f32.mxu0 0.0
        %1127 = vmatmul.mubr.f32.gmra.mxu0 %v855
        %v1128 = vpop.f32.mrf.mxu0
        %v1129 = vadd.f32 0.0, %v1128
        %v1130 = vpop.f32.mrf.mxu0
        %1131 = vmatprep.mubr.f32.mxu0 0.0
        %1132 = vmatmul.mubr.f32.gmra.mxu0 %v858
        %v1133 = vpop.f32.mrf.mxu0
        %v1134 = vadd.f32 0.0, %v1133
        %v1135 = vpop.f32.mrf.mxu0
        %1136 = vmatprep.mubr.f32.mxu0 0.0
        %1137 = vmatmul.mubr.f32.gmra.mxu0 %v861
        %v1138 = vpop.f32.mrf.mxu0
        %v1139 = vadd.f32 0.0, %v1138
        %v1140 = vpop.f32.mrf.mxu0
        %1141 = vmatprep.mubr.f32.mxu0 0.0
        %1142 = vmatmul.mubr.f32.gmra.mxu0 %v864
        %v1143 = vpop.f32.mrf.mxu0
        %v1144 = vadd.f32 0.0, %v1143
        %v1145 = vpop.f32.mrf.mxu0
        %1146 = vmatprep.mubr.f32.mxu0 0.0
        %1147 = vmatmul.mubr.f32.gmra.mxu0 %v867
        %v1148 = vpop.f32.mrf.mxu0
        %v1149 = vadd.f32 0.0, %v1148
        %v1150 = vpop.f32.mrf.mxu0
        %1151 = vmatprep.mubr.f32.mxu0 0.0
        %1152 = vmatmul.mubr.f32.gmra.mxu0 %v870
        %v1153 = vpop.f32.mrf.mxu0
        %v1154 = vadd.f32 0.0, %v1153
        %v1155 = vpop.f32.mrf.mxu0
        %1156 = vmatprep.mubr.f32.mxu0 0.0
        %1157 = vmatmul.mubr.f32.gmra.mxu0 %v873
        %v1158 = vpop.f32.mrf.mxu0
        %v1159 = vadd.f32 0.0, %v1158
        %v1160 = vpop.f32.mrf.mxu0
        %1161 = vmatprep.mubr.f32.mxu0 0.0
        %1162 = vmatmul.mubr.f32.gmra.mxu0 %v876
        %v1163 = vpop.f32.mrf.mxu0
        %v1164 = vadd.f32 0.0, %v1163
        %v1165 = vpop.f32.mrf.mxu0
        %1166 = vmatprep.mubr.f32.mxu0 0.0
        %1167 = vmatmul.mubr.f32.gmra.mxu0 %v879
        %v1168 = vpop.f32.mrf.mxu0
        %v1169 = vadd.f32 0.0, %v1168
        %v1170 = vpop.f32.mrf.mxu0
        %1171 = vmatprep.mubr.f32.mxu0 0.0
        %1172 = vmatmul.mubr.f32.gmra.mxu0 %v882
        %v1173 = vpop.f32.mrf.mxu0
        %v1174 = vadd.f32 0.0, %v1173
        %v1175 = vpop.f32.mrf.mxu0
        %1176 = vmatprep.mubr.f32.mxu0 0.0
        %1177 = vmatmul.mubr.f32.gmra.mxu0 %v885
        %v1178 = vpop.f32.mrf.mxu0
        %v1179 = vadd.f32 0.0, %v1178
        %v1180 = vpop.f32.mrf.mxu0
        %1181 = vmatprep.mubr.f32.mxu0 0.0
        %1182 = vmatmul.mubr.f32.gmra.mxu0 %v888
        %v1183 = vpop.f32.mrf.mxu0
        %v1184 = vadd.f32 0.0, %v1183
        %v1185 = vpop.f32.mrf.mxu0
        %1186 = vmatprep.mubr.f32.mxu0 0.0
        %1187 = vmatmul.mubr.f32.gmra.mxu0 %v891
        %v1188 = vpop.f32.mrf.mxu0
        %v1189 = vadd.f32 0.0, %v1188
        %v1190 = vpop.f32.mrf.mxu0
        %1191 = vmatprep.mubr.f32.mxu0 0.0
        %1192 = vmatmul.mubr.f32.gmra.mxu0 %v894
        %v1193 = vpop.f32.mrf.mxu0
        %v1194 = vadd.f32 0.0, %v1193
        %v1195 = vpop.f32.mrf.mxu0
        %1196 = vmatprep.mubr.f32.mxu0 0.0
        %1197 = vmatmul.mubr.f32.gmra.mxu0 %v897
        %v1198 = vpop.f32.mrf.mxu0
        %v1199 = vadd.f32 0.0, %v1198
        %v1200 = vpop.f32.mrf.mxu0
        %1201 = vmatprep.mubr.f32.mxu0 0.0
        %1202 = vmatmul.mubr.f32.gmra.mxu0 %v900
        %v1203 = vpop.f32.mrf.mxu0
        %v1204 = vadd.f32 0.0, %v1203
        %v1205 = vpop.f32.mrf.mxu0
        %1206 = vmatprep.mubr.f32.mxu0 0.0
        %1207 = vmatmul.mubr.f32.gmra.mxu0 %v903
        %v1208 = vpop.f32.mrf.mxu0
        %v1209 = vadd.f32 0.0, %v1208
        %v1210 = vpop.f32.mrf.mxu0
        %1211 = vmatprep.mubr.f32.mxu0 0.0
        %1212 = vmatmul.mubr.f32.gmra.mxu0 %v906
        %v1213 = vpop.f32.mrf.mxu0
        %v1214 = vadd.f32 0.0, %v1213
        %v1215 = vpop.f32.mrf.mxu0
        %1216 = vmatprep.mubr.f32.mxu0 0.0
        %1217 = vmatmul.mubr.f32.gmra.mxu0 %v909
        %v1218 = vpop.f32.mrf.mxu0
        %v1219 = vadd.f32 0.0, %v1218
        %v1220 = vpop.f32.mrf.mxu0
        %1221 = vmatprep.mubr.f32.mxu0 0.0
        %1222 = vmatmul.mubr.f32.gmra.mxu0 %v912
        %v1223 = vpop.f32.mrf.mxu0
        %v1224 = vadd.f32 0.0, %v1223
        %v1225 = vpop.f32.mrf.mxu0
        %1226 = vmatprep.mubr.f32.mxu0 0.0
        %1227 = vmatmul.mubr.f32.gmra.mxu0 %v915
        %v1228 = vpop.f32.mrf.mxu0
        %v1229 = vadd.f32 0.0, %v1228
        %v1230 = vpop.f32.mrf.mxu0
        %1231 = vmatprep.mubr.f32.mxu0 0.0
        %1232 = vmatmul.mubr.f32.gmra.mxu0 %v918
        %v1233 = vpop.f32.mrf.mxu0
        %v1234 = vadd.f32 0.0, %v1233
        %v1235 = vpop.f32.mrf.mxu0
        %1236 = vmatprep.mubr.f32.mxu0 0.0
        %1237 = vmatmul.mubr.f32.gmra.mxu0 %v921
        %v1238 = vpop.f32.mrf.mxu0
        %v1239 = vadd.f32 0.0, %v1238
        %v1240 = vpop.f32.mrf.mxu0
        %1241 = vmatprep.mubr.f32.mxu0 0.0
        %1242 = vmatmul.mubr.f32.gmra.mxu0 %v924
        %v1243 = vpop.f32.mrf.mxu0
        %v1244 = vadd.f32 0.0, %v1243
        %v1245 = vpop.f32.mrf.mxu0
        %1246 = vmatprep.mubr.f32.mxu0 0.0
        %1247 = vmatmul.mubr.f32.gmra.mxu0 %v927
        %v1248 = vpop.f32.mrf.mxu0
        %v1249 = vadd.f32 0.0, %v1248
        %v1250 = vpop.f32.mrf.mxu0
        %1251 = vmatprep.mubr.f32.mxu0 0.0
        %1252 = vmatmul.mubr.f32.gmra.mxu0 %v930
        %v1253 = vpop.f32.mrf.mxu0
        %v1254 = vadd.f32 0.0, %v1253
        %v1255 = vpop.f32.mrf.mxu0
        %1256 = vmatprep.mubr.f32.mxu0 0.0
        %1257 = vmatmul.mubr.f32.gmra.mxu0 %v933
        %v1258 = vpop.f32.mrf.mxu0
        %v1259 = vadd.f32 0.0, %v1258
        %v1260 = vpop.f32.mrf.mxu0
        %1261 = vmatprep.mubr.f32.mxu0 0.0
        %1262 = vmatmul.mubr.f32.gmra.mxu0 %v936
        %v1263 = vpop.f32.mrf.mxu0
        %v1264 = vadd.f32 0.0, %v1263
        %v1265 = vpop.f32.mrf.mxu0
        %1266 = vmatprep.mubr.f32.mxu0 0.0
        %1267 = vmatmul.mubr.f32.gmra.mxu0 %v939
        %v1268 = vpop.f32.mrf.mxu0
        %v1269 = vadd.f32 0.0, %v1268
        %v1270 = vpop.f32.mrf.mxu0
        %1271 = vmatprep.mubr.f32.mxu0 0.0
        %1272 = vmatmul.mubr.f32.gmra.mxu0 %v942
        %v1273 = vpop.f32.mrf.mxu0
        %v1274 = vadd.f32 0.0, %v1273
        %v1275 = vpop.f32.mrf.mxu0
        %1276 = vmatprep.mubr.f32.mxu0 0.0
        %1277 = vmatmul.mubr.f32.gmra.mxu0 %v945
        %v1278 = vpop.f32.mrf.mxu0
        %v1279 = vadd.f32 0.0, %v1278
        %v1280 = vpop.f32.mrf.mxu0
        %1281 = vmatprep.mubr.f32.mxu0 0.0
        %1282 = vmatmul.mubr.f32.gmra.mxu0 %v948
        %v1283 = vpop.f32.mrf.mxu0
        %v1284 = vadd.f32 0.0, %v1283
        %v1285 = vpop.f32.mrf.mxu0
        %1286 = vmatprep.mubr.f32.mxu0 0.0
        %1287 = vmatmul.mubr.f32.gmra.mxu0 %v951
        %v1288 = vpop.f32.mrf.mxu0
        %v1289 = vadd.f32 0.0, %v1288
        %v1290 = vpop.f32.mrf.mxu0
        %1291 = vmatprep.mubr.f32.mxu0 0.0
        %1292 = vmatmul.mubr.f32.gmra.mxu0 %v954
        %v1293 = vpop.f32.mrf.mxu0
        %v1294 = vadd.f32 0.0, %v1293
        %v1295 = vpop.f32.mrf.mxu0
        %1296 = vmatprep.mubr.f32.mxu0 0.0
        %1297 = vmatmul.mubr.f32.gmra.mxu0 %v957
        %v1298 = vpop.f32.mrf.mxu0
        %v1299 = vadd.f32 0.0, %v1298
        %v1300 = vpop.f32.mrf.mxu0
        %1301 = vmatprep.mubr.f32.mxu0 0.0
        %1302 = vmatmul.mubr.f32.gmra.mxu0 %v960
        %v1303 = vpop.f32.mrf.mxu0
        %v1304 = vadd.f32 0.0, %v1303
        %v1305 = vpop.f32.mrf.mxu0
        %1306 = vmatprep.mubr.f32.mxu0 0.0
        %1307 = vmatmul.mubr.f32.gmra.mxu0 %v963
        %v1308 = vpop.f32.mrf.mxu0
        %v1309 = vadd.f32 0.0, %v1308
        %v1310 = vpop.f32.mrf.mxu0
        %1311 = vmatprep.mubr.f32.mxu0 0.0
        %1312 = vmatmul.mubr.f32.gmra.mxu0 %v966
        %v1313 = vpop.f32.mrf.mxu0
        %v1314 = vadd.f32 0.0, %v1313
        %v1315 = vpop.f32.mrf.mxu0
        %1316 = vmatprep.mubr.f32.mxu0 0.0
        %1317 = vmatmul.mubr.f32.gmra.mxu0 %v969
        %v1318 = vpop.f32.mrf.mxu0
        %v1319 = vadd.f32 0.0, %v1318
        %v1320 = vpop.f32.mrf.mxu0
        %1321 = vmatprep.mubr.f32.mxu0 0.0
        %1322 = vmatmul.mubr.f32.gmra.mxu0 %v972
        %v1323 = vpop.f32.mrf.mxu0
        %v1324 = vadd.f32 0.0, %v1323
        %v1325 = vpop.f32.mrf.mxu0
        %1326 = vmatprep.mubr.f32.mxu0 0.0
        %1327 = vmatmul.mubr.f32.gmra.mxu0 %v975
        %v1328 = vpop.f32.mrf.mxu0
        %v1329 = vadd.f32 0.0, %v1328
        %v1330 = vpop.f32.mrf.mxu0
        %1331 = vmatprep.mubr.f32.mxu0 0.0
        %1332 = vmatmul.mubr.f32.gmra.mxu0 %v978
        %v1333 = vpop.f32.mrf.mxu0
        %v1334 = vadd.f32 0.0, %v1333
        %v1335 = vpop.f32.mrf.mxu0
        %1336 = vmatprep.mubr.f32.mxu0 0.0
        %1337 = vmatmul.mubr.f32.gmra.mxu0 %v981
        %v1338 = vpop.f32.mrf.mxu0
        %v1339 = vadd.f32 0.0, %v1338
        %v1340 = vpop.f32.mrf.mxu0
        %1341 = vmatprep.mubr.f32.mxu0 0.0
        %1342 = vmatmul.mubr.f32.gmra.mxu0 %v984
        %v1343 = vpop.f32.mrf.mxu0
        %v1344 = vadd.f32 0.0, %v1343
        %v1345 = vpop.f32.mrf.mxu0
        %1346 = vmatprep.mubr.f32.mxu0 0.0
        %1347 = vmatmul.mubr.f32.gmra.mxu0 %v987
        %v1348 = vpop.f32.mrf.mxu0
        %v1349 = vadd.f32 0.0, %v1348
        %v1350 = vpop.f32.mrf.mxu0
        %1351 = vmatprep.mubr.f32.mxu0 0.0
        %1352 = vmatmul.mubr.f32.gmra.mxu0 %v990
        %v1353 = vpop.f32.mrf.mxu0
        %v1354 = vadd.f32 0.0, %v1353
        %v1355 = vpop.f32.mrf.mxu0
        %1356 = vmatprep.mubr.f32.mxu0 0.0
        %1357 = vmatmul.mubr.f32.gmra.mxu0 %v993
        %v1358 = vpop.f32.mrf.mxu0
        %v1359 = vadd.f32 0.0, %v1358
        %v1360 = vpop.f32.mrf.mxu0
        %1361 = vmatprep.mubr.f32.mxu0 0.0
        %1362 = vmatmul.mubr.f32.gmra.mxu0 %v996
        %v1363 = vpop.f32.mrf.mxu0
        %v1364 = vadd.f32 0.0, %v1363
        %v1365 = vpop.f32.mrf.mxu0
        %1366 = vmatprep.mubr.f32.mxu0 0.0
        %1367 = vmatmul.mubr.f32.gmra.mxu0 %v999
        %v1368 = vpop.f32.mrf.mxu0
        %v1369 = vadd.f32 0.0, %v1368
        %v1370 = vpop.f32.mrf.mxu0
        %1371 = vmatprep.mubr.f32.mxu0 0.0
        %1372 = vmatmul.mubr.f32.gmra.mxu0 %v1002
        %v1373 = vpop.f32.mrf.mxu0
        %v1374 = vadd.f32 0.0, %v1373
        %v1375 = vpop.f32.mrf.mxu0
        %1376 = vmatprep.mubr.f32.mxu0 0.0
        %1377 = vmatmul.mubr.f32.gmra.mxu0 %v1005
        %v1378 = vpop.f32.mrf.mxu0
        %v1379 = vadd.f32 0.0, %v1378
        %v1380 = vpop.f32.mrf.mxu0
        %1381 = vmatprep.mubr.f32.mxu0 0.0
        %1382 = vmatmul.mubr.f32.gmra.mxu0 %v1008
        %v1383 = vpop.f32.mrf.mxu0
        %v1384 = vadd.f32 0.0, %v1383
        %v1385 = vpop.f32.mrf.mxu0
        %1386 = vmatprep.mubr.f32.mxu0 0.0
        %1387 = vmatmul.mubr.f32.gmra.mxu0 %v1011
        %v1388 = vpop.f32.mrf.mxu0
        %v1389 = vadd.f32 0.0, %v1388
        %v1390 = vpop.f32.mrf.mxu0
        %1391 = vmatprep.mubr.f32.mxu0 0.0
        %1392 = vmatmul.mubr.f32.gmra.mxu0 %v1014
        %v1393 = vpop.f32.mrf.mxu0
        %v1394 = vadd.f32 0.0, %v1393
        %v1395 = vpop.f32.mrf.mxu0
        %1396 = vmatprep.mubr.f32.mxu0 0.0
        %1397 = vmatmul.mubr.f32.gmra.mxu0 %v1017
        %v1398 = vpop.f32.mrf.mxu0
        %v1399 = vadd.f32 0.0, %v1398
        %v1400 = vpop.f32.mrf.mxu0
        %1401 = vmatprep.mubr.f32.mxu0 0.0
        %1402 = vmatmul.mubr.f32.gmra.mxu0 %v1020
        %v1403 = vpop.f32.mrf.mxu0
        %v1404 = vadd.f32 0.0, %v1403
        %v1405 = vpop.f32.mrf.mxu0
        %1406 = vmatprep.mubr.f32.mxu0 0.0
        %1407 = vmatmul.mubr.f32.gmra.mxu0 %v1023
        %v1408 = vpop.f32.mrf.mxu0
        %v1409 = vadd.f32 0.0, %v1408
        %v1410 = vpop.f32.mrf.mxu0
        %1411 = vmatprep.mubr.f32.mxu0 0.0
        %1412 = vmatmul.mubr.f32.gmra.mxu0 %v1026
        %v1413 = vpop.f32.mrf.mxu0
        %v1414 = vadd.f32 0.0, %v1413
        %v1415 = vpop.f32.mrf.mxu0
        %1416 = vdwg.mxu0
        %v1481 = vunpack.c.l.b16 %v674
        %v1482 = vunpack.c.h.b16 %v674
        %v1483 = vunpack.c.l.b16 %v675
        %v1484 = vunpack.c.h.b16 %v675
        %v1485 = vunpack.c.l.b16 %v676
        %v1486 = vunpack.c.h.b16 %v676
        %v1487 = vunpack.c.l.b16 %v677
        %v1488 = vunpack.c.h.b16 %v677
        %v1489 = vunpack.c.l.b16 %v678
        %v1490 = vunpack.c.h.b16 %v678
        %v1491 = vunpack.c.l.b16 %v679
        %v1492 = vunpack.c.h.b16 %v679
        %v1493 = vunpack.c.l.b16 %v680
        %v1494 = vunpack.c.h.b16 %v680
        %v1495 = vunpack.c.l.b16 %v681
        %v1496 = vunpack.c.h.b16 %v681
        %v1497 = vunpack.c.l.b16 %v682
        %v1498 = vunpack.c.h.b16 %v682
        %v1499 = vunpack.c.l.b16 %v683
        %v1500 = vunpack.c.h.b16 %v683
        %v1501 = vunpack.c.l.b16 %v684
        %v1502 = vunpack.c.h.b16 %v684
        %v1503 = vunpack.c.l.b16 %v685
        %v1504 = vunpack.c.h.b16 %v685
        %v1505 = vunpack.c.l.b16 %v686
        %v1506 = vunpack.c.h.b16 %v686
        %v1507 = vunpack.c.l.b16 %v687
        %v1508 = vunpack.c.h.b16 %v687
        %v1509 = vunpack.c.l.b16 %v688
        %v1510 = vunpack.c.h.b16 %v688
        %v1511 = vunpack.c.l.b16 %v689
        %v1512 = vunpack.c.h.b16 %v689
        %v1513 = vunpack.c.l.b16 %v690
        %v1514 = vunpack.c.h.b16 %v690
        %v1515 = vunpack.c.l.b16 %v691
        %v1516 = vunpack.c.h.b16 %v691
        %v1517 = vunpack.c.l.b16 %v692
        %v1518 = vunpack.c.h.b16 %v692
        %v1519 = vunpack.c.l.b16 %v693
        %v1520 = vunpack.c.h.b16 %v693
        %v1521 = vunpack.c.l.b16 %v694
        %v1522 = vunpack.c.h.b16 %v694
        %v1523 = vunpack.c.l.b16 %v695
        %v1524 = vunpack.c.h.b16 %v695
        %v1525 = vunpack.c.l.b16 %v696
        %v1526 = vunpack.c.h.b16 %v696
        %v1527 = vunpack.c.l.b16 %v697
        %v1528 = vunpack.c.h.b16 %v697
        %v1529 = vunpack.c.l.b16 %v698
        %v1530 = vunpack.c.h.b16 %v698
        %v1531 = vunpack.c.l.b16 %v699
        %v1532 = vunpack.c.h.b16 %v699
        %v1533 = vunpack.c.l.b16 %v700
        %v1534 = vunpack.c.h.b16 %v700
        %v1535 = vunpack.c.l.b16 %v701
        %v1536 = vunpack.c.h.b16 %v701
        %v1537 = vunpack.c.l.b16 %v702
        %v1538 = vunpack.c.h.b16 %v702
        %v1539 = vunpack.c.l.b16 %v703
        %v1540 = vunpack.c.h.b16 %v703
        %v1541 = vunpack.c.l.b16 %v704
        %v1542 = vunpack.c.h.b16 %v704
        %v1543 = vunpack.c.l.b16 %v705
        %v1544 = vunpack.c.h.b16 %v705
        %v1545 = vunpack.c.l.b16 %v706
        %v1546 = vunpack.c.h.b16 %v706
        %v1547 = vunpack.c.l.b16 %v707
        %v1548 = vunpack.c.h.b16 %v707
        %v1549 = vunpack.c.l.b16 %v708
        %v1550 = vunpack.c.h.b16 %v708
        %v1551 = vunpack.c.l.b16 %v709
        %v1552 = vunpack.c.h.b16 %v709
        %v1553 = vunpack.c.l.b16 %v710
        %v1554 = vunpack.c.h.b16 %v710
        %v1555 = vunpack.c.l.b16 %v711
        %v1556 = vunpack.c.h.b16 %v711
        %v1557 = vunpack.c.l.b16 %v712
        %v1558 = vunpack.c.h.b16 %v712
        %v1559 = vunpack.c.l.b16 %v713
        %v1560 = vunpack.c.h.b16 %v713
        %v1561 = vunpack.c.l.b16 %v714
        %v1562 = vunpack.c.h.b16 %v714
        %v1563 = vunpack.c.l.b16 %v715
        %v1564 = vunpack.c.h.b16 %v715
        %v1565 = vunpack.c.l.b16 %v716
        %v1566 = vunpack.c.h.b16 %v716
        %v1567 = vunpack.c.l.b16 %v717
        %v1568 = vunpack.c.h.b16 %v717
        %v1569 = vunpack.c.l.b16 %v718
        %v1570 = vunpack.c.h.b16 %v718
        %v1571 = vunpack.c.l.b16 %v719
        %v1572 = vunpack.c.h.b16 %v719
        %v1573 = vunpack.c.l.b16 %v720
        %v1574 = vunpack.c.h.b16 %v720
        %v1575 = vunpack.c.l.b16 %v721
        %v1576 = vunpack.c.h.b16 %v721
        %v1577 = vunpack.c.l.b16 %v722
        %v1578 = vunpack.c.h.b16 %v722
        %v1579 = vunpack.c.l.b16 %v723
        %v1580 = vunpack.c.h.b16 %v723
        %v1581 = vunpack.c.l.b16 %v724
        %v1582 = vunpack.c.h.b16 %v724
        %v1583 = vunpack.c.l.b16 %v725
        %v1584 = vunpack.c.h.b16 %v725
        %v1585 = vunpack.c.l.b16 %v726
        %v1586 = vunpack.c.h.b16 %v726
        %v1587 = vunpack.c.l.b16 %v727
        %v1588 = vunpack.c.h.b16 %v727
        %v1589 = vunpack.c.l.b16 %v728
        %v1590 = vunpack.c.h.b16 %v728
        %v1591 = vunpack.c.l.b16 %v729
        %v1592 = vunpack.c.h.b16 %v729
        %v1593 = vunpack.c.l.b16 %v730
        %v1594 = vunpack.c.h.b16 %v730
        %v1595 = vunpack.c.l.b16 %v731
        %v1596 = vunpack.c.h.b16 %v731
        %v1597 = vunpack.c.l.b16 %v732
        %v1598 = vunpack.c.h.b16 %v732
        %v1599 = vunpack.c.l.b16 %v733
        %v1600 = vunpack.c.h.b16 %v733
        %v1601 = vunpack.c.l.b16 %v734
        %v1602 = vunpack.c.h.b16 %v734
        %v1603 = vunpack.c.l.b16 %v735
        %v1604 = vunpack.c.h.b16 %v735
        %v1605 = vunpack.c.l.b16 %v736
        %v1606 = vunpack.c.h.b16 %v736
        %v1607 = vunpack.c.l.b16 %v737
        %v1608 = vunpack.c.h.b16 %v737
        %v1609 = vpack.c.b16 %v1483, %v1481
        %v1610 = vpack.c.b16 %v1484, %v1482
        %v1611 = vpack.c.b16 %v1487, %v1485
        %v1612 = vpack.c.b16 %v1488, %v1486
        %v1613 = vpack.c.b16 %v1491, %v1489
        %v1614 = vpack.c.b16 %v1492, %v1490
        %v1615 = vpack.c.b16 %v1495, %v1493
        %v1616 = vpack.c.b16 %v1496, %v1494
        %v1617 = vpack.c.b16 %v1499, %v1497
        %v1618 = vpack.c.b16 %v1500, %v1498
        %v1619 = vpack.c.b16 %v1503, %v1501
        %v1620 = vpack.c.b16 %v1504, %v1502
        %v1621 = vpack.c.b16 %v1507, %v1505
        %v1622 = vpack.c.b16 %v1508, %v1506
        %v1623 = vpack.c.b16 %v1511, %v1509
        %v1624 = vpack.c.b16 %v1512, %v1510
        %v1625 = vpack.c.b16 %v1515, %v1513
        %v1626 = vpack.c.b16 %v1516, %v1514
        %v1627 = vpack.c.b16 %v1519, %v1517
        %v1628 = vpack.c.b16 %v1520, %v1518
        %v1629 = vpack.c.b16 %v1523, %v1521
        %v1630 = vpack.c.b16 %v1524, %v1522
        %v1631 = vpack.c.b16 %v1527, %v1525
        %v1632 = vpack.c.b16 %v1528, %v1526
        %v1633 = vpack.c.b16 %v1531, %v1529
        %v1634 = vpack.c.b16 %v1532, %v1530
        %v1635 = vpack.c.b16 %v1535, %v1533
        %v1636 = vpack.c.b16 %v1536, %v1534
        %v1637 = vpack.c.b16 %v1539, %v1537
        %v1638 = vpack.c.b16 %v1540, %v1538
        %v1639 = vpack.c.b16 %v1543, %v1541
        %v1640 = vpack.c.b16 %v1544, %v1542
        %v1641 = vpack.c.b16 %v1547, %v1545
        %v1642 = vpack.c.b16 %v1548, %v1546
        %v1643 = vpack.c.b16 %v1551, %v1549
        %v1644 = vpack.c.b16 %v1552, %v1550
        %v1645 = vpack.c.b16 %v1555, %v1553
        %v1646 = vpack.c.b16 %v1556, %v1554
        %v1647 = vpack.c.b16 %v1559, %v1557
        %v1648 = vpack.c.b16 %v1560, %v1558
        %v1649 = vpack.c.b16 %v1563, %v1561
        %v1650 = vpack.c.b16 %v1564, %v1562
        %v1651 = vpack.c.b16 %v1567, %v1565
        %v1652 = vpack.c.b16 %v1568, %v1566
        %v1653 = vpack.c.b16 %v1571, %v1569
        %v1654 = vpack.c.b16 %v1572, %v1570
        %v1655 = vpack.c.b16 %v1575, %v1573
        %v1656 = vpack.c.b16 %v1576, %v1574
        %v1657 = vpack.c.b16 %v1579, %v1577
        %v1658 = vpack.c.b16 %v1580, %v1578
        %v1659 = vpack.c.b16 %v1583, %v1581
        %v1660 = vpack.c.b16 %v1584, %v1582
        %v1661 = vpack.c.b16 %v1587, %v1585
        %v1662 = vpack.c.b16 %v1588, %v1586
        %v1663 = vpack.c.b16 %v1591, %v1589
        %v1664 = vpack.c.b16 %v1592, %v1590
        %v1665 = vpack.c.b16 %v1595, %v1593
        %v1666 = vpack.c.b16 %v1596, %v1594
        %v1667 = vpack.c.b16 %v1599, %v1597
        %v1668 = vpack.c.b16 %v1600, %v1598
        %v1669 = vpack.c.b16 %v1603, %v1601
        %v1670 = vpack.c.b16 %v1604, %v1602
        %v1671 = vpack.c.b16 %v1607, %v1605
        %v1672 = vpack.c.b16 %v1608, %v1606
        %v1769 = vunpack.c.l.b16 %v802
        %v1770 = vunpack.c.l.b16 %v803
        %v1771 = vunpack.c.l.b16 %v804
        %v1772 = vunpack.c.l.b16 %v805
        %v1773 = vunpack.c.l.b16 %v806
        %v1774 = vunpack.c.l.b16 %v807
        %v1775 = vunpack.c.l.b16 %v808
        %v1776 = vunpack.c.l.b16 %v809
        %v1777 = vunpack.c.l.b16 %v810
        %v1778 = vunpack.c.l.b16 %v811
        %v1779 = vunpack.c.l.b16 %v812
        %v1780 = vunpack.c.l.b16 %v813
        %v1781 = vunpack.c.l.b16 %v814
        %v1782 = vunpack.c.l.b16 %v815
        %v1783 = vunpack.c.l.b16 %v816
        %v1784 = vunpack.c.l.b16 %v817
        %v1785 = vunpack.c.l.b16 %v818
        %v1786 = vunpack.c.l.b16 %v819
        %v1787 = vunpack.c.l.b16 %v820
        %v1788 = vunpack.c.l.b16 %v821
        %v1789 = vunpack.c.l.b16 %v822
        %v1790 = vunpack.c.l.b16 %v823
        %v1791 = vunpack.c.l.b16 %v824
        %v1792 = vunpack.c.l.b16 %v825
        %v1793 = vunpack.c.l.b16 %v826
        %v1794 = vunpack.c.l.b16 %v827
        %v1795 = vunpack.c.l.b16 %v828
        %v1796 = vunpack.c.l.b16 %v829
        %v1797 = vunpack.c.l.b16 %v830
        %v1798 = vunpack.c.l.b16 %v831
        %v1799 = vunpack.c.l.b16 %v832
        %v1800 = vunpack.c.l.b16 %v833
        %v1801 = vpack.c.b16 %v1770, %v1769
        %v1802 = vpack.c.b16 %v1772, %v1771
        %v1803 = vpack.c.b16 %v1774, %v1773
        %v1804 = vpack.c.b16 %v1776, %v1775
        %v1805 = vpack.c.b16 %v1778, %v1777
        %v1806 = vpack.c.b16 %v1780, %v1779
        %v1807 = vpack.c.b16 %v1782, %v1781
        %v1808 = vpack.c.b16 %v1784, %v1783
        %v1809 = vpack.c.b16 %v1786, %v1785
        %v1810 = vpack.c.b16 %v1788, %v1787
        %v1811 = vpack.c.b16 %v1790, %v1789
        %v1812 = vpack.c.b16 %v1792, %v1791
        %v1813 = vpack.c.b16 %v1794, %v1793
        %v1814 = vpack.c.b16 %v1796, %v1795
        %v1815 = vpack.c.b16 %v1798, %v1797
        %v1816 = vpack.c.b16 %v1800, %v1799
        %1833 = vmatprep.subr.bf16.mxu0 0
        %1834 = vmatpush1.bf16.msra.mxu0 %v1808
        %1835 = vmatprep.subr.bf16.mxu0 0
        %1836 = vmatpush1.bf16.msra.mxu0 %v1807
        %1837 = vmatprep.subr.bf16.mxu0 0
        %1838 = vmatpush1.bf16.msra.mxu0 %v1806
        %1839 = vmatprep.subr.bf16.mxu0 0
        %1840 = vmatpush1.bf16.msra.mxu0 %v1805
        %1841 = vmatprep.subr.bf16.mxu0 0
        %1842 = vmatpush1.bf16.msra.mxu0 %v1804
        %1843 = vmatprep.subr.bf16.mxu0 0
        %1844 = vmatpush1.bf16.msra.mxu0 %v1803
        %1845 = vmatprep.subr.bf16.mxu0 0
        %1846 = vmatpush1.bf16.msra.mxu0 %v1802
        %1847 = vmatprep.subr.bf16.mxu0 0
        %1848 = vmatpush1.bf16.msra.mxu0 %v1801
        %1849 = vmatprep.subr.bf16.mxu0 0
        %1850 = vmatpush2.bf16.msra.mxu0 %v1816
        %1851 = vmatprep.subr.bf16.mxu0 0
        %1852 = vmatpush2.bf16.msra.mxu0 %v1815
        %1853 = vmatprep.subr.bf16.mxu0 0
        %1854 = vmatpush2.bf16.msra.mxu0 %v1814
        %1855 = vmatprep.subr.bf16.mxu0 0
        %1856 = vmatpush2.bf16.msra.mxu0 %v1813
        %1857 = vmatprep.subr.bf16.mxu0 0
        %1858 = vmatpush2.bf16.msra.mxu0 %v1812
        %1859 = vmatprep.subr.bf16.mxu0 0
        %1860 = vmatpush2.bf16.msra.mxu0 %v1811
        %1861 = vmatprep.subr.bf16.mxu0 0
        %1862 = vmatpush2.bf16.msra.mxu0 %v1810
        %1863 = vmatprep.subr.bf16.mxu0 0
        %1864 = vmatpush2.bf16.msra.mxu0 %v1809
        %1865 = vmatprep.mubr.bf16.mxu0 %v1610
        %1866 = vmatmul.mubr.bf16.gmra.mxu0 %v1609
        %v1867 = vpop.f32.mrf.mxu0
        %v1868 = vadd.f32 %v1099, %v1867
        %v1869 = vpop.f32.mrf.mxu0
        %v1870 = vpop.f32.mrf.mxu0
        %v1871 = vadd.f32 %v1104, %v1870
        %v1872 = vpop.f32.mrf.mxu0
        %1873 = vmatprep.mubr.bf16.mxu0 %v1612
        %1874 = vmatmul.mubr.bf16.gmra.mxu0 %v1611
        %v1875 = vpop.f32.mrf.mxu0
        %v1876 = vadd.f32 %v1109, %v1875
        %v1877 = vpop.f32.mrf.mxu0
        %v1878 = vpop.f32.mrf.mxu0
        %v1879 = vadd.f32 %v1114, %v1878
        %v1880 = vpop.f32.mrf.mxu0
        %1881 = vmatprep.mubr.bf16.mxu0 %v1614
        %1882 = vmatmul.mubr.bf16.gmra.mxu0 %v1613
        %v1883 = vpop.f32.mrf.mxu0
        %v1884 = vadd.f32 %v1119, %v1883
        %v1885 = vpop.f32.mrf.mxu0
        %v1886 = vpop.f32.mrf.mxu0
        %v1887 = vadd.f32 %v1124, %v1886
        %v1888 = vpop.f32.mrf.mxu0
        %1889 = vmatprep.mubr.bf16.mxu0 %v1616
        %1890 = vmatmul.mubr.bf16.gmra.mxu0 %v1615
        %v1891 = vpop.f32.mrf.mxu0
        %v1892 = vadd.f32 %v1129, %v1891
        %v1893 = vpop.f32.mrf.mxu0
        %v1894 = vpop.f32.mrf.mxu0
        %v1895 = vadd.f32 %v1134, %v1894
        %v1896 = vpop.f32.mrf.mxu0
        %1897 = vmatprep.mubr.bf16.mxu0 %v1618
        %1898 = vmatmul.mubr.bf16.gmra.mxu0 %v1617
        %v1899 = vpop.f32.mrf.mxu0
        %v1900 = vadd.f32 %v1139, %v1899
        %v1901 = vpop.f32.mrf.mxu0
        %v1902 = vpop.f32.mrf.mxu0
        %v1903 = vadd.f32 %v1144, %v1902
        %v1904 = vpop.f32.mrf.mxu0
        %1905 = vmatprep.mubr.bf16.mxu0 %v1620
        %1906 = vmatmul.mubr.bf16.gmra.mxu0 %v1619
        %v1907 = vpop.f32.mrf.mxu0
        %v1908 = vadd.f32 %v1149, %v1907
        %v1909 = vpop.f32.mrf.mxu0
        %v1910 = vpop.f32.mrf.mxu0
        %v1911 = vadd.f32 %v1154, %v1910
        %v1912 = vpop.f32.mrf.mxu0
        %1913 = vmatprep.mubr.bf16.mxu0 %v1622
        %1914 = vmatmul.mubr.bf16.gmra.mxu0 %v1621
        %v1915 = vpop.f32.mrf.mxu0
        %v1916 = vadd.f32 %v1159, %v1915
        %v1917 = vpop.f32.mrf.mxu0
        %v1918 = vpop.f32.mrf.mxu0
        %v1919 = vadd.f32 %v1164, %v1918
        %v1920 = vpop.f32.mrf.mxu0
        %1921 = vmatprep.mubr.bf16.mxu0 %v1624
        %1922 = vmatmul.mubr.bf16.gmra.mxu0 %v1623
        %v1923 = vpop.f32.mrf.mxu0
        %v1924 = vadd.f32 %v1169, %v1923
        %v1925 = vpop.f32.mrf.mxu0
        %v1926 = vpop.f32.mrf.mxu0
        %v1927 = vadd.f32 %v1174, %v1926
        %v1928 = vpop.f32.mrf.mxu0
        %1929 = vmatprep.mubr.bf16.mxu0 %v1626
        %1930 = vmatmul.mubr.bf16.gmra.mxu0 %v1625
        %v1931 = vpop.f32.mrf.mxu0
        %v1932 = vadd.f32 %v1179, %v1931
        %v1933 = vpop.f32.mrf.mxu0
        %v1934 = vpop.f32.mrf.mxu0
        %v1935 = vadd.f32 %v1184, %v1934
        %v1936 = vpop.f32.mrf.mxu0
        %1937 = vmatprep.mubr.bf16.mxu0 %v1628
        %1938 = vmatmul.mubr.bf16.gmra.mxu0 %v1627
        %v1939 = vpop.f32.mrf.mxu0
        %v1940 = vadd.f32 %v1189, %v1939
        %v1941 = vpop.f32.mrf.mxu0
        %v1942 = vpop.f32.mrf.mxu0
        %v1943 = vadd.f32 %v1194, %v1942
        %v1944 = vpop.f32.mrf.mxu0
        %1945 = vmatprep.mubr.bf16.mxu0 %v1630
        %1946 = vmatmul.mubr.bf16.gmra.mxu0 %v1629
        %v1947 = vpop.f32.mrf.mxu0
        %v1948 = vadd.f32 %v1199, %v1947
        %v1949 = vpop.f32.mrf.mxu0
        %v1950 = vpop.f32.mrf.mxu0
        %v1951 = vadd.f32 %v1204, %v1950
        %v1952 = vpop.f32.mrf.mxu0
        %1953 = vmatprep.mubr.bf16.mxu0 %v1632
        %1954 = vmatmul.mubr.bf16.gmra.mxu0 %v1631
        %v1955 = vpop.f32.mrf.mxu0
        %v1956 = vadd.f32 %v1209, %v1955
        %v1957 = vpop.f32.mrf.mxu0
        %v1958 = vpop.f32.mrf.mxu0
        %v1959 = vadd.f32 %v1214, %v1958
        %v1960 = vpop.f32.mrf.mxu0
        %1961 = vmatprep.mubr.bf16.mxu0 %v1634
        %1962 = vmatmul.mubr.bf16.gmra.mxu0 %v1633
        %v1963 = vpop.f32.mrf.mxu0
        %v1964 = vadd.f32 %v1219, %v1963
        %v1965 = vpop.f32.mrf.mxu0
        %v1966 = vpop.f32.mrf.mxu0
        %v1967 = vadd.f32 %v1224, %v1966
        %v1968 = vpop.f32.mrf.mxu0
        %1969 = vmatprep.mubr.bf16.mxu0 %v1636
        %1970 = vmatmul.mubr.bf16.gmra.mxu0 %v1635
        %v1971 = vpop.f32.mrf.mxu0
        %v1972 = vadd.f32 %v1229, %v1971
        %v1973 = vpop.f32.mrf.mxu0
        %v1974 = vpop.f32.mrf.mxu0
        %v1975 = vadd.f32 %v1234, %v1974
        %v1976 = vpop.f32.mrf.mxu0
        %1977 = vmatprep.mubr.bf16.mxu0 %v1638
        %1978 = vmatmul.mubr.bf16.gmra.mxu0 %v1637
        %v1979 = vpop.f32.mrf.mxu0
        %v1980 = vadd.f32 %v1239, %v1979
        %v1981 = vpop.f32.mrf.mxu0
        %v1982 = vpop.f32.mrf.mxu0
        %v1983 = vadd.f32 %v1244, %v1982
        %v1984 = vpop.f32.mrf.mxu0
        %1985 = vmatprep.mubr.bf16.mxu0 %v1640
        %1986 = vmatmul.mubr.bf16.gmra.mxu0 %v1639
        %v1987 = vpop.f32.mrf.mxu0
        %v1988 = vadd.f32 %v1249, %v1987
        %v1989 = vpop.f32.mrf.mxu0
        %v1990 = vpop.f32.mrf.mxu0
        %v1991 = vadd.f32 %v1254, %v1990
        %v1992 = vpop.f32.mrf.mxu0
        %1993 = vmatprep.mubr.bf16.mxu0 %v1642
        %1994 = vmatmul.mubr.bf16.gmra.mxu0 %v1641
        %v1995 = vpop.f32.mrf.mxu0
        %v1996 = vadd.f32 %v1259, %v1995
        %v1997 = vpop.f32.mrf.mxu0
        %v1998 = vpop.f32.mrf.mxu0
        %v1999 = vadd.f32 %v1264, %v1998
        %v2000 = vpop.f32.mrf.mxu0
        %2001 = vmatprep.mubr.bf16.mxu0 %v1644
        %2002 = vmatmul.mubr.bf16.gmra.mxu0 %v1643
        %v2003 = vpop.f32.mrf.mxu0
        %v2004 = vadd.f32 %v1269, %v2003
        %v2005 = vpop.f32.mrf.mxu0
        %v2006 = vpop.f32.mrf.mxu0
        %v2007 = vadd.f32 %v1274, %v2006
        %v2008 = vpop.f32.mrf.mxu0
        %2009 = vmatprep.mubr.bf16.mxu0 %v1646
        %2010 = vmatmul.mubr.bf16.gmra.mxu0 %v1645
        %v2011 = vpop.f32.mrf.mxu0
        %v2012 = vadd.f32 %v1279, %v2011
        %v2013 = vpop.f32.mrf.mxu0
        %v2014 = vpop.f32.mrf.mxu0
        %v2015 = vadd.f32 %v1284, %v2014
        %v2016 = vpop.f32.mrf.mxu0
        %2017 = vmatprep.mubr.bf16.mxu0 %v1648
        %2018 = vmatmul.mubr.bf16.gmra.mxu0 %v1647
        %v2019 = vpop.f32.mrf.mxu0
        %v2020 = vadd.f32 %v1289, %v2019
        %v2021 = vpop.f32.mrf.mxu0
        %v2022 = vpop.f32.mrf.mxu0
        %v2023 = vadd.f32 %v1294, %v2022
        %v2024 = vpop.f32.mrf.mxu0
        %2025 = vmatprep.mubr.bf16.mxu0 %v1650
        %2026 = vmatmul.mubr.bf16.gmra.mxu0 %v1649
        %v2027 = vpop.f32.mrf.mxu0
        %v2028 = vadd.f32 %v1299, %v2027
        %v2029 = vpop.f32.mrf.mxu0
        %v2030 = vpop.f32.mrf.mxu0
        %v2031 = vadd.f32 %v1304, %v2030
        %v2032 = vpop.f32.mrf.mxu0
        %2033 = vmatprep.mubr.bf16.mxu0 %v1652
        %2034 = vmatmul.mubr.bf16.gmra.mxu0 %v1651
        %v2035 = vpop.f32.mrf.mxu0
        %v2036 = vadd.f32 %v1309, %v2035
        %v2037 = vpop.f32.mrf.mxu0
        %v2038 = vpop.f32.mrf.mxu0
        %v2039 = vadd.f32 %v1314, %v2038
        %v2040 = vpop.f32.mrf.mxu0
        %2041 = vmatprep.mubr.bf16.mxu0 %v1654
        %2042 = vmatmul.mubr.bf16.gmra.mxu0 %v1653
        %v2043 = vpop.f32.mrf.mxu0
        %v2044 = vadd.f32 %v1319, %v2043
        %v2045 = vpop.f32.mrf.mxu0
        %v2046 = vpop.f32.mrf.mxu0
        %v2047 = vadd.f32 %v1324, %v2046
        %v2048 = vpop.f32.mrf.mxu0
        %2049 = vmatprep.mubr.bf16.mxu0 %v1656
        %2050 = vmatmul.mubr.bf16.gmra.mxu0 %v1655
        %v2051 = vpop.f32.mrf.mxu0
        %v2052 = vadd.f32 %v1329, %v2051
        %v2053 = vpop.f32.mrf.mxu0
        %v2054 = vpop.f32.mrf.mxu0
        %v2055 = vadd.f32 %v1334, %v2054
        %v2056 = vpop.f32.mrf.mxu0
        %2057 = vmatprep.mubr.bf16.mxu0 %v1658
        %2058 = vmatmul.mubr.bf16.gmra.mxu0 %v1657
        %v2059 = vpop.f32.mrf.mxu0
        %v2060 = vadd.f32 %v1339, %v2059
        %v2061 = vpop.f32.mrf.mxu0
        %v2062 = vpop.f32.mrf.mxu0
        %v2063 = vadd.f32 %v1344, %v2062
        %v2064 = vpop.f32.mrf.mxu0
        %2065 = vmatprep.mubr.bf16.mxu0 %v1660
        %2066 = vmatmul.mubr.bf16.gmra.mxu0 %v1659
        %v2067 = vpop.f32.mrf.mxu0
        %v2068 = vadd.f32 %v1349, %v2067
        %v2069 = vpop.f32.mrf.mxu0
        %v2070 = vpop.f32.mrf.mxu0
        %v2071 = vadd.f32 %v1354, %v2070
        %v2072 = vpop.f32.mrf.mxu0
        %2073 = vmatprep.mubr.bf16.mxu0 %v1662
        %2074 = vmatmul.mubr.bf16.gmra.mxu0 %v1661
        %v2075 = vpop.f32.mrf.mxu0
        %v2076 = vadd.f32 %v1359, %v2075
        %v2077 = vpop.f32.mrf.mxu0
        %v2078 = vpop.f32.mrf.mxu0
        %v2079 = vadd.f32 %v1364, %v2078
        %v2080 = vpop.f32.mrf.mxu0
        %2081 = vmatprep.mubr.bf16.mxu0 %v1664
        %2082 = vmatmul.mubr.bf16.gmra.mxu0 %v1663
        %v2083 = vpop.f32.mrf.mxu0
        %v2084 = vadd.f32 %v1369, %v2083
        %v2085 = vpop.f32.mrf.mxu0
        %v2086 = vpop.f32.mrf.mxu0
        %v2087 = vadd.f32 %v1374, %v2086
        %v2088 = vpop.f32.mrf.mxu0
        %2089 = vmatprep.mubr.bf16.mxu0 %v1666
        %2090 = vmatmul.mubr.bf16.gmra.mxu0 %v1665
        %v2091 = vpop.f32.mrf.mxu0
        %v2092 = vadd.f32 %v1379, %v2091
        %v2093 = vpop.f32.mrf.mxu0
        %v2094 = vpop.f32.mrf.mxu0
        %v2095 = vadd.f32 %v1384, %v2094
        %v2096 = vpop.f32.mrf.mxu0
        %2097 = vmatprep.mubr.bf16.mxu0 %v1668
        %2098 = vmatmul.mubr.bf16.gmra.mxu0 %v1667
        %v2099 = vpop.f32.mrf.mxu0
        %v2100 = vadd.f32 %v1389, %v2099
        %v2101 = vpop.f32.mrf.mxu0
        %v2102 = vpop.f32.mrf.mxu0
        %v2103 = vadd.f32 %v1394, %v2102
        %v2104 = vpop.f32.mrf.mxu0
        %2105 = vmatprep.mubr.bf16.mxu0 %v1670
        %2106 = vmatmul.mubr.bf16.gmra.mxu0 %v1669
        %v2107 = vpop.f32.mrf.mxu0
        %v2108 = vadd.f32 %v1399, %v2107
        %v2109 = vpop.f32.mrf.mxu0
        %v2110 = vpop.f32.mrf.mxu0
        %v2111 = vadd.f32 %v1404, %v2110
        %v2112 = vpop.f32.mrf.mxu0
        %2113 = vmatprep.mubr.bf16.mxu0 %v1672
        %2114 = vmatmul.mubr.bf16.gmra.mxu0 %v1671
        %v2115 = vpop.f32.mrf.mxu0
        %v2116 = vadd.f32 %v1409, %v2115
        %v2117 = vpop.f32.mrf.mxu0
        %v2118 = vpop.f32.mrf.mxu0
        %v2119 = vadd.f32 %v1414, %v2118
        %v2120 = vpop.f32.mrf.mxu0
        %2121 = vdwg.mxu0
        %v2122 = vld [vmem:[%s4] sm:$0x1]
        %v2124 = vlaneseq
        %v2125 = vshrl.u32 %v2124, 7
        %v2126 = vsub.s32 0, %v2125
        %v2127 = vrot.slane %v2122, %v2126
        %v2129 = vadd.f32 %v1868, %v2127
        %v2130 = vadd.f32 %v1871, %v2127
        %v2131 = vadd.f32 %v1876, %v2127
        %v2132 = vadd.f32 %v1879, %v2127
        %v2133 = vadd.f32 %v1884, %v2127
        %v2134 = vadd.f32 %v1887, %v2127
        %v2135 = vadd.f32 %v1892, %v2127
        %v2136 = vadd.f32 %v1895, %v2127
        %v2137 = vadd.f32 %v1900, %v2127
        %v2138 = vadd.f32 %v1903, %v2127
        %v2139 = vadd.f32 %v1908, %v2127
        %v2140 = vadd.f32 %v1911, %v2127
        %v2141 = vadd.f32 %v1916, %v2127
        %v2142 = vadd.f32 %v1919, %v2127
        %v2143 = vadd.f32 %v1924, %v2127
        %v2144 = vadd.f32 %v1927, %v2127
        %v2145 = vadd.f32 %v1932, %v2127
        %v2146 = vadd.f32 %v1935, %v2127
        %v2147 = vadd.f32 %v1940, %v2127
        %v2148 = vadd.f32 %v1943, %v2127
        %v2149 = vadd.f32 %v1948, %v2127
        %v2150 = vadd.f32 %v1951, %v2127
        %v2151 = vadd.f32 %v1956, %v2127
        %v2152 = vadd.f32 %v1959, %v2127
        %v2153 = vadd.f32 %v1964, %v2127
        %v2154 = vadd.f32 %v1967, %v2127
        %v2155 = vadd.f32 %v1972, %v2127
        %v2156 = vadd.f32 %v1975, %v2127
        %v2157 = vadd.f32 %v1980, %v2127
        %v2158 = vadd.f32 %v1983, %v2127
        %v2159 = vadd.f32 %v1988, %v2127
        %v2160 = vadd.f32 %v1991, %v2127
        %v2161 = vadd.f32 %v1996, %v2127
        %v2162 = vadd.f32 %v1999, %v2127
        %v2163 = vadd.f32 %v2004, %v2127
        %v2164 = vadd.f32 %v2007, %v2127
        %v2165 = vadd.f32 %v2012, %v2127
        %v2166 = vadd.f32 %v2015, %v2127
        %v2167 = vadd.f32 %v2020, %v2127
        %v2168 = vadd.f32 %v2023, %v2127
        %v2169 = vadd.f32 %v2028, %v2127
        %v2170 = vadd.f32 %v2031, %v2127
        %v2171 = vadd.f32 %v2036, %v2127
        %v2172 = vadd.f32 %v2039, %v2127
        %v2173 = vadd.f32 %v2044, %v2127
        %v2174 = vadd.f32 %v2047, %v2127
        %v2175 = vadd.f32 %v2052, %v2127
        %v2176 = vadd.f32 %v2055, %v2127
        %v2177 = vadd.f32 %v2060, %v2127
        %v2178 = vadd.f32 %v2063, %v2127
        %v2179 = vadd.f32 %v2068, %v2127
        %v2180 = vadd.f32 %v2071, %v2127
        %v2181 = vadd.f32 %v2076, %v2127
        %v2182 = vadd.f32 %v2079, %v2127
        %v2183 = vadd.f32 %v2084, %v2127
        %v2184 = vadd.f32 %v2087, %v2127
        %v2185 = vadd.f32 %v2092, %v2127
        %v2186 = vadd.f32 %v2095, %v2127
        %v2187 = vadd.f32 %v2100, %v2127
        %v2188 = vadd.f32 %v2103, %v2127
        %v2189 = vadd.f32 %v2108, %v2127
        %v2190 = vadd.f32 %v2111, %v2127
        %v2191 = vadd.f32 %v2116, %v2127
        %v2192 = vadd.f32 %v2119, %v2127
        %v2193 = vmax.f32 %v2129, 0.0
        %v2194 = vmax.f32 %v2130, 0.0
        %v2195 = vmax.f32 %v2131, 0.0
        %v2196 = vmax.f32 %v2132, 0.0
        %v2197 = vmax.f32 %v2133, 0.0
        %v2198 = vmax.f32 %v2134, 0.0
        %v2199 = vmax.f32 %v2135, 0.0
        %v2200 = vmax.f32 %v2136, 0.0
        %v2201 = vmax.f32 %v2137, 0.0
        %v2202 = vmax.f32 %v2138, 0.0
        %v2203 = vmax.f32 %v2139, 0.0
        %v2204 = vmax.f32 %v2140, 0.0
        %v2205 = vmax.f32 %v2141, 0.0
        %v2206 = vmax.f32 %v2142, 0.0
        %v2207 = vmax.f32 %v2143, 0.0
        %v2208 = vmax.f32 %v2144, 0.0
        %v2209 = vmax.f32 %v2145, 0.0
        %v2210 = vmax.f32 %v2146, 0.0
        %v2211 = vmax.f32 %v2147, 0.0
        %v2212 = vmax.f32 %v2148, 0.0
        %v2213 = vmax.f32 %v2149, 0.0
        %v2214 = vmax.f32 %v2150, 0.0
        %v2215 = vmax.f32 %v2151, 0.0
        %v2216 = vmax.f32 %v2152, 0.0
        %v2217 = vmax.f32 %v2153, 0.0
        %v2218 = vmax.f32 %v2154, 0.0
        %v2219 = vmax.f32 %v2155, 0.0
        %v2220 = vmax.f32 %v2156, 0.0
        %v2221 = vmax.f32 %v2157, 0.0
        %v2222 = vmax.f32 %v2158, 0.0
        %v2223 = vmax.f32 %v2159, 0.0
        %v2224 = vmax.f32 %v2160, 0.0
        %v2225 = vmax.f32 %v2161, 0.0
        %v2226 = vmax.f32 %v2162, 0.0
        %v2227 = vmax.f32 %v2163, 0.0
        %v2228 = vmax.f32 %v2164, 0.0
        %v2229 = vmax.f32 %v2165, 0.0
        %v2230 = vmax.f32 %v2166, 0.0
        %v2231 = vmax.f32 %v2167, 0.0
        %v2232 = vmax.f32 %v2168, 0.0
        %v2233 = vmax.f32 %v2169, 0.0
        %v2234 = vmax.f32 %v2170, 0.0
        %v2235 = vmax.f32 %v2171, 0.0
        %v2236 = vmax.f32 %v2172, 0.0
        %v2237 = vmax.f32 %v2173, 0.0
        %v2238 = vmax.f32 %v2174, 0.0
        %v2239 = vmax.f32 %v2175, 0.0
        %v2240 = vmax.f32 %v2176, 0.0
        %v2241 = vmax.f32 %v2177, 0.0
        %v2242 = vmax.f32 %v2178, 0.0
        %v2243 = vmax.f32 %v2179, 0.0
        %v2244 = vmax.f32 %v2180, 0.0
        %v2245 = vmax.f32 %v2181, 0.0
        %v2246 = vmax.f32 %v2182, 0.0
        %v2247 = vmax.f32 %v2183, 0.0
        %v2248 = vmax.f32 %v2184, 0.0
        %v2249 = vmax.f32 %v2185, 0.0
        %v2250 = vmax.f32 %v2186, 0.0
        %v2251 = vmax.f32 %v2187, 0.0
        %v2252 = vmax.f32 %v2188, 0.0
        %v2253 = vmax.f32 %v2189, 0.0
        %v2254 = vmax.f32 %v2190, 0.0
        %v2255 = vmax.f32 %v2191, 0.0
        %v2256 = vmax.f32 %v2192, 0.0
        %v2257 = vpack.c.bf16 %v2194, %v2193
        %v2258 = vpack.c.bf16 %v2196, %v2195
        %v2259 = vpack.c.bf16 %v2198, %v2197
        %v2260 = vpack.c.bf16 %v2200, %v2199
        %v2261 = vpack.c.bf16 %v2202, %v2201
        %v2262 = vpack.c.bf16 %v2204, %v2203
        %v2263 = vpack.c.bf16 %v2206, %v2205
        %v2264 = vpack.c.bf16 %v2208, %v2207
        %v2265 = vpack.c.bf16 %v2210, %v2209
        %v2266 = vpack.c.bf16 %v2212, %v2211
        %v2267 = vpack.c.bf16 %v2214, %v2213
        %v2268 = vpack.c.bf16 %v2216, %v2215
        %v2269 = vpack.c.bf16 %v2218, %v2217
        %v2270 = vpack.c.bf16 %v2220, %v2219
        %v2271 = vpack.c.bf16 %v2222, %v2221
        %v2272 = vpack.c.bf16 %v2224, %v2223
        %v2273 = vpack.c.bf16 %v2226, %v2225
        %v2274 = vpack.c.bf16 %v2228, %v2227
        %v2275 = vpack.c.bf16 %v2230, %v2229
        %v2276 = vpack.c.bf16 %v2232, %v2231
        %v2277 = vpack.c.bf16 %v2234, %v2233
        %v2278 = vpack.c.bf16 %v2236, %v2235
        %v2279 = vpack.c.bf16 %v2238, %v2237
        %v2280 = vpack.c.bf16 %v2240, %v2239
        %v2281 = vpack.c.bf16 %v2242, %v2241
        %v2282 = vpack.c.bf16 %v2244, %v2243
        %v2283 = vpack.c.bf16 %v2246, %v2245
        %v2284 = vpack.c.bf16 %v2248, %v2247
        %v2285 = vpack.c.bf16 %v2250, %v2249
        %v2286 = vpack.c.bf16 %v2252, %v2251
        %v2287 = vpack.c.bf16 %v2254, %v2253
        %v2288 = vpack.c.bf16 %v2256, %v2255
        %v2289 = vld [vmem:[#allocation5] sm:$0xf]
        %v2290 = vld [vmem:[#allocation5 + $0x4] sm:$0xf]
        %v2291 = vld [vmem:[#allocation5 + $0x8] sm:$0xf]
        %v2292 = vld [vmem:[#allocation5 + $0xc] sm:$0xf]
        %v2293 = vld [vmem:[#allocation5 + $0x10] sm:$0xf]
        %v2294 = vld [vmem:[#allocation5 + $0x14] sm:$0xf]
        %v2295 = vld [vmem:[#allocation5 + $0x18] sm:$0xf]
        %v2296 = vld [vmem:[#allocation5 + $0x1c] sm:$0xf]
        %v2297 = vld [vmem:[#allocation5 + $0x20] sm:$0xf]
        %v2298 = vld [vmem:[#allocation5 + $0x24] sm:$0xf]
        %v2299 = vld [vmem:[#allocation5 + $0x28] sm:$0xf]
        %v2300 = vld [vmem:[#allocation5 + $0x2c] sm:$0xf]
        %v2301 = vld [vmem:[#allocation5 + $0x30] sm:$0xf]
        %v2302 = vld [vmem:[#allocation5 + $0x34] sm:$0xf]
        %v2303 = vld [vmem:[#allocation5 + $0x38] sm:$0xf]
        %v2304 = vld [vmem:[#allocation5 + $0x3c] sm:$0xf]
        %v2305 = vld [vmem:[%s6] sm:$0x1]
        %v2307 = vlaneseq
        %v2308 = vshrl.u32 %v2307, 7
        %v2309 = vsub.s32 0, %v2308
        %v2310 = vrot.slane %v2305, %v2309
        %v2328 = vunpack.c.l.b16 %v2289
        %v2329 = vunpack.c.l.b16 %v2290
        %v2330 = vunpack.c.l.b16 %v2291
        %v2331 = vunpack.c.l.b16 %v2292
        %v2332 = vunpack.c.l.b16 %v2293
        %v2333 = vunpack.c.l.b16 %v2294
        %v2334 = vunpack.c.l.b16 %v2295
        %v2335 = vunpack.c.l.b16 %v2296
        %v2336 = vunpack.c.l.b16 %v2297
        %v2337 = vunpack.c.l.b16 %v2298
        %v2338 = vunpack.c.l.b16 %v2299
        %v2339 = vunpack.c.l.b16 %v2300
        %v2340 = vunpack.c.l.b16 %v2301
        %v2341 = vunpack.c.l.b16 %v2302
        %v2342 = vunpack.c.l.b16 %v2303
        %v2343 = vunpack.c.l.b16 %v2304
        %v2344 = vpack.c.b16 %v2329, %v2328
        %v2345 = vpack.c.b16 %v2331, %v2330
        %v2346 = vpack.c.b16 %v2333, %v2332
        %v2347 = vpack.c.b16 %v2335, %v2334
        %v2348 = vpack.c.b16 %v2337, %v2336
        %v2349 = vpack.c.b16 %v2339, %v2338
        %v2350 = vpack.c.b16 %v2341, %v2340
        %v2351 = vpack.c.b16 %v2343, %v2342
        %2360 = vmatprep.subr.bf16.mxu0 0
        %2361 = vmatpush1.bf16.msra.mxu0 %v2351
        %2362 = vmatprep.subr.bf16.mxu0 0
        %2363 = vmatpush1.bf16.msra.mxu0 %v2350
        %2364 = vmatprep.subr.bf16.mxu0 0
        %2365 = vmatpush1.bf16.msra.mxu0 %v2349
        %2366 = vmatprep.subr.bf16.mxu0 0
        %2367 = vmatpush1.bf16.msra.mxu0 %v2348
        %2368 = vmatprep.subr.bf16.mxu0 0
        %2369 = vmatpush1.bf16.msra.mxu0 %v2347
        %2370 = vmatprep.subr.bf16.mxu0 0
        %2371 = vmatpush1.bf16.msra.mxu0 %v2346
        %2372 = vmatprep.subr.bf16.mxu0 0
        %2373 = vmatpush1.bf16.msra.mxu0 %v2345
        %2374 = vmatprep.subr.bf16.mxu0 0
        %2375 = vmatpush1.bf16.msra.mxu0 %v2344
        %2376 = vmatprep.subr.bf16.mxu0 0
        %2377 = vmatpush2.bf16.msra.mxu0 0
        %2378 = vmatprep.subr.bf16.mxu0 0
        %2379 = vmatpush2.bf16.msra.mxu0 0
        %2380 = vmatprep.subr.bf16.mxu0 0
        %2381 = vmatpush2.bf16.msra.mxu0 0
        %2382 = vmatprep.subr.bf16.mxu0 0
        %2383 = vmatpush2.bf16.msra.mxu0 0
        %2384 = vmatprep.subr.bf16.mxu0 0
        %2385 = vmatpush2.bf16.msra.mxu0 0
        %2386 = vmatprep.subr.bf16.mxu0 0
        %2387 = vmatpush2.bf16.msra.mxu0 0
        %2388 = vmatprep.subr.bf16.mxu0 0
        %2389 = vmatpush2.bf16.msra.mxu0 0
        %2390 = vmatprep.subr.bf16.mxu0 0
        %2391 = vmatpush2.bf16.msra.mxu0 0
        %2392 = vmatprep.mubr.bf16.mxu0 0
        %2393 = vmatmul.mubr.bf16.gmra.mxu0 %v2257
        %v2394 = vpop.f32.mrf.mxu0
        %v2395 = vadd.f32 %v2310, %v2394
        %v2396 = vpop.f32.mrf.mxu0
        %v2397 = vpop.f32.mrf.mxu0
        %v2398 = vadd.f32 %v2310, %v2397
        %v2399 = vpop.f32.mrf.mxu0
        %2400 = vmatprep.mubr.bf16.mxu0 0
        %2401 = vmatmul.mubr.bf16.gmra.mxu0 %v2258
        %v2402 = vpop.f32.mrf.mxu0
        %v2403 = vadd.f32 %v2310, %v2402
        %v2404 = vpop.f32.mrf.mxu0
        %v2405 = vpop.f32.mrf.mxu0
        %v2406 = vadd.f32 %v2310, %v2405
        %v2407 = vpop.f32.mrf.mxu0
        %2408 = vmatprep.mubr.bf16.mxu0 0
        %2409 = vmatmul.mubr.bf16.gmra.mxu0 %v2259
        %v2410 = vpop.f32.mrf.mxu0
        %v2411 = vadd.f32 %v2310, %v2410
        %v2412 = vpop.f32.mrf.mxu0
        %v2413 = vpop.f32.mrf.mxu0
        %v2414 = vadd.f32 %v2310, %v2413
        %v2415 = vpop.f32.mrf.mxu0
        %2416 = vmatprep.mubr.bf16.mxu0 0
        %2417 = vmatmul.mubr.bf16.gmra.mxu0 %v2260
        %v2418 = vpop.f32.mrf.mxu0
        %v2419 = vadd.f32 %v2310, %v2418
        %v2420 = vpop.f32.mrf.mxu0
        %v2421 = vpop.f32.mrf.mxu0
        %v2422 = vadd.f32 %v2310, %v2421
        %v2423 = vpop.f32.mrf.mxu0
        %2424 = vmatprep.mubr.bf16.mxu0 0
        %2425 = vmatmul.mubr.bf16.gmra.mxu0 %v2261
        %v2426 = vpop.f32.mrf.mxu0
        %v2427 = vadd.f32 %v2310, %v2426
        %v2428 = vpop.f32.mrf.mxu0
        %v2429 = vpop.f32.mrf.mxu0
        %v2430 = vadd.f32 %v2310, %v2429
        %v2431 = vpop.f32.mrf.mxu0
        %2432 = vmatprep.mubr.bf16.mxu0 0
        %2433 = vmatmul.mubr.bf16.gmra.mxu0 %v2262
        %v2434 = vpop.f32.mrf.mxu0
        %v2435 = vadd.f32 %v2310, %v2434
        %v2436 = vpop.f32.mrf.mxu0
        %v2437 = vpop.f32.mrf.mxu0
        %v2438 = vadd.f32 %v2310, %v2437
        %v2439 = vpop.f32.mrf.mxu0
        %2440 = vmatprep.mubr.bf16.mxu0 0
        %2441 = vmatmul.mubr.bf16.gmra.mxu0 %v2263
        %v2442 = vpop.f32.mrf.mxu0
        %v2443 = vadd.f32 %v2310, %v2442
        %v2444 = vpop.f32.mrf.mxu0
        %v2445 = vpop.f32.mrf.mxu0
        %v2446 = vadd.f32 %v2310, %v2445
        %v2447 = vpop.f32.mrf.mxu0
        %2448 = vmatprep.mubr.bf16.mxu0 0
        %2449 = vmatmul.mubr.bf16.gmra.mxu0 %v2264
        %v2450 = vpop.f32.mrf.mxu0
        %v2451 = vadd.f32 %v2310, %v2450
        %v2452 = vpop.f32.mrf.mxu0
        %v2453 = vpop.f32.mrf.mxu0
        %v2454 = vadd.f32 %v2310, %v2453
        %v2455 = vpop.f32.mrf.mxu0
        %2456 = vmatprep.mubr.bf16.mxu0 0
        %2457 = vmatmul.mubr.bf16.gmra.mxu0 %v2265
        %v2458 = vpop.f32.mrf.mxu0
        %v2459 = vadd.f32 %v2310, %v2458
        %v2460 = vpop.f32.mrf.mxu0
        %v2461 = vpop.f32.mrf.mxu0
        %v2462 = vadd.f32 %v2310, %v2461
        %v2463 = vpop.f32.mrf.mxu0
        %2464 = vmatprep.mubr.bf16.mxu0 0
        %2465 = vmatmul.mubr.bf16.gmra.mxu0 %v2266
        %v2466 = vpop.f32.mrf.mxu0
        %v2467 = vadd.f32 %v2310, %v2466
        %v2468 = vpop.f32.mrf.mxu0
        %v2469 = vpop.f32.mrf.mxu0
        %v2470 = vadd.f32 %v2310, %v2469
        %v2471 = vpop.f32.mrf.mxu0
        %2472 = vmatprep.mubr.bf16.mxu0 0
        %2473 = vmatmul.mubr.bf16.gmra.mxu0 %v2267
        %v2474 = vpop.f32.mrf.mxu0
        %v2475 = vadd.f32 %v2310, %v2474
        %v2476 = vpop.f32.mrf.mxu0
        %v2477 = vpop.f32.mrf.mxu0
        %v2478 = vadd.f32 %v2310, %v2477
        %v2479 = vpop.f32.mrf.mxu0
        %2480 = vmatprep.mubr.bf16.mxu0 0
        %2481 = vmatmul.mubr.bf16.gmra.mxu0 %v2268
        %v2482 = vpop.f32.mrf.mxu0
        %v2483 = vadd.f32 %v2310, %v2482
        %v2484 = vpop.f32.mrf.mxu0
        %v2485 = vpop.f32.mrf.mxu0
        %v2486 = vadd.f32 %v2310, %v2485
        %v2487 = vpop.f32.mrf.mxu0
        %2488 = vmatprep.mubr.bf16.mxu0 0
        %2489 = vmatmul.mubr.bf16.gmra.mxu0 %v2269
        %v2490 = vpop.f32.mrf.mxu0
        %v2491 = vadd.f32 %v2310, %v2490
        %v2492 = vpop.f32.mrf.mxu0
        %v2493 = vpop.f32.mrf.mxu0
        %v2494 = vadd.f32 %v2310, %v2493
        %v2495 = vpop.f32.mrf.mxu0
        %2496 = vmatprep.mubr.bf16.mxu0 0
        %2497 = vmatmul.mubr.bf16.gmra.mxu0 %v2270
        %v2498 = vpop.f32.mrf.mxu0
        %v2499 = vadd.f32 %v2310, %v2498
        %v2500 = vpop.f32.mrf.mxu0
        %v2501 = vpop.f32.mrf.mxu0
        %v2502 = vadd.f32 %v2310, %v2501
        %v2503 = vpop.f32.mrf.mxu0
        %2504 = vmatprep.mubr.bf16.mxu0 0
        %2505 = vmatmul.mubr.bf16.gmra.mxu0 %v2271
        %v2506 = vpop.f32.mrf.mxu0
        %v2507 = vadd.f32 %v2310, %v2506
        %v2508 = vpop.f32.mrf.mxu0
        %v2509 = vpop.f32.mrf.mxu0
        %v2510 = vadd.f32 %v2310, %v2509
        %v2511 = vpop.f32.mrf.mxu0
        %2512 = vmatprep.mubr.bf16.mxu0 0
        %2513 = vmatmul.mubr.bf16.gmra.mxu0 %v2272
        %v2514 = vpop.f32.mrf.mxu0
        %v2515 = vadd.f32 %v2310, %v2514
        %v2516 = vpop.f32.mrf.mxu0
        %v2517 = vpop.f32.mrf.mxu0
        %v2518 = vadd.f32 %v2310, %v2517
        %v2519 = vpop.f32.mrf.mxu0
        %2520 = vmatprep.mubr.bf16.mxu0 0
        %2521 = vmatmul.mubr.bf16.gmra.mxu0 %v2273
        %v2522 = vpop.f32.mrf.mxu0
        %v2523 = vadd.f32 %v2310, %v2522
        %v2524 = vpop.f32.mrf.mxu0
        %v2525 = vpop.f32.mrf.mxu0
        %v2526 = vadd.f32 %v2310, %v2525
        %v2527 = vpop.f32.mrf.mxu0
        %2528 = vmatprep.mubr.bf16.mxu0 0
        %2529 = vmatmul.mubr.bf16.gmra.mxu0 %v2274
        %v2530 = vpop.f32.mrf.mxu0
        %v2531 = vadd.f32 %v2310, %v2530
        %v2532 = vpop.f32.mrf.mxu0
        %v2533 = vpop.f32.mrf.mxu0
        %v2534 = vadd.f32 %v2310, %v2533
        %v2535 = vpop.f32.mrf.mxu0
        %2536 = vmatprep.mubr.bf16.mxu0 0
        %2537 = vmatmul.mubr.bf16.gmra.mxu0 %v2275
        %v2538 = vpop.f32.mrf.mxu0
        %v2539 = vadd.f32 %v2310, %v2538
        %v2540 = vpop.f32.mrf.mxu0
        %v2541 = vpop.f32.mrf.mxu0
        %v2542 = vadd.f32 %v2310, %v2541
        %v2543 = vpop.f32.mrf.mxu0
        %2544 = vmatprep.mubr.bf16.mxu0 0
        %2545 = vmatmul.mubr.bf16.gmra.mxu0 %v2276
        %v2546 = vpop.f32.mrf.mxu0
        %v2547 = vadd.f32 %v2310, %v2546
        %v2548 = vpop.f32.mrf.mxu0
        %v2549 = vpop.f32.mrf.mxu0
        %v2550 = vadd.f32 %v2310, %v2549
        %v2551 = vpop.f32.mrf.mxu0
        %2552 = vmatprep.mubr.bf16.mxu0 0
        %2553 = vmatmul.mubr.bf16.gmra.mxu0 %v2277
        %v2554 = vpop.f32.mrf.mxu0
        %v2555 = vadd.f32 %v2310, %v2554
        %v2556 = vpop.f32.mrf.mxu0
        %v2557 = vpop.f32.mrf.mxu0
        %v2558 = vadd.f32 %v2310, %v2557
        %v2559 = vpop.f32.mrf.mxu0
        %2560 = vmatprep.mubr.bf16.mxu0 0
        %2561 = vmatmul.mubr.bf16.gmra.mxu0 %v2278
        %v2562 = vpop.f32.mrf.mxu0
        %v2563 = vadd.f32 %v2310, %v2562
        %v2564 = vpop.f32.mrf.mxu0
        %v2565 = vpop.f32.mrf.mxu0
        %v2566 = vadd.f32 %v2310, %v2565
        %v2567 = vpop.f32.mrf.mxu0
        %2568 = vmatprep.mubr.bf16.mxu0 0
        %2569 = vmatmul.mubr.bf16.gmra.mxu0 %v2279
        %v2570 = vpop.f32.mrf.mxu0
        %v2571 = vadd.f32 %v2310, %v2570
        %v2572 = vpop.f32.mrf.mxu0
        %v2573 = vpop.f32.mrf.mxu0
        %v2574 = vadd.f32 %v2310, %v2573
        %v2575 = vpop.f32.mrf.mxu0
        %2576 = vmatprep.mubr.bf16.mxu0 0
        %2577 = vmatmul.mubr.bf16.gmra.mxu0 %v2280
        %v2578 = vpop.f32.mrf.mxu0
        %v2579 = vadd.f32 %v2310, %v2578
        %v2580 = vpop.f32.mrf.mxu0
        %v2581 = vpop.f32.mrf.mxu0
        %v2582 = vadd.f32 %v2310, %v2581
        %v2583 = vpop.f32.mrf.mxu0
        %2584 = vmatprep.mubr.bf16.mxu0 0
        %2585 = vmatmul.mubr.bf16.gmra.mxu0 %v2281
        %v2586 = vpop.f32.mrf.mxu0
        %v2587 = vadd.f32 %v2310, %v2586
        %v2588 = vpop.f32.mrf.mxu0
        %v2589 = vpop.f32.mrf.mxu0
        %v2590 = vadd.f32 %v2310, %v2589
        %v2591 = vpop.f32.mrf.mxu0
        %2592 = vmatprep.mubr.bf16.mxu0 0
        %2593 = vmatmul.mubr.bf16.gmra.mxu0 %v2282
        %v2594 = vpop.f32.mrf.mxu0
        %v2595 = vadd.f32 %v2310, %v2594
        %v2596 = vpop.f32.mrf.mxu0
        %v2597 = vpop.f32.mrf.mxu0
        %v2598 = vadd.f32 %v2310, %v2597
        %v2599 = vpop.f32.mrf.mxu0
        %2600 = vmatprep.mubr.bf16.mxu0 0
        %2601 = vmatmul.mubr.bf16.gmra.mxu0 %v2283
        %v2602 = vpop.f32.mrf.mxu0
        %v2603 = vadd.f32 %v2310, %v2602
        %v2604 = vpop.f32.mrf.mxu0
        %v2605 = vpop.f32.mrf.mxu0
        %v2606 = vadd.f32 %v2310, %v2605
        %v2607 = vpop.f32.mrf.mxu0
        %2608 = vmatprep.mubr.bf16.mxu0 0
        %2609 = vmatmul.mubr.bf16.gmra.mxu0 %v2284
        %v2610 = vpop.f32.mrf.mxu0
        %v2611 = vadd.f32 %v2310, %v2610
        %v2612 = vpop.f32.mrf.mxu0
        %v2613 = vpop.f32.mrf.mxu0
        %v2614 = vadd.f32 %v2310, %v2613
        %v2615 = vpop.f32.mrf.mxu0
        %2616 = vmatprep.mubr.bf16.mxu0 0
        %2617 = vmatmul.mubr.bf16.gmra.mxu0 %v2285
        %v2618 = vpop.f32.mrf.mxu0
        %v2619 = vadd.f32 %v2310, %v2618
        %v2620 = vpop.f32.mrf.mxu0
        %v2621 = vpop.f32.mrf.mxu0
        %v2622 = vadd.f32 %v2310, %v2621
        %v2623 = vpop.f32.mrf.mxu0
        %2624 = vmatprep.mubr.bf16.mxu0 0
        %2625 = vmatmul.mubr.bf16.gmra.mxu0 %v2286
        %v2626 = vpop.f32.mrf.mxu0
        %v2627 = vadd.f32 %v2310, %v2626
        %v2628 = vpop.f32.mrf.mxu0
        %v2629 = vpop.f32.mrf.mxu0
        %v2630 = vadd.f32 %v2310, %v2629
        %v2631 = vpop.f32.mrf.mxu0
        %2632 = vmatprep.mubr.bf16.mxu0 0
        %2633 = vmatmul.mubr.bf16.gmra.mxu0 %v2287
        %v2634 = vpop.f32.mrf.mxu0
        %v2635 = vadd.f32 %v2310, %v2634
        %v2636 = vpop.f32.mrf.mxu0
        %v2637 = vpop.f32.mrf.mxu0
        %v2638 = vadd.f32 %v2310, %v2637
        %v2639 = vpop.f32.mrf.mxu0
        %2640 = vmatprep.mubr.bf16.mxu0 0
        %2641 = vmatmul.mubr.bf16.gmra.mxu0 %v2288
        %v2642 = vpop.f32.mrf.mxu0
        %v2643 = vadd.f32 %v2310, %v2642
        %v2644 = vpop.f32.mrf.mxu0
        %v2645 = vpop.f32.mrf.mxu0
        %v2646 = vadd.f32 %v2310, %v2645
        %v2647 = vpop.f32.mrf.mxu0
        %2648 = vdwg.mxu0
        %v2649 = vmax.f32 %v2395, 0.0
        %v2650 = vmax.f32 %v2398, 0.0
        %v2651 = vmax.f32 %v2403, 0.0
        %v2652 = vmax.f32 %v2406, 0.0
        %v2653 = vmax.f32 %v2411, 0.0
        %v2654 = vmax.f32 %v2414, 0.0
        %v2655 = vmax.f32 %v2419, 0.0
        %v2656 = vmax.f32 %v2422, 0.0
        %v2657 = vmax.f32 %v2427, 0.0
        %v2658 = vmax.f32 %v2430, 0.0
        %v2659 = vmax.f32 %v2435, 0.0
        %v2660 = vmax.f32 %v2438, 0.0
        %v2661 = vmax.f32 %v2443, 0.0
        %v2662 = vmax.f32 %v2446, 0.0
        %v2663 = vmax.f32 %v2451, 0.0
        %v2664 = vmax.f32 %v2454, 0.0
        %v2665 = vmax.f32 %v2459, 0.0
        %v2666 = vmax.f32 %v2462, 0.0
        %v2667 = vmax.f32 %v2467, 0.0
        %v2668 = vmax.f32 %v2470, 0.0
        %v2669 = vmax.f32 %v2475, 0.0
        %v2670 = vmax.f32 %v2478, 0.0
        %v2671 = vmax.f32 %v2483, 0.0
        %v2672 = vmax.f32 %v2486, 0.0
        %v2673 = vmax.f32 %v2491, 0.0
        %v2674 = vmax.f32 %v2494, 0.0
        %v2675 = vmax.f32 %v2499, 0.0
        %v2676 = vmax.f32 %v2502, 0.0
        %v2677 = vmax.f32 %v2507, 0.0
        %v2678 = vmax.f32 %v2510, 0.0
        %v2679 = vmax.f32 %v2515, 0.0
        %v2680 = vmax.f32 %v2518, 0.0
        %v2681 = vmax.f32 %v2523, 0.0
        %v2682 = vmax.f32 %v2526, 0.0
        %v2683 = vmax.f32 %v2531, 0.0
        %v2684 = vmax.f32 %v2534, 0.0
        %v2685 = vmax.f32 %v2539, 0.0
        %v2686 = vmax.f32 %v2542, 0.0
        %v2687 = vmax.f32 %v2547, 0.0
        %v2688 = vmax.f32 %v2550, 0.0
        %v2689 = vmax.f32 %v2555, 0.0
        %v2690 = vmax.f32 %v2558, 0.0
        %v2691 = vmax.f32 %v2563, 0.0
        %v2692 = vmax.f32 %v2566, 0.0
        %v2693 = vmax.f32 %v2571, 0.0
        %v2694 = vmax.f32 %v2574, 0.0
        %v2695 = vmax.f32 %v2579, 0.0
        %v2696 = vmax.f32 %v2582, 0.0
        %v2697 = vmax.f32 %v2587, 0.0
        %v2698 = vmax.f32 %v2590, 0.0
        %v2699 = vmax.f32 %v2595, 0.0
        %v2700 = vmax.f32 %v2598, 0.0
        %v2701 = vmax.f32 %v2603, 0.0
        %v2702 = vmax.f32 %v2606, 0.0
        %v2703 = vmax.f32 %v2611, 0.0
        %v2704 = vmax.f32 %v2614, 0.0
        %v2705 = vmax.f32 %v2619, 0.0
        %v2706 = vmax.f32 %v2622, 0.0
        %v2707 = vmax.f32 %v2627, 0.0
        %v2708 = vmax.f32 %v2630, 0.0
        %v2709 = vmax.f32 %v2635, 0.0
        %v2710 = vmax.f32 %v2638, 0.0
        %v2711 = vmax.f32 %v2643, 0.0
        %v2712 = vmax.f32 %v2646, 0.0
        %v2713 = vpack.c.bf16 %v2650, %v2649
        %v2714 = vpack.c.bf16 %v2652, %v2651
        %v2715 = vpack.c.bf16 %v2654, %v2653
        %v2716 = vpack.c.bf16 %v2656, %v2655
        %v2717 = vpack.c.bf16 %v2658, %v2657
        %v2718 = vpack.c.bf16 %v2660, %v2659
        %v2719 = vpack.c.bf16 %v2662, %v2661
        %v2720 = vpack.c.bf16 %v2664, %v2663
        %v2721 = vpack.c.bf16 %v2666, %v2665
        %v2722 = vpack.c.bf16 %v2668, %v2667
        %v2723 = vpack.c.bf16 %v2670, %v2669
        %v2724 = vpack.c.bf16 %v2672, %v2671
        %v2725 = vpack.c.bf16 %v2674, %v2673
        %v2726 = vpack.c.bf16 %v2676, %v2675
        %v2727 = vpack.c.bf16 %v2678, %v2677
        %v2728 = vpack.c.bf16 %v2680, %v2679
        %v2729 = vpack.c.bf16 %v2682, %v2681
        %v2730 = vpack.c.bf16 %v2684, %v2683
        %v2731 = vpack.c.bf16 %v2686, %v2685
        %v2732 = vpack.c.bf16 %v2688, %v2687
        %v2733 = vpack.c.bf16 %v2690, %v2689
        %v2734 = vpack.c.bf16 %v2692, %v2691
        %v2735 = vpack.c.bf16 %v2694, %v2693
        %v2736 = vpack.c.bf16 %v2696, %v2695
        %v2737 = vpack.c.bf16 %v2698, %v2697
        %v2738 = vpack.c.bf16 %v2700, %v2699
        %v2739 = vpack.c.bf16 %v2702, %v2701
        %v2740 = vpack.c.bf16 %v2704, %v2703
        %v2741 = vpack.c.bf16 %v2706, %v2705
        %v2742 = vpack.c.bf16 %v2708, %v2707
        %v2743 = vpack.c.bf16 %v2710, %v2709
        %v2744 = vpack.c.bf16 %v2712, %v2711
        %v2745 = vld [vmem:[#allocation7] sm:$0xf]
        %v2746 = vld [vmem:[#allocation7 + $0x4] sm:$0xf]
        %v2747 = vld [vmem:[#allocation7 + $0x8] sm:$0xf]
        %v2748 = vld [vmem:[#allocation7 + $0xc] sm:$0xf]
        %v2749 = vld [vmem:[#allocation7 + $0x10] sm:$0xf]
        %v2750 = vld [vmem:[#allocation7 + $0x14] sm:$0xf]
        %v2751 = vld [vmem:[#allocation7 + $0x18] sm:$0xf]
        %v2752 = vld [vmem:[#allocation7 + $0x1c] sm:$0xf]
        %v2753 = vld [vmem:[#allocation7 + $0x20] sm:$0xf]
        %v2754 = vld [vmem:[#allocation7 + $0x24] sm:$0xf]
        %v2755 = vld [vmem:[#allocation7 + $0x28] sm:$0xf]
        %v2756 = vld [vmem:[#allocation7 + $0x2c] sm:$0xf]
        %v2757 = vld [vmem:[#allocation7 + $0x30] sm:$0xf]
        %v2758 = vld [vmem:[#allocation7 + $0x34] sm:$0xf]
        %v2759 = vld [vmem:[#allocation7 + $0x38] sm:$0xf]
        %v2760 = vld [vmem:[#allocation7 + $0x3c] sm:$0xf]
        %v2761 = vld [vmem:[%s8] sm:$0x1]
        %v2763 = vlaneseq
        %v2764 = vshrl.u32 %v2763, 7
        %v2765 = vsub.s32 0, %v2764
        %v2766 = vrot.slane %v2761, %v2765
        %v2784 = vunpack.c.l.b16 %v2745
        %v2785 = vunpack.c.l.b16 %v2746
        %v2786 = vunpack.c.l.b16 %v2747
        %v2787 = vunpack.c.l.b16 %v2748
        %v2788 = vunpack.c.l.b16 %v2749
        %v2789 = vunpack.c.l.b16 %v2750
        %v2790 = vunpack.c.l.b16 %v2751
        %v2791 = vunpack.c.l.b16 %v2752
        %v2792 = vunpack.c.l.b16 %v2753
        %v2793 = vunpack.c.l.b16 %v2754
        %v2794 = vunpack.c.l.b16 %v2755
        %v2795 = vunpack.c.l.b16 %v2756
        %v2796 = vunpack.c.l.b16 %v2757
        %v2797 = vunpack.c.l.b16 %v2758
        %v2798 = vunpack.c.l.b16 %v2759
        %v2799 = vunpack.c.l.b16 %v2760
        %v2800 = vpack.c.b16 %v2785, %v2784
        %v2801 = vpack.c.b16 %v2787, %v2786
        %v2802 = vpack.c.b16 %v2789, %v2788
        %v2803 = vpack.c.b16 %v2791, %v2790
        %v2804 = vpack.c.b16 %v2793, %v2792
        %v2805 = vpack.c.b16 %v2795, %v2794
        %v2806 = vpack.c.b16 %v2797, %v2796
        %v2807 = vpack.c.b16 %v2799, %v2798
        %2816 = vmatprep.subr.bf16.mxu0 0
        %2817 = vmatpush1.bf16.msra.mxu0 %v2807
        %2818 = vmatprep.subr.bf16.mxu0 0
        %2819 = vmatpush1.bf16.msra.mxu0 %v2806
        %2820 = vmatprep.subr.bf16.mxu0 0
        %2821 = vmatpush1.bf16.msra.mxu0 %v2805
        %2822 = vmatprep.subr.bf16.mxu0 0
        %2823 = vmatpush1.bf16.msra.mxu0 %v2804
        %2824 = vmatprep.subr.bf16.mxu0 0
        %2825 = vmatpush1.bf16.msra.mxu0 %v2803
        %2826 = vmatprep.subr.bf16.mxu0 0
        %2827 = vmatpush1.bf16.msra.mxu0 %v2802
        %2828 = vmatprep.subr.bf16.mxu0 0
        %2829 = vmatpush1.bf16.msra.mxu0 %v2801
        %2830 = vmatprep.subr.bf16.mxu0 0
        %2831 = vmatpush1.bf16.msra.mxu0 %v2800
        %2832 = vmatprep.subr.bf16.mxu0 0
        %2833 = vmatpush2.bf16.msra.mxu0 0
        %2834 = vmatprep.subr.bf16.mxu0 0
        %2835 = vmatpush2.bf16.msra.mxu0 0
        %2836 = vmatprep.subr.bf16.mxu0 0
        %2837 = vmatpush2.bf16.msra.mxu0 0
        %2838 = vmatprep.subr.bf16.mxu0 0
        %2839 = vmatpush2.bf16.msra.mxu0 0
        %2840 = vmatprep.subr.bf16.mxu0 0
        %2841 = vmatpush2.bf16.msra.mxu0 0
        %2842 = vmatprep.subr.bf16.mxu0 0
        %2843 = vmatpush2.bf16.msra.mxu0 0
        %2844 = vmatprep.subr.bf16.mxu0 0
        %2845 = vmatpush2.bf16.msra.mxu0 0
        %2846 = vmatprep.subr.bf16.mxu0 0
        %2847 = vmatpush2.bf16.msra.mxu0 0
        %2848 = vmatprep.mubr.bf16.mxu0 0
        %2849 = vmatmul.mubr.bf16.gmra.mxu0 %v2713
        %v2850 = vpop.f32.mrf.mxu0
        %v2851 = vadd.f32 %v2766, %v2850
        %v2852 = vpop.f32.mrf.mxu0
        %v2853 = vpop.f32.mrf.mxu0
        %v2854 = vadd.f32 %v2766, %v2853
        %v2855 = vpop.f32.mrf.mxu0
        %2856 = vmatprep.mubr.bf16.mxu0 0
        %2857 = vmatmul.mubr.bf16.gmra.mxu0 %v2714
        %v2858 = vpop.f32.mrf.mxu0
        %v2859 = vadd.f32 %v2766, %v2858
        %v2860 = vpop.f32.mrf.mxu0
        %v2861 = vpop.f32.mrf.mxu0
        %v2862 = vadd.f32 %v2766, %v2861
        %v2863 = vpop.f32.mrf.mxu0
        %2864 = vmatprep.mubr.bf16.mxu0 0
        %2865 = vmatmul.mubr.bf16.gmra.mxu0 %v2715
        %v2866 = vpop.f32.mrf.mxu0
        %v2867 = vadd.f32 %v2766, %v2866
        %v2868 = vpop.f32.mrf.mxu0
        %v2869 = vpop.f32.mrf.mxu0
        %v2870 = vadd.f32 %v2766, %v2869
        %v2871 = vpop.f32.mrf.mxu0
        %2872 = vmatprep.mubr.bf16.mxu0 0
        %2873 = vmatmul.mubr.bf16.gmra.mxu0 %v2716
        %v2874 = vpop.f32.mrf.mxu0
        %v2875 = vadd.f32 %v2766, %v2874
        %v2876 = vpop.f32.mrf.mxu0
        %v2877 = vpop.f32.mrf.mxu0
        %v2878 = vadd.f32 %v2766, %v2877
        %v2879 = vpop.f32.mrf.mxu0
        %2880 = vmatprep.mubr.bf16.mxu0 0
        %2881 = vmatmul.mubr.bf16.gmra.mxu0 %v2717
        %v2882 = vpop.f32.mrf.mxu0
        %v2883 = vadd.f32 %v2766, %v2882
        %v2884 = vpop.f32.mrf.mxu0
        %v2885 = vpop.f32.mrf.mxu0
        %v2886 = vadd.f32 %v2766, %v2885
        %v2887 = vpop.f32.mrf.mxu0
        %2888 = vmatprep.mubr.bf16.mxu0 0
        %2889 = vmatmul.mubr.bf16.gmra.mxu0 %v2718
        %v2890 = vpop.f32.mrf.mxu0
        %v2891 = vadd.f32 %v2766, %v2890
        %v2892 = vpop.f32.mrf.mxu0
        %v2893 = vpop.f32.mrf.mxu0
        %v2894 = vadd.f32 %v2766, %v2893
        %v2895 = vpop.f32.mrf.mxu0
        %2896 = vmatprep.mubr.bf16.mxu0 0
        %2897 = vmatmul.mubr.bf16.gmra.mxu0 %v2719
        %v2898 = vpop.f32.mrf.mxu0
        %v2899 = vadd.f32 %v2766, %v2898
        %v2900 = vpop.f32.mrf.mxu0
        %v2901 = vpop.f32.mrf.mxu0
        %v2902 = vadd.f32 %v2766, %v2901
        %v2903 = vpop.f32.mrf.mxu0
        %2904 = vmatprep.mubr.bf16.mxu0 0
        %2905 = vmatmul.mubr.bf16.gmra.mxu0 %v2720
        %v2906 = vpop.f32.mrf.mxu0
        %v2907 = vadd.f32 %v2766, %v2906
        %v2908 = vpop.f32.mrf.mxu0
        %v2909 = vpop.f32.mrf.mxu0
        %v2910 = vadd.f32 %v2766, %v2909
        %v2911 = vpop.f32.mrf.mxu0
        %2912 = vmatprep.mubr.bf16.mxu0 0
        %2913 = vmatmul.mubr.bf16.gmra.mxu0 %v2721
        %v2914 = vpop.f32.mrf.mxu0
        %v2915 = vadd.f32 %v2766, %v2914
        %v2916 = vpop.f32.mrf.mxu0
        %v2917 = vpop.f32.mrf.mxu0
        %v2918 = vadd.f32 %v2766, %v2917
        %v2919 = vpop.f32.mrf.mxu0
        %2920 = vmatprep.mubr.bf16.mxu0 0
        %2921 = vmatmul.mubr.bf16.gmra.mxu0 %v2722
        %v2922 = vpop.f32.mrf.mxu0
        %v2923 = vadd.f32 %v2766, %v2922
        %v2924 = vpop.f32.mrf.mxu0
        %v2925 = vpop.f32.mrf.mxu0
        %v2926 = vadd.f32 %v2766, %v2925
        %v2927 = vpop.f32.mrf.mxu0
        %2928 = vmatprep.mubr.bf16.mxu0 0
        %2929 = vmatmul.mubr.bf16.gmra.mxu0 %v2723
        %v2930 = vpop.f32.mrf.mxu0
        %v2931 = vadd.f32 %v2766, %v2930
        %v2932 = vpop.f32.mrf.mxu0
        %v2933 = vpop.f32.mrf.mxu0
        %v2934 = vadd.f32 %v2766, %v2933
        %v2935 = vpop.f32.mrf.mxu0
        %2936 = vmatprep.mubr.bf16.mxu0 0
        %2937 = vmatmul.mubr.bf16.gmra.mxu0 %v2724
        %v2938 = vpop.f32.mrf.mxu0
        %v2939 = vadd.f32 %v2766, %v2938
        %v2940 = vpop.f32.mrf.mxu0
        %v2941 = vpop.f32.mrf.mxu0
        %v2942 = vadd.f32 %v2766, %v2941
        %v2943 = vpop.f32.mrf.mxu0
        %2944 = vmatprep.mubr.bf16.mxu0 0
        %2945 = vmatmul.mubr.bf16.gmra.mxu0 %v2725
        %v2946 = vpop.f32.mrf.mxu0
        %v2947 = vadd.f32 %v2766, %v2946
        %v2948 = vpop.f32.mrf.mxu0
        %v2949 = vpop.f32.mrf.mxu0
        %v2950 = vadd.f32 %v2766, %v2949
        %v2951 = vpop.f32.mrf.mxu0
        %2952 = vmatprep.mubr.bf16.mxu0 0
        %2953 = vmatmul.mubr.bf16.gmra.mxu0 %v2726
        %v2954 = vpop.f32.mrf.mxu0
        %v2955 = vadd.f32 %v2766, %v2954
        %v2956 = vpop.f32.mrf.mxu0
        %v2957 = vpop.f32.mrf.mxu0
        %v2958 = vadd.f32 %v2766, %v2957
        %v2959 = vpop.f32.mrf.mxu0
        %2960 = vmatprep.mubr.bf16.mxu0 0
        %2961 = vmatmul.mubr.bf16.gmra.mxu0 %v2727
        %v2962 = vpop.f32.mrf.mxu0
        %v2963 = vadd.f32 %v2766, %v2962
        %v2964 = vpop.f32.mrf.mxu0
        %v2965 = vpop.f32.mrf.mxu0
        %v2966 = vadd.f32 %v2766, %v2965
        %v2967 = vpop.f32.mrf.mxu0
        %2968 = vmatprep.mubr.bf16.mxu0 0
        %2969 = vmatmul.mubr.bf16.gmra.mxu0 %v2728
        %v2970 = vpop.f32.mrf.mxu0
        %v2971 = vadd.f32 %v2766, %v2970
        %v2972 = vpop.f32.mrf.mxu0
        %v2973 = vpop.f32.mrf.mxu0
        %v2974 = vadd.f32 %v2766, %v2973
        %v2975 = vpop.f32.mrf.mxu0
        %2976 = vmatprep.mubr.bf16.mxu0 0
        %2977 = vmatmul.mubr.bf16.gmra.mxu0 %v2729
        %v2978 = vpop.f32.mrf.mxu0
        %v2979 = vadd.f32 %v2766, %v2978
        %v2980 = vpop.f32.mrf.mxu0
        %v2981 = vpop.f32.mrf.mxu0
        %v2982 = vadd.f32 %v2766, %v2981
        %v2983 = vpop.f32.mrf.mxu0
        %2984 = vmatprep.mubr.bf16.mxu0 0
        %2985 = vmatmul.mubr.bf16.gmra.mxu0 %v2730
        %v2986 = vpop.f32.mrf.mxu0
        %v2987 = vadd.f32 %v2766, %v2986
        %v2988 = vpop.f32.mrf.mxu0
        %v2989 = vpop.f32.mrf.mxu0
        %v2990 = vadd.f32 %v2766, %v2989
        %v2991 = vpop.f32.mrf.mxu0
        %2992 = vmatprep.mubr.bf16.mxu0 0
        %2993 = vmatmul.mubr.bf16.gmra.mxu0 %v2731
        %v2994 = vpop.f32.mrf.mxu0
        %v2995 = vadd.f32 %v2766, %v2994
        %v2996 = vpop.f32.mrf.mxu0
        %v2997 = vpop.f32.mrf.mxu0
        %v2998 = vadd.f32 %v2766, %v2997
        %v2999 = vpop.f32.mrf.mxu0
        %3000 = vmatprep.mubr.bf16.mxu0 0
        %3001 = vmatmul.mubr.bf16.gmra.mxu0 %v2732
        %v3002 = vpop.f32.mrf.mxu0
        %v3003 = vadd.f32 %v2766, %v3002
        %v3004 = vpop.f32.mrf.mxu0
        %v3005 = vpop.f32.mrf.mxu0
        %v3006 = vadd.f32 %v2766, %v3005
        %v3007 = vpop.f32.mrf.mxu0
        %3008 = vmatprep.mubr.bf16.mxu0 0
        %3009 = vmatmul.mubr.bf16.gmra.mxu0 %v2733
        %v3010 = vpop.f32.mrf.mxu0
        %v3011 = vadd.f32 %v2766, %v3010
        %v3012 = vpop.f32.mrf.mxu0
        %v3013 = vpop.f32.mrf.mxu0
        %v3014 = vadd.f32 %v2766, %v3013
        %v3015 = vpop.f32.mrf.mxu0
        %3016 = vmatprep.mubr.bf16.mxu0 0
        %3017 = vmatmul.mubr.bf16.gmra.mxu0 %v2734
        %v3018 = vpop.f32.mrf.mxu0
        %v3019 = vadd.f32 %v2766, %v3018
        %v3020 = vpop.f32.mrf.mxu0
        %v3021 = vpop.f32.mrf.mxu0
        %v3022 = vadd.f32 %v2766, %v3021
        %v3023 = vpop.f32.mrf.mxu0
        %3024 = vmatprep.mubr.bf16.mxu0 0
        %3025 = vmatmul.mubr.bf16.gmra.mxu0 %v2735
        %v3026 = vpop.f32.mrf.mxu0
        %v3027 = vadd.f32 %v2766, %v3026
        %v3028 = vpop.f32.mrf.mxu0
        %v3029 = vpop.f32.mrf.mxu0
        %v3030 = vadd.f32 %v2766, %v3029
        %v3031 = vpop.f32.mrf.mxu0
        %3032 = vmatprep.mubr.bf16.mxu0 0
        %3033 = vmatmul.mubr.bf16.gmra.mxu0 %v2736
        %v3034 = vpop.f32.mrf.mxu0
        %v3035 = vadd.f32 %v2766, %v3034
        %v3036 = vpop.f32.mrf.mxu0
        %v3037 = vpop.f32.mrf.mxu0
        %v3038 = vadd.f32 %v2766, %v3037
        %v3039 = vpop.f32.mrf.mxu0
        %3040 = vmatprep.mubr.bf16.mxu0 0
        %3041 = vmatmul.mubr.bf16.gmra.mxu0 %v2737
        %v3042 = vpop.f32.mrf.mxu0
        %v3043 = vadd.f32 %v2766, %v3042
        %v3044 = vpop.f32.mrf.mxu0
        %v3045 = vpop.f32.mrf.mxu0
        %v3046 = vadd.f32 %v2766, %v3045
        %v3047 = vpop.f32.mrf.mxu0
        %3048 = vmatprep.mubr.bf16.mxu0 0
        %3049 = vmatmul.mubr.bf16.gmra.mxu0 %v2738
        %v3050 = vpop.f32.mrf.mxu0
        %v3051 = vadd.f32 %v2766, %v3050
        %v3052 = vpop.f32.mrf.mxu0
        %v3053 = vpop.f32.mrf.mxu0
        %v3054 = vadd.f32 %v2766, %v3053
        %v3055 = vpop.f32.mrf.mxu0
        %3056 = vmatprep.mubr.bf16.mxu0 0
        %3057 = vmatmul.mubr.bf16.gmra.mxu0 %v2739
        %v3058 = vpop.f32.mrf.mxu0
        %v3059 = vadd.f32 %v2766, %v3058
        %v3060 = vpop.f32.mrf.mxu0
        %v3061 = vpop.f32.mrf.mxu0
        %v3062 = vadd.f32 %v2766, %v3061
        %v3063 = vpop.f32.mrf.mxu0
        %3064 = vmatprep.mubr.bf16.mxu0 0
        %3065 = vmatmul.mubr.bf16.gmra.mxu0 %v2740
        %v3066 = vpop.f32.mrf.mxu0
        %v3067 = vadd.f32 %v2766, %v3066
        %v3068 = vpop.f32.mrf.mxu0
        %v3069 = vpop.f32.mrf.mxu0
        %v3070 = vadd.f32 %v2766, %v3069
        %v3071 = vpop.f32.mrf.mxu0
        %3072 = vmatprep.mubr.bf16.mxu0 0
        %3073 = vmatmul.mubr.bf16.gmra.mxu0 %v2741
        %v3074 = vpop.f32.mrf.mxu0
        %v3075 = vadd.f32 %v2766, %v3074
        %v3076 = vpop.f32.mrf.mxu0
        %v3077 = vpop.f32.mrf.mxu0
        %v3078 = vadd.f32 %v2766, %v3077
        %v3079 = vpop.f32.mrf.mxu0
        %3080 = vmatprep.mubr.bf16.mxu0 0
        %3081 = vmatmul.mubr.bf16.gmra.mxu0 %v2742
        %v3082 = vpop.f32.mrf.mxu0
        %v3083 = vadd.f32 %v2766, %v3082
        %v3084 = vpop.f32.mrf.mxu0
        %v3085 = vpop.f32.mrf.mxu0
        %v3086 = vadd.f32 %v2766, %v3085
        %v3087 = vpop.f32.mrf.mxu0
        %3088 = vmatprep.mubr.bf16.mxu0 0
        %3089 = vmatmul.mubr.bf16.gmra.mxu0 %v2743
        %v3090 = vpop.f32.mrf.mxu0
        %v3091 = vadd.f32 %v2766, %v3090
        %v3092 = vpop.f32.mrf.mxu0
        %v3093 = vpop.f32.mrf.mxu0
        %v3094 = vadd.f32 %v2766, %v3093
        %v3095 = vpop.f32.mrf.mxu0
        %3096 = vmatprep.mubr.bf16.mxu0 0
        %3097 = vmatmul.mubr.bf16.gmra.mxu0 %v2744
        %v3098 = vpop.f32.mrf.mxu0
        %v3099 = vadd.f32 %v2766, %v3098
        %v3100 = vpop.f32.mrf.mxu0
        %v3101 = vpop.f32.mrf.mxu0
        %v3102 = vadd.f32 %v2766, %v3101
        %v3103 = vpop.f32.mrf.mxu0
        %3104 = vdwg.mxu0
        %v3105 = vmax.f32 %v2851, 0.0
        %v3106 = vmax.f32 %v2854, 0.0
        %v3107 = vmax.f32 %v2859, 0.0
        %v3108 = vmax.f32 %v2862, 0.0
        %v3109 = vmax.f32 %v2867, 0.0
        %v3110 = vmax.f32 %v2870, 0.0
        %v3111 = vmax.f32 %v2875, 0.0
        %v3112 = vmax.f32 %v2878, 0.0
        %v3113 = vmax.f32 %v2883, 0.0
        %v3114 = vmax.f32 %v2886, 0.0
        %v3115 = vmax.f32 %v2891, 0.0
        %v3116 = vmax.f32 %v2894, 0.0
        %v3117 = vmax.f32 %v2899, 0.0
        %v3118 = vmax.f32 %v2902, 0.0
        %v3119 = vmax.f32 %v2907, 0.0
        %v3120 = vmax.f32 %v2910, 0.0
        %v3121 = vmax.f32 %v2915, 0.0
        %v3122 = vmax.f32 %v2918, 0.0
        %v3123 = vmax.f32 %v2923, 0.0
        %v3124 = vmax.f32 %v2926, 0.0
        %v3125 = vmax.f32 %v2931, 0.0
        %v3126 = vmax.f32 %v2934, 0.0
        %v3127 = vmax.f32 %v2939, 0.0
        %v3128 = vmax.f32 %v2942, 0.0
        %v3129 = vmax.f32 %v2947, 0.0
        %v3130 = vmax.f32 %v2950, 0.0
        %v3131 = vmax.f32 %v2955, 0.0
        %v3132 = vmax.f32 %v2958, 0.0
        %v3133 = vmax.f32 %v2963, 0.0
        %v3134 = vmax.f32 %v2966, 0.0
        %v3135 = vmax.f32 %v2971, 0.0
        %v3136 = vmax.f32 %v2974, 0.0
        %v3137 = vmax.f32 %v2979, 0.0
        %v3138 = vmax.f32 %v2982, 0.0
        %v3139 = vmax.f32 %v2987, 0.0
        %v3140 = vmax.f32 %v2990, 0.0
        %v3141 = vmax.f32 %v2995, 0.0
        %v3142 = vmax.f32 %v2998, 0.0
        %v3143 = vmax.f32 %v3003, 0.0
        %v3144 = vmax.f32 %v3006, 0.0
        %v3145 = vmax.f32 %v3011, 0.0
        %v3146 = vmax.f32 %v3014, 0.0
        %v3147 = vmax.f32 %v3019, 0.0
        %v3148 = vmax.f32 %v3022, 0.0
        %v3149 = vmax.f32 %v3027, 0.0
        %v3150 = vmax.f32 %v3030, 0.0
        %v3151 = vmax.f32 %v3035, 0.0
        %v3152 = vmax.f32 %v3038, 0.0
        %v3153 = vmax.f32 %v3043, 0.0
        %v3154 = vmax.f32 %v3046, 0.0
        %v3155 = vmax.f32 %v3051, 0.0
        %v3156 = vmax.f32 %v3054, 0.0
        %v3157 = vmax.f32 %v3059, 0.0
        %v3158 = vmax.f32 %v3062, 0.0
        %v3159 = vmax.f32 %v3067, 0.0
        %v3160 = vmax.f32 %v3070, 0.0
        %v3161 = vmax.f32 %v3075, 0.0
        %v3162 = vmax.f32 %v3078, 0.0
        %v3163 = vmax.f32 %v3083, 0.0
        %v3164 = vmax.f32 %v3086, 0.0
        %v3165 = vmax.f32 %v3091, 0.0
        %v3166 = vmax.f32 %v3094, 0.0
        %v3167 = vmax.f32 %v3099, 0.0
        %v3168 = vmax.f32 %v3102, 0.0
        %v3169 = vmax.f32 %v3105, %v3109
        %v3170 = vmax.f32 %v3106, %v3110
        %v3171 = vmax.f32 %v3107, %v3111
        %v3172 = vmax.f32 %v3108, %v3112
        %v3173 = vmax.f32 %v3113, %v3117
        %v3174 = vmax.f32 %v3114, %v3118
        %v3175 = vmax.f32 %v3115, %v3119
        %v3176 = vmax.f32 %v3116, %v3120
        %v3177 = vmax.f32 %v3121, %v3125
        %v3178 = vmax.f32 %v3122, %v3126
        %v3179 = vmax.f32 %v3123, %v3127
        %v3180 = vmax.f32 %v3124, %v3128
        %v3181 = vmax.f32 %v3129, %v3133
        %v3182 = vmax.f32 %v3130, %v3134
        %v3183 = vmax.f32 %v3131, %v3135
        %v3184 = vmax.f32 %v3132, %v3136
        %v3185 = vmax.f32 %v3137, %v3141
        %v3186 = vmax.f32 %v3138, %v3142
        %v3187 = vmax.f32 %v3139, %v3143
        %v3188 = vmax.f32 %v3140, %v3144
        %v3189 = vmax.f32 %v3145, %v3149
        %v3190 = vmax.f32 %v3146, %v3150
        %v3191 = vmax.f32 %v3147, %v3151
        %v3192 = vmax.f32 %v3148, %v3152
        %v3193 = vmax.f32 %v3153, %v3157
        %v3194 = vmax.f32 %v3154, %v3158
        %v3195 = vmax.f32 %v3155, %v3159
        %v3196 = vmax.f32 %v3156, %v3160
        %v3197 = vmax.f32 %v3161, %v3165
        %v3198 = vmax.f32 %v3162, %v3166
        %v3199 = vmax.f32 %v3163, %v3167
        %v3200 = vmax.f32 %v3164, %v3168
        %v3201 = vmax.f32 %v3169, %v3173
        %v3202 = vmax.f32 %v3170, %v3174
        %v3203 = vmax.f32 %v3171, %v3175
        %v3204 = vmax.f32 %v3172, %v3176
        %v3205 = vmax.f32 %v3177, %v3181
        %v3206 = vmax.f32 %v3178, %v3182
        %v3207 = vmax.f32 %v3179, %v3183
        %v3208 = vmax.f32 %v3180, %v3184
        %v3209 = vmax.f32 %v3185, %v3189
        %v3210 = vmax.f32 %v3186, %v3190
        %v3211 = vmax.f32 %v3187, %v3191
        %v3212 = vmax.f32 %v3188, %v3192
        %v3213 = vmax.f32 %v3193, %v3197
        %v3214 = vmax.f32 %v3194, %v3198
        %v3215 = vmax.f32 %v3195, %v3199
        %v3216 = vmax.f32 %v3196, %v3200
        %v3217 = vmax.f32 %v3201, %v3205
        %v3218 = vmax.f32 %v3202, %v3206
        %v3219 = vmax.f32 %v3203, %v3207
        %v3220 = vmax.f32 %v3204, %v3208
        %v3221 = vmax.f32 %v3209, %v3213
        %v3222 = vmax.f32 %v3210, %v3214
        %v3223 = vmax.f32 %v3211, %v3215
        %v3224 = vmax.f32 %v3212, %v3216
        %v3225 = vmax.f32 %v3217, %v3221
        %v3226 = vmax.f32 %v3218, %v3222
        %v3227 = vmax.f32 %v3219, %v3223
        %v3228 = vmax.f32 %v3220, %v3224
        %3229 = vst [vmem:[%s648] sm:$0xff] %v3225
        %3230 = vst [vmem:[%s648 + $0x8] sm:$0xff] %v3226
        %3231 = vst [vmem:[%s648 + $0x10] sm:$0xff] %v3227
        %3232 = vst [vmem:[%s648 + $0x18] sm:$0xff] %v3228
        %v3233 = vpack.c.bf16 %v3226, %v3225
        %v3234 = vpack.c.bf16 %v3228, %v3227
        %v3235 = vld [vmem:[#allocation8] sm:$0xf]
        %v3236 = vld [vmem:[#allocation8 + $0x4] sm:$0xf]
        %v3237 = vld [vmem:[#allocation8 + $0x8] sm:$0xf]
        %v3238 = vld [vmem:[#allocation8 + $0xc] sm:$0xf]
        %v3239 = vld [vmem:[#allocation8 + $0x10] sm:$0xf]
        %v3240 = vld [vmem:[#allocation8 + $0x14] sm:$0xf]
        %v3241 = vld [vmem:[#allocation8 + $0x18] sm:$0xf]
        %v3242 = vld [vmem:[#allocation8 + $0x1c] sm:$0xf]
        %v3243 = vld [vmem:[#allocation8 + $0x20] sm:$0xf]
        %v3244 = vld [vmem:[#allocation8 + $0x24] sm:$0xf]
        %v3245 = vld [vmem:[#allocation8 + $0x28] sm:$0xf]
        %v3246 = vld [vmem:[#allocation8 + $0x2c] sm:$0xf]
        %v3247 = vld [vmem:[#allocation8 + $0x30] sm:$0xf]
        %v3248 = vld [vmem:[#allocation8 + $0x34] sm:$0xf]
        %v3249 = vld [vmem:[#allocation8 + $0x38] sm:$0xf]
        %v3250 = vld [vmem:[#allocation8 + $0x3c] sm:$0xf]
        %v3251 = vld [vmem:[%s10] sm:$0x1]
        %v3253 = vlaneseq
        %v3254 = vshrl.u32 %v3253, 7
        %v3255 = vsub.s32 0, %v3254
        %v3256 = vrot.slane %v3251, %v3255
        %v3274 = vunpack.c.l.b16 %v3235
        %v3275 = vunpack.c.l.b16 %v3236
        %v3276 = vunpack.c.l.b16 %v3237
        %v3277 = vunpack.c.l.b16 %v3238
        %v3278 = vunpack.c.l.b16 %v3239
        %v3279 = vunpack.c.l.b16 %v3240
        %v3280 = vunpack.c.l.b16 %v3241
        %v3281 = vunpack.c.l.b16 %v3242
        %v3282 = vunpack.c.l.b16 %v3243
        %v3283 = vunpack.c.l.b16 %v3244
        %v3284 = vunpack.c.l.b16 %v3245
        %v3285 = vunpack.c.l.b16 %v3246
        %v3286 = vunpack.c.l.b16 %v3247
        %v3287 = vunpack.c.l.b16 %v3248
        %v3288 = vunpack.c.l.b16 %v3249
        %v3289 = vunpack.c.l.b16 %v3250
        %v3290 = vpack.c.b16 %v3275, %v3274
        %v3291 = vpack.c.b16 %v3277, %v3276
        %v3292 = vpack.c.b16 %v3279, %v3278
        %v3293 = vpack.c.b16 %v3281, %v3280
        %v3294 = vpack.c.b16 %v3283, %v3282
        %v3295 = vpack.c.b16 %v3285, %v3284
        %v3296 = vpack.c.b16 %v3287, %v3286
        %v3297 = vpack.c.b16 %v3289, %v3288
        %3306 = vmatprep.subr.bf16.mxu0 0
        %3307 = vmatpush1.bf16.msra.mxu0 %v3297
        %3308 = vmatprep.subr.bf16.mxu0 0
        %3309 = vmatpush1.bf16.msra.mxu0 %v3296
        %3310 = vmatprep.subr.bf16.mxu0 0
        %3311 = vmatpush1.bf16.msra.mxu0 %v3295
        %3312 = vmatprep.subr.bf16.mxu0 0
        %3313 = vmatpush1.bf16.msra.mxu0 %v3294
        %3314 = vmatprep.subr.bf16.mxu0 0
        %3315 = vmatpush1.bf16.msra.mxu0 %v3293
        %3316 = vmatprep.subr.bf16.mxu0 0
        %3317 = vmatpush1.bf16.msra.mxu0 %v3292
        %3318 = vmatprep.subr.bf16.mxu0 0
        %3319 = vmatpush1.bf16.msra.mxu0 %v3291
        %3320 = vmatprep.subr.bf16.mxu0 0
        %3321 = vmatpush1.bf16.msra.mxu0 %v3290
        %3322 = vmatprep.subr.bf16.mxu0 0
        %3323 = vmatpush2.bf16.msra.mxu0 0
        %3324 = vmatprep.subr.bf16.mxu0 0
        %3325 = vmatpush2.bf16.msra.mxu0 0
        %3326 = vmatprep.subr.bf16.mxu0 0
        %3327 = vmatpush2.bf16.msra.mxu0 0
        %3328 = vmatprep.subr.bf16.mxu0 0
        %3329 = vmatpush2.bf16.msra.mxu0 0
        %3330 = vmatprep.subr.bf16.mxu0 0
        %3331 = vmatpush2.bf16.msra.mxu0 0
        %3332 = vmatprep.subr.bf16.mxu0 0
        %3333 = vmatpush2.bf16.msra.mxu0 0
        %3334 = vmatprep.subr.bf16.mxu0 0
        %3335 = vmatpush2.bf16.msra.mxu0 0
        %3336 = vmatprep.subr.bf16.mxu0 0
        %3337 = vmatpush2.bf16.msra.mxu0 0
        %3338 = vmatprep.mubr.bf16.mxu0 0
        %3339 = vmatmul.mubr.bf16.gmra.mxu0 %v3233
        %v3340 = vpop.f32.mrf.mxu0
        %v3341 = vadd.f32 %v3256, %v3340
        %v3342 = vpop.f32.mrf.mxu0
        %v3343 = vpop.f32.mrf.mxu0
        %v3344 = vadd.f32 %v3256, %v3343
        %v3345 = vpop.f32.mrf.mxu0
        %3346 = vmatprep.mubr.bf16.mxu0 0
        %3347 = vmatmul.mubr.bf16.gmra.mxu0 %v3234
        %v3348 = vpop.f32.mrf.mxu0
        %v3349 = vadd.f32 %v3256, %v3348
        %v3350 = vpop.f32.mrf.mxu0
        %v3351 = vpop.f32.mrf.mxu0
        %v3352 = vadd.f32 %v3256, %v3351
        %v3353 = vpop.f32.mrf.mxu0
        %3354 = vdwg.mxu0
        %v3355 = vmax.f32 %v3341, 0.0
        %v3356 = vmax.f32 %v3344, 0.0
        %v3357 = vmax.f32 %v3349, 0.0
        %v3358 = vmax.f32 %v3352, 0.0
        %v3359 = vpack.c.bf16 %v3356, %v3355
        %v3360 = vpack.c.bf16 %v3358, %v3357
        %v3361 = vld [vmem:[#allocation10] sm:$0xf]
        %v3362 = vld [vmem:[#allocation10 + $0x4] sm:$0xf]
        %v3363 = vld [vmem:[#allocation10 + $0x8] sm:$0xf]
        %v3364 = vld [vmem:[#allocation10 + $0xc] sm:$0xf]
        %v3365 = vld [vmem:[#allocation10 + $0x10] sm:$0xf]
        %v3366 = vld [vmem:[#allocation10 + $0x14] sm:$0xf]
        %v3367 = vld [vmem:[#allocation10 + $0x18] sm:$0xf]
        %v3368 = vld [vmem:[#allocation10 + $0x1c] sm:$0xf]
        %v3369 = vld [vmem:[#allocation10 + $0x20] sm:$0xf]
        %v3370 = vld [vmem:[#allocation10 + $0x24] sm:$0xf]
        %v3371 = vld [vmem:[#allocation10 + $0x28] sm:$0xf]
        %v3372 = vld [vmem:[#allocation10 + $0x2c] sm:$0xf]
        %v3373 = vld [vmem:[#allocation10 + $0x30] sm:$0xf]
        %v3374 = vld [vmem:[#allocation10 + $0x34] sm:$0xf]
        %v3375 = vld [vmem:[#allocation10 + $0x38] sm:$0xf]
        %v3376 = vld [vmem:[#allocation10 + $0x3c] sm:$0xf]
        %v3377 = vld [vmem:[%s12] sm:$0x1]
        %v3379 = vlaneseq
        %v3380 = vshrl.u32 %v3379, 7
        %v3381 = vsub.s32 0, %v3380
        %v3382 = vrot.slane %v3377, %v3381
        %v3400 = vunpack.c.l.b16 %v3361
        %v3401 = vunpack.c.l.b16 %v3362
        %v3402 = vunpack.c.l.b16 %v3363
        %v3403 = vunpack.c.l.b16 %v3364
        %v3404 = vunpack.c.l.b16 %v3365
        %v3405 = vunpack.c.l.b16 %v3366
        %v3406 = vunpack.c.l.b16 %v3367
        %v3407 = vunpack.c.l.b16 %v3368
        %v3408 = vunpack.c.l.b16 %v3369
        %v3409 = vunpack.c.l.b16 %v3370
        %v3410 = vunpack.c.l.b16 %v3371
        %v3411 = vunpack.c.l.b16 %v3372
        %v3412 = vunpack.c.l.b16 %v3373
        %v3413 = vunpack.c.l.b16 %v3374
        %v3414 = vunpack.c.l.b16 %v3375
        %v3415 = vunpack.c.l.b16 %v3376
        %v3416 = vpack.c.b16 %v3401, %v3400
        %v3417 = vpack.c.b16 %v3403, %v3402
        %v3418 = vpack.c.b16 %v3405, %v3404
        %v3419 = vpack.c.b16 %v3407, %v3406
        %v3420 = vpack.c.b16 %v3409, %v3408
        %v3421 = vpack.c.b16 %v3411, %v3410
        %v3422 = vpack.c.b16 %v3413, %v3412
        %v3423 = vpack.c.b16 %v3415, %v3414
        %3432 = vmatprep.subr.bf16.mxu0 0
        %3433 = vmatpush1.bf16.msra.mxu0 %v3423
        %3434 = vmatprep.subr.bf16.mxu0 0
        %3435 = vmatpush1.bf16.msra.mxu0 %v3422
        %3436 = vmatprep.subr.bf16.mxu0 0
        %3437 = vmatpush1.bf16.msra.mxu0 %v3421
        %3438 = vmatprep.subr.bf16.mxu0 0
        %3439 = vmatpush1.bf16.msra.mxu0 %v3420
        %3440 = vmatprep.subr.bf16.mxu0 0
        %3441 = vmatpush1.bf16.msra.mxu0 %v3419
        %3442 = vmatprep.subr.bf16.mxu0 0
        %3443 = vmatpush1.bf16.msra.mxu0 %v3418
        %3444 = vmatprep.subr.bf16.mxu0 0
        %3445 = vmatpush1.bf16.msra.mxu0 %v3417
        %3446 = vmatprep.subr.bf16.mxu0 0
        %3447 = vmatpush1.bf16.msra.mxu0 %v3416
        %3448 = vmatprep.subr.bf16.mxu0 0
        %3449 = vmatpush2.bf16.msra.mxu0 0
        %3450 = vmatprep.subr.bf16.mxu0 0
        %3451 = vmatpush2.bf16.msra.mxu0 0
        %3452 = vmatprep.subr.bf16.mxu0 0
        %3453 = vmatpush2.bf16.msra.mxu0 0
        %3454 = vmatprep.subr.bf16.mxu0 0
        %3455 = vmatpush2.bf16.msra.mxu0 0
        %3456 = vmatprep.subr.bf16.mxu0 0
        %3457 = vmatpush2.bf16.msra.mxu0 0
        %3458 = vmatprep.subr.bf16.mxu0 0
        %3459 = vmatpush2.bf16.msra.mxu0 0
        %3460 = vmatprep.subr.bf16.mxu0 0
        %3461 = vmatpush2.bf16.msra.mxu0 0
        %3462 = vmatprep.subr.bf16.mxu0 0
        %3463 = vmatpush2.bf16.msra.mxu0 0
        %3464 = vmatprep.mubr.bf16.mxu0 0
        %3465 = vmatmul.mubr.bf16.gmra.mxu0 %v3359
        %v3466 = vpop.f32.mrf.mxu0
        %v3467 = vadd.f32 %v3382, %v3466
        %v3468 = vpop.f32.mrf.mxu0
        %v3469 = vpop.f32.mrf.mxu0
        %v3470 = vadd.f32 %v3382, %v3469
        %v3471 = vpop.f32.mrf.mxu0
        %3472 = vmatprep.mubr.bf16.mxu0 0
        %3473 = vmatmul.mubr.bf16.gmra.mxu0 %v3360
        %v3474 = vpop.f32.mrf.mxu0
        %v3475 = vadd.f32 %v3382, %v3474
        %v3476 = vpop.f32.mrf.mxu0
        %v3477 = vpop.f32.mrf.mxu0
        %v3478 = vadd.f32 %v3382, %v3477
        %v3479 = vpop.f32.mrf.mxu0
        %3480 = vdwg.mxu0
        %v3481 = vmax.f32 %v3467, 0.0
        %v3482 = vmax.f32 %v3470, 0.0
        %v3483 = vmax.f32 %v3475, 0.0
        %v3484 = vmax.f32 %v3478, 0.0
        %3485 = vst [vmem:[%s655] sm:$0xff] %v3481
        %3486 = vst [vmem:[%s655 + $0x8] sm:$0xff] %v3482
        %3487 = vst [vmem:[%s655 + $0x10] sm:$0xff] %v3483
        %3488 = vst [vmem:[%s655 + $0x18] sm:$0xff] %v3484
        %v3489 = vpack.c.bf16 %v3482, %v3481
        %v3490 = vpack.c.bf16 %v3484, %v3483
        %v3491 = vld [vmem:[#allocation11] sm:$0xf]
        %v3492 = vld [vmem:[#allocation11 + $0x4] sm:$0xf]
        %v3493 = vld [vmem:[#allocation11 + $0x8] sm:$0xf]
        %v3494 = vld [vmem:[#allocation11 + $0xc] sm:$0xf]
        %v3495 = vld [vmem:[#allocation11 + $0x10] sm:$0xf]
        %v3496 = vld [vmem:[#allocation11 + $0x14] sm:$0xf]
        %v3497 = vld [vmem:[#allocation11 + $0x18] sm:$0xf]
        %v3498 = vld [vmem:[#allocation11 + $0x1c] sm:$0xf]
        %v3499 = vld [vmem:[#allocation11 + $0x20] sm:$0xf]
        %v3500 = vld [vmem:[#allocation11 + $0x24] sm:$0xf]
        %v3501 = vld [vmem:[#allocation11 + $0x28] sm:$0xf]
        %v3502 = vld [vmem:[#allocation11 + $0x2c] sm:$0xf]
        %v3503 = vld [vmem:[#allocation11 + $0x30] sm:$0xf]
        %v3504 = vld [vmem:[#allocation11 + $0x34] sm:$0xf]
        %v3505 = vld [vmem:[#allocation11 + $0x38] sm:$0xf]
        %v3506 = vld [vmem:[#allocation11 + $0x3c] sm:$0xf]
        %v3507 = vld [vmem:[%s14] sm:$0x1]
        %v3509 = vlaneseq
        %v3510 = vshrl.u32 %v3509, 7
        %v3511 = vsub.s32 0, %v3510
        %v3512 = vrot.slane %v3507, %v3511
        %v3530 = vunpack.c.l.b16 %v3491
        %v3531 = vunpack.c.l.b16 %v3492
        %v3532 = vunpack.c.l.b16 %v3493
        %v3533 = vunpack.c.l.b16 %v3494
        %v3534 = vunpack.c.l.b16 %v3495
        %v3535 = vunpack.c.l.b16 %v3496
        %v3536 = vunpack.c.l.b16 %v3497
        %v3537 = vunpack.c.l.b16 %v3498
        %v3538 = vunpack.c.l.b16 %v3499
        %v3539 = vunpack.c.l.b16 %v3500
        %v3540 = vunpack.c.l.b16 %v3501
        %v3541 = vunpack.c.l.b16 %v3502
        %v3542 = vunpack.c.l.b16 %v3503
        %v3543 = vunpack.c.l.b16 %v3504
        %v3544 = vunpack.c.l.b16 %v3505
        %v3545 = vunpack.c.l.b16 %v3506
        %v3546 = vpack.c.b16 %v3531, %v3530
        %v3547 = vpack.c.b16 %v3533, %v3532
        %v3548 = vpack.c.b16 %v3535, %v3534
        %v3549 = vpack.c.b16 %v3537, %v3536
        %v3550 = vpack.c.b16 %v3539, %v3538
        %v3551 = vpack.c.b16 %v3541, %v3540
        %v3552 = vpack.c.b16 %v3543, %v3542
        %v3553 = vpack.c.b16 %v3545, %v3544
        %3562 = vmatprep.subr.bf16.mxu0 0
        %3563 = vmatpush1.bf16.msra.mxu0 %v3553
        %3564 = vmatprep.subr.bf16.mxu0 0
        %3565 = vmatpush1.bf16.msra.mxu0 %v3552
        %3566 = vmatprep.subr.bf16.mxu0 0
        %3567 = vmatpush1.bf16.msra.mxu0 %v3551
        %3568 = vmatprep.subr.bf16.mxu0 0
        %3569 = vmatpush1.bf16.msra.mxu0 %v3550
        %3570 = vmatprep.subr.bf16.mxu0 0
        %3571 = vmatpush1.bf16.msra.mxu0 %v3549
        %3572 = vmatprep.subr.bf16.mxu0 0
        %3573 = vmatpush1.bf16.msra.mxu0 %v3548
        %3574 = vmatprep.subr.bf16.mxu0 0
        %3575 = vmatpush1.bf16.msra.mxu0 %v3547
        %3576 = vmatprep.subr.bf16.mxu0 0
        %3577 = vmatpush1.bf16.msra.mxu0 %v3546
        %3578 = vmatprep.subr.bf16.mxu0 0
        %3579 = vmatpush2.bf16.msra.mxu0 0
        %3580 = vmatprep.subr.bf16.mxu0 0
        %3581 = vmatpush2.bf16.msra.mxu0 0
        %3582 = vmatprep.subr.bf16.mxu0 0
        %3583 = vmatpush2.bf16.msra.mxu0 0
        %3584 = vmatprep.subr.bf16.mxu0 0
        %3585 = vmatpush2.bf16.msra.mxu0 0
        %3586 = vmatprep.subr.bf16.mxu0 0
        %3587 = vmatpush2.bf16.msra.mxu0 0
        %3588 = vmatprep.subr.bf16.mxu0 0
        %3589 = vmatpush2.bf16.msra.mxu0 0
        %3590 = vmatprep.subr.bf16.mxu0 0
        %3591 = vmatpush2.bf16.msra.mxu0 0
        %3592 = vmatprep.subr.bf16.mxu0 0
        %3593 = vmatpush2.bf16.msra.mxu0 0
        %3594 = vmatprep.mubr.bf16.mxu0 0
        %3595 = vmatmul.mubr.bf16.gmra.mxu0 %v3489
        %v3596 = vpop.f32.mrf.mxu0
        %v3597 = vadd.f32 %v3512, %v3596
        %v3598 = vpop.f32.mrf.mxu0
        %v3599 = vpop.f32.mrf.mxu0
        %v3600 = vadd.f32 %v3512, %v3599
        %v3601 = vpop.f32.mrf.mxu0
        %3602 = vmatprep.mubr.bf16.mxu0 0
        %3603 = vmatmul.mubr.bf16.gmra.mxu0 %v3490
        %v3604 = vpop.f32.mrf.mxu0
        %v3605 = vadd.f32 %v3512, %v3604
        %v3606 = vpop.f32.mrf.mxu0
        %v3607 = vpop.f32.mrf.mxu0
        %v3608 = vadd.f32 %v3512, %v3607
        %v3609 = vpop.f32.mrf.mxu0
        %3610 = vdwg.mxu0
        %3611 = vst [vmem:[%s662] sm:$0xff] %v3597
        %3612 = vst [vmem:[%s662 + $0x8] sm:$0xff] %v3600
        %3613 = vst [vmem:[%s662 + $0x10] sm:$0xff] %v3605
        %3614 = vst [vmem:[%s662 + $0x18] sm:$0xff] %v3608
        %s3615 = sand.u32 %s372, 1
        %s3616 = scalar_lea.sflag [#allocation4], %s3615
        %s3617 = sand.u32 %s372, 1
        %s3618 = smul.addr %s3617, 32
        %s3619 = scalar_lea.vmem [#allocation13], %s3618
        %s3620 = sand.u32 %s39, 1
        %s3621 = scalar_lea.sflag [#allocation15], %s3620
        %s3622 = sand.u32 %s398, 1
        %s3623 = smul.addr %s3622, 32
        %s3624 = scalar_lea.vmem [#allocation14], %s3623
        %s3625 = sand.u32 %s39, 1
        %s3626 = scalar_lea.sflag [#allocation15], %s3625
        %s3627 = sand.u32 %s424, 1
        %s3628 = smul.addr %s3627, 32
        %s3629 = scalar_lea.vmem [#allocation16], %s3628
        // Predicated region
        $region105: #{tpu_custom_call.1} parent=79 // pred_check
          %p3630 = pneg %p382
        $region106: #{tpu_custom_call.1} parent=79 // pred_check_branch
          %3632 = sbr.rel (%p3630) target = $region108
        $region107: #{tpu_custom_call.1} parent=79 // pred_region
          %s3634 = ssub.s32 512, 512
          %3635 = vsyncadd %s3616, %s3634
          %s3636 = smul.addr %s39, 4
          %s3637 = smul.addr %s3636, 128
          %s3638 = scalar_lea.hbm %s15, %s3637
          %s3639 = sshll.u32 %s3619, 4
          %s3640 = int_to_ptr.vmem [resolvable:$true] %s3639
          %3645 = dma.vmem_to_hbm [thread:$0]  %s3640, 512, %s3638, %s3616, 128, 128, 8
        $region108: #{tpu_custom_call.1} parent=79 // pred_fallthru
          _
        // Predicated region
        $region109: #{tpu_custom_call.1} parent=79 // pred_check
          %p3646 = pneg %p408
        $region110: #{tpu_custom_call.1} parent=79 // pred_check_branch
          %3648 = sbr.rel (%p3646) target = $region112
        $region111: #{tpu_custom_call.1} parent=79 // pred_region
          %s3650 = ssub.s32 512, 512
          %3651 = vsyncadd %s3621, %s3650
          %s3652 = smul.addr %s39, 4
          %s3653 = smul.addr %s3652, 128
          %s3654 = scalar_lea.hbm %s16, %s3653
          %s3655 = sshll.u32 %s3624, 4
          %s3656 = int_to_ptr.vmem [resolvable:$true] %s3655
          %3661 = dma.vmem_to_hbm [thread:$0]  %s3656, 512, %s3654, %s3621, 128, 128, 8
        $region112: #{tpu_custom_call.1} parent=79 // pred_fallthru
          _
        // Predicated region
        $region113: #{tpu_custom_call.1} parent=79 // pred_check
          %p3662 = pneg %p434
        $region114: #{tpu_custom_call.1} parent=79 // pred_check_branch
          %3664 = sbr.rel (%p3662) target = $region116
        $region115: #{tpu_custom_call.1} parent=79 // pred_region
          %s3666 = ssub.s32 512, 512
          %3667 = vsyncadd %s3626, %s3666
          %s3668 = smul.addr %s39, 4
          %s3669 = smul.addr %s3668, 128
          %s3670 = scalar_lea.hbm %s17, %s3669
          %s3671 = sshll.u32 %s3629, 4
          %s3672 = int_to_ptr.vmem [resolvable:$true] %s3671
          %3677 = dma.vmem_to_hbm [thread:$0]  %s3672, 512, %s3670, %s3626, 128, 128, 8
        $region116: #{tpu_custom_call.1} parent=79 // pred_fallthru
          _
      $region80: #{tpu_custom_call.1} parent=5 // pred_fallthru
        _
      %p3678 = scmp.le.s32.totalorder 2, %s34
      // Predicated region
      $region117: #{tpu_custom_call.1} parent=5 // pred_check
        %p3679 = pneg %p3678
      $region118: #{tpu_custom_call.1} parent=5 // pred_check_branch
        %3681 = sbr.rel (%p3679) target = $region120
      $region119: #{tpu_custom_call.1} parent=5 // pred_region
        %s3682 = ssub.s32 %s34, 2
        // Predicated region
        $region121: #{tpu_custom_call.1} parent=119 // pred_check
          %p3683 = pneg %p388
        $region122: #{tpu_custom_call.1} parent=119 // pred_check_branch
          %3685 = sbr.rel (%p3683) target = $region124
        $region123: #{tpu_custom_call.1} parent=119 // pred_region
          %s3686 = sand.u32 %s373, 1
          %s3687 = scalar_lea.sflag [#allocation4], %s3686
          %s3688 = sand.u32 %s373, 1
          %s3689 = smul.addr %s3688, 32
          %s3690 = scalar_lea.vmem [#allocation13], %s3689
          %3691 = dma.done %s3687, 512
        $region124: #{tpu_custom_call.1} parent=119 // pred_fallthru
          _
        // Predicated region
        $region125: #{tpu_custom_call.1} parent=119 // pred_check
          %p3692 = pneg %p414
        $region126: #{tpu_custom_call.1} parent=119 // pred_check_branch
          %3694 = sbr.rel (%p3692) target = $region128
        $region127: #{tpu_custom_call.1} parent=119 // pred_region
          %s3695 = sand.u32 %s40, 1
          %s3696 = scalar_lea.sflag [#allocation15], %s3695
          %s3697 = sand.u32 %s399, 1
          %s3698 = smul.addr %s3697, 32
          %s3699 = scalar_lea.vmem [#allocation14], %s3698
          %3700 = dma.done %s3696, 512
        $region128: #{tpu_custom_call.1} parent=119 // pred_fallthru
          _
        // Predicated region
        $region129: #{tpu_custom_call.1} parent=119 // pred_check
          %p3701 = pneg %p440
        $region130: #{tpu_custom_call.1} parent=119 // pred_check_branch
          %3703 = sbr.rel (%p3701) target = $region132
        $region131: #{tpu_custom_call.1} parent=119 // pred_region
          %s3704 = sand.u32 %s40, 1
          %s3705 = scalar_lea.sflag [#allocation15], %s3704
          %s3706 = sand.u32 %s425, 1
          %s3707 = smul.addr %s3706, 32
          %s3708 = scalar_lea.vmem [#allocation16], %s3707
          %3709 = dma.done %s3705, 512
        $region132: #{tpu_custom_call.1} parent=119 // pred_fallthru
          _
      $region120: #{tpu_custom_call.1} parent=5 // pred_fallthru
        _
    $region6: #{tpu_custom_call.1} parent=1 // loop_footer
      %s38 = sadd.s32 1, %s34
    $region7: #{tpu_custom_call.1} parent=1 // loop_footer_branch
      %33 = sbr.rel target = $region3
    $region8: #{tpu_custom_call.1} parent=1 // loop_exit
      _
    %3710 = vsyncpa [#allocation3], 1
    %s3711 = scalar_lea.sflag [#allocation3], 1
    %3712 = vsyncpa %s3711, 1
    %3713 = vsyncpa [#allocation6], 1
    %3714 = vsyncpa [#allocation9], 1
    %3715 = vsyncpa [#allocation12], 1
    %3716 = vsyncpa [#allocation4], 1
    %s3717 = scalar_lea.sflag [#allocation4], 1
    %3718 = vsyncpa %s3717, 1
    %3719 = vsyncpa [#allocation15], 1
    %s3720 = scalar_lea.sflag [#allocation15], 1
    %3721 = vsyncpa %s3720, 1

</llo_original>
